<compile_context>
chip_gen: v7x
topology: tpu7x:2x2x1
jax: 0.10.0
libtpu: 0.0.40
codegen_flags: <defaults>
</compile_context>

<pallas_src>
import functools

import jax
import jax.numpy as jnp
from jax import lax
from jax.experimental import pallas as pl
from jax.experimental.pallas import tpu as pltpu


LANE = 128   # lane-dense padding target (use 256-multiples on v6e/v7x when real
             # sizes allow, to fill the 256-wide MXU)


def _round_up(x, m):
    return ((x + m - 1) // m) * m


# ----------------------------------------------------------------------------
# Fused conv stack: n_conv x (Conv1d + folded BatchNorm + ReLU), VMEM-resident
# ----------------------------------------------------------------------------
def _conv_stack_kernel(x_ref, w_ref, scale_ref, bias_ref, o_ref, xp_ref, *,
                       ksize, n_conv):
    # x_ref:     (bb, T, Ep)  f32   batch tile of embeddings (batch-major)
    # w_ref:     (n_conv, ksize, Ep, Ep) bf16  per-tap conv weights [Cin, Cout]
    # scale_ref: (n_conv, 1, Ep) f32  folded BN scale
    # bias_ref:  (n_conv, 1, Ep) f32  conv bias + BN shift (folded)
    # o_ref:     (T, bb, Ep) bf16  TIME-MAJOR output, fed straight to the LSTM
    # xp_ref:    (bb, T + 2*pad, Ep) bf16  persistent padded activation scratch
    bb, T, E = x_ref.shape
    pad = (ksize - 1) // 2

    # Zero the halo once; per layer only the interior slab is rewritten.
    if pad:
        zhalo = jnp.zeros((bb, pad, E), xp_ref.dtype)
        xp_ref[:, :pad, :] = zhalo
        xp_ref[:, T + pad:, :] = zhalo
    xp_ref[:, pad:T + pad, :] = x_ref[...].astype(xp_ref.dtype)

    for l in range(n_conv):                            # static unroll over layers
        xpv = xp_ref[...]                              # (bb, T+2p, Ep) bf16
        # Per-tap accumulation: ksize aligned MXU contractions into one f32
        # accumulator (no ksize*Ep lane-concat temporary, no reshape).
        acc = jnp.zeros((bb, T, E), jnp.float32)
        for k in range(ksize):
            xk = xpv[:, k:k + T, :]                                 # (bb, T, Ep)
            wk = jnp.broadcast_to(w_ref[l, k], (bb, E, E))          # (bb, Ep, Ep)
            acc = acc + jnp.einsum('bte,beo->bto', xk, wk,
                                   preferred_element_type=jnp.float32)
        y = jnp.maximum(acc * scale_ref[l] + bias_ref[l], 0.0)      # BN + ReLU
        # Dropout(0.5): identity in eval mode.
        if l < n_conv - 1:
            # carry the inter-layer activation in bf16 inside the padded scratch
            xp_ref[:, pad:T + pad, :] = y.astype(xp_ref.dtype)
        else:
            # emit TIME-MAJOR bf16: static per-time stores (one-time, off any
            # recurrent path).  TODO(synk): for large T, switch this to a
            # fori_loop / lane-dense block transpose instead of a full unroll.
            yb = y.astype(o_ref.dtype)                 # (bb, T, Ep)
            for t in range(T):
                o_ref[t] = yb[:, t, :]


def conv_stack(x, w_stack, scale, bias, ksize, batch_tile=None):
    """x: [B, T, Ep] f32 -> [T, B, Ep] bf16 through the whole fused conv stack."""
    B, T, Ep = x.shape
    n_conv, K = w_stack.shape[0], w_stack.shape[1]
    assert K == ksize
    if batch_tile is None:
        # TODO(synk): on v7x use batch_tile <= B//2 (a multiple of 16 for the
        # bf16 time-major out block) so the "parallel" grid axis actually shards
        # across both TensorCores; at toy B=2 we keep one program.
        batch_tile = B
    assert B % batch_tile == 0
    pad = (ksize - 1) // 2
    kern = functools.partial(_conv_stack_kernel, ksize=ksize, n_conv=n_conv)
    return pl.pallas_call(
        kern,
        out_shape=jax.ShapeDtypeStruct((T, B, Ep), jnp.bfloat16),
        grid=(B // batch_tile,),
        in_specs=[
            pl.BlockSpec((batch_tile, T, Ep), lambda i: (i, 0, 0)),
            pl.BlockSpec((n_conv, ksize, Ep, Ep), lambda i: (0, 0, 0, 0)),
            pl.BlockSpec((n_conv, 1, Ep), lambda i: (0, 0, 0)),
            pl.BlockSpec((n_conv, 1, Ep), lambda i: (0, 0, 0)),
        ],
        out_specs=pl.BlockSpec((T, batch_tile, Ep), lambda i: (0, i, 0)),
        scratch_shapes=[pltpu.VMEM((batch_tile, T + 2 * pad, Ep), jnp.bfloat16)],
        compiler_params=pltpu.CompilerParams(
            dimension_semantics=("parallel",),
            vmem_limit_bytes=32 * 1024 * 1024),
    )(x, w_stack, scale, bias)


# ----------------------------------------------------------------------------
# Bidirectional LSTM with packed-sequence (length-mask) semantics
# ----------------------------------------------------------------------------
def _bilstm_kernel(x_ref, len_ref, wih_ref, whh_ref, b_ref, o_ref,
                   gin_f_ref, gin_b_ref, *, B, T, Hd):
    # x_ref:   (T*B, Ep) bf16    time-major flat conv output (row = t*B + b)
    # len_ref: (B, 1) int32      valid lengths
    # wih_ref: (Ep, 8*Hd) bf16   [fwd i,f,g,o | bwd i,f,g,o] input weights
    # whh_ref: (2, Hd, 4*Hd) bf16 recurrent weights per direction
    # b_ref:   (1, 8*Hd) f32     b_ih + b_hh per direction
    # o_ref:   (T, B, 2*Hd) f32  fwd in lanes [:Hd], bwd in lanes [Hd:]
    # gin_*:   (T, B, 4*Hd) bf16 scratch: hoisted input-projection gates
    H4 = 4 * Hd

    # Hoisted input projection (+ bias): ONE big MXU matmul, out of the recurrence.
    proj = jnp.dot(x_ref[...], wih_ref[...],
                   preferred_element_type=jnp.float32) + b_ref[...]   # (T*B, 8Hd)
    # Scatter once into time-major per-direction slabs (bf16: halves the largest
    # VMEM object).  Static one-time unroll, off the recurrent critical path.
    # TODO(synk): for large T, fill gin in time chunks (fori_loop / emit_pipeline).
    for t in range(T):
        slab = proj[t * B:(t + 1) * B, :]
        gin_f_ref[t] = slab[:, :H4].astype(gin_f_ref.dtype)
        gin_b_ref[t] = slab[:, H4:].astype(gin_b_ref.dtype)

    lengths = len_ref[...]                                            # (B, 1)

    def gate_math(gin, rec, c):
        gates = gin.astype(jnp.float32) + rec                         # (B, 4Hd)
        i = jax.nn.sigmoid(gates[:, 0:Hd])
        f = jax.nn.sigmoid(gates[:, Hd:2 * Hd])
        g = jnp.tanh(gates[:, 2 * Hd:3 * Hd])
        o = jax.nn.sigmoid(gates[:, 3 * Hd:4 * Hd])
        c_new = f * c + i * g
        h_new = o * jnp.tanh(c_new)
        return h_new, c_new

    # TODO(synk): on v7x, split the two directions across the two TensorCores
    # (size-2 CORE_PARALLEL grid axis / core_map) instead of interleaving here.
    def step(s, carry):
        hf, cf, hb, cb = carry                                        # (B, Hd) f32
        tf = s
        tb = T - 1 - s
        # ---- forward direction, time tf ----
        rec_f = jnp.dot(hf.astype(jnp.bfloat16), whh_ref[0],
                        preferred_element_type=jnp.float32)           # (B, 4Hd)
        hfn, cfn = gate_math(gin_f_ref[tf], rec_f, cf)
        mf = lengths > tf                                             # packed mask
        hf = jnp.where(mf, hfn, hf)
        cf = jnp.where(mf, cfn, cf)
        o_ref[tf, :, 0:Hd] = jnp.where(mf, hfn, 0.0).astype(o_ref.dtype)
        # ---- backward direction, time tb (starts fresh at t = length-1) ----
        rec_b = jnp.dot(hb.astype(jnp.bfloat16), whh_ref[1],
                        preferred_element_type=jnp.float32)
        hbn, cbn = gate_math(gin_b_ref[tb], rec_b, cb)
        mb = lengths > tb
        hb = jnp.where(mb, hbn, hb)
        cb = jnp.where(mb, cbn, cb)
        o_ref[tb, :, Hd:2 * Hd] = jnp.where(mb, hbn, 0.0).astype(o_ref.dtype)
        return (hf, cf, hb, cb)

    z = jnp.zeros((B, Hd), jnp.float32)
    # bounded unroll: keeps code size / vreg pressure sane at real T while still
    # letting the scheduler overlap adjacent steps
    lax.fori_loop(0, T, step, (z, z, z, z), unroll=4)


def bilstm(x_tm, lengths, wih_all, whh_all, b_all, Hdp):
    """x_tm: [T, B, Ep] bf16 (time-major) -> [T, B, 2*Hdp] f32."""
    T, B, Ep = x_tm.shape
    x2 = x_tm.reshape(T * B, Ep)            # contiguous: metadata-only reshape
    len2d = lengths.astype(jnp.int32).reshape(B, 1)
    return pl.pallas_call(
        functools.partial(_bilstm_kernel, B=B, T=T, Hd=Hdp),
        out_shape=jax.ShapeDtypeStruct((T, B, 2 * Hdp), jnp.float32),
        scratch_shapes=[pltpu.VMEM((T, B, 4 * Hdp), jnp.bfloat16),
                        pltpu.VMEM((T, B, 4 * Hdp), jnp.bfloat16)],
        compiler_params=pltpu.CompilerParams(vmem_limit_bytes=32 * 1024 * 1024),
    )(x2, len2d, wih_all, whh_all, b_all)


# ----------------------------------------------------------------------------
# Parameter init (deterministic, synthetic, lane-padded) + forward glue
# ----------------------------------------------------------------------------
def init_params(key, vocab, E, n_conv, ksize, hidden):
    Hd = hidden // 2
    Ep = _round_up(E, LANE)
    Hdp = _round_up(Hd, LANE)
    eps = 1e-5
    keys = jax.random.split(key, 1 + 6 * n_conv + 8)
    ki = iter(range(len(keys)))

    params = {"E": E, "Ep": Ep, "Hd": Hd, "Hdp": Hdp}

    emb = 0.1 * jax.random.normal(keys[next(ki)], (vocab, E), jnp.float32)
    params["emb"] = jnp.pad(emb, ((0, 0), (0, Ep - E)))               # (vocab, Ep)

    w_list, s_list, b_list = [], [], []
    for _ in range(n_conv):
        w = 0.1 * jax.random.normal(keys[next(ki)], (E, E, ksize), jnp.float32)  # [Cout,Cin,K]
        b = 0.1 * jax.random.normal(keys[next(ki)], (E,), jnp.float32)
        gamma = 1.0 + 0.1 * jax.random.normal(keys[next(ki)], (E,), jnp.float32)
        beta = 0.1 * jax.random.normal(keys[next(ki)], (E,), jnp.float32)
        rmean = 0.05 * jax.random.normal(keys[next(ki)], (E,), jnp.float32)
        rvar = 1.0 + 0.1 * jnp.abs(jax.random.normal(keys[next(ki)], (E,), jnp.float32))
        # fold BN(eval) into the conv epilogue: relu(scale*conv + bias_eff)
        scale = gamma / jnp.sqrt(rvar + eps)
        bias_eff = beta - rmean * scale + b * scale
        # [Cout,Cin,K] -> [K,Cin,Cout], zero-pad both channel dims to Ep
        wt = jnp.transpose(w, (2, 1, 0))
        w_list.append(jnp.pad(wt, ((0, 0), (0, Ep - E), (0, Ep - E))))
        s_list.append(jnp.pad(scale, (0, Ep - E), constant_values=1.0).reshape(1, Ep))
        b_list.append(jnp.pad(bias_eff, (0, Ep - E)).reshape(1, Ep))
    params["conv_w"] = jnp.stack(w_list).astype(jnp.bfloat16)         # (n_conv,K,Ep,Ep)
    params["conv_scale"] = jnp.stack(s_list)                          # (n_conv,1,Ep)
    params["conv_bias"] = jnp.stack(b_list)                           # (n_conv,1,Ep)

    def lstm_dir():
        wih = 0.1 * jax.random.normal(keys[next(ki)], (4 * Hd, E), jnp.float32)
        whh = 0.1 * jax.random.normal(keys[next(ki)], (4 * Hd, Hd), jnp.float32)
        bih = 0.1 * jax.random.normal(keys[next(ki)], (4 * Hd,), jnp.float32)
        bhh = 0.1 * jax.random.normal(keys[next(ki)], (4 * Hd,), jnp.float32)
        # transpose, then zero-pad PER GATE so lane slices at Hdp multiples work;
        # padded gate units provably stay at h=c=0 (zero weights + zero bias).
        wih_p = jnp.pad(wih.T.reshape(E, 4, Hd),
                        ((0, Ep - E), (0, 0), (0, Hdp - Hd))).reshape(Ep, 4 * Hdp)
        whh_p = jnp.pad(whh.T.reshape(Hd, 4, Hd),
                        ((0, Hdp - Hd), (0, 0), (0, Hdp - Hd))).reshape(Hdp, 4 * Hdp)
        b_p = jnp.pad((bih + bhh).reshape(4, Hd),
                      ((0, 0), (0, Hdp - Hd))).reshape(1, 4 * Hdp)
        return wih_p, whh_p, b_p

    wih_f, whh_f, b_f = lstm_dir()
    wih_b, whh_b, b_b = lstm_dir()
    params["wih_all"] = jnp.concatenate([wih_f, wih_b], axis=1).astype(jnp.bfloat16)  # (Ep, 8Hdp)
    params["whh_all"] = jnp.stack([whh_f, whh_b]).astype(jnp.bfloat16)                # (2, Hdp, 4Hdp)
    params["b_all"] = jnp.concatenate([b_f, b_b], axis=1)                             # (1, 8Hdp)
    return params


def text_encoder_forward(params, text, text_lengths, ksize):
    # Embedding lookup is a gather -> plain JAX glue.
    x = params["emb"][text]                                           # (B, T, Ep) f32
    x = conv_stack(x, params["conv_w"], params["conv_scale"],
                   params["conv_bias"], ksize)                        # (T, B, Ep) bf16
    out = bilstm(x, text_lengths, params["wih_all"], params["whh_all"],
                 params["b_all"], params["Hdp"])                      # (T, B, 2*Hdp) f32
    Hd, Hdp = params["Hd"], params["Hdp"]
    out = jnp.transpose(out, (1, 0, 2))                               # (B, T, 2*Hdp)
    # strip lane padding: fwd lanes [:Hd], bwd lanes [Hdp:Hdp+Hd]
    return jnp.concatenate([out[..., :Hd], out[..., Hdp:Hdp + Hd]], axis=-1)


if __name__ == "__main__":
    B, T = 2, 8
    E, hidden, ksize, n_conv = 32, 32, 5, 3
    vocab = 40  # stand-in for len(symbols)

    key = jax.random.PRNGKey(0)
    kp, kt = jax.random.split(key)
    params = init_params(kp, vocab, E, n_conv, ksize, hidden)

    text = jax.random.randint(kt, (B, T), 0, vocab, dtype=jnp.int32)   # [B, T] token ids
    text_lengths = jnp.array([8, 5], dtype=jnp.int32)                  # [B] valid lengths

    out = text_encoder_forward(params, text, text_lengths, ksize)
    out = jax.block_until_ready(out)
    assert out.shape == (B, T, hidden), out.shape
    print("KERNEL_OK")
</pallas_src>

<mosaic_0001>
module attributes {stable_mosaic.version = 11 : i64} {
  func.func @_conv_stack_kernel(%arg0: i32, %arg1: memref<2x8x128xf32, #tpu.memory_space<vmem>>, %arg2: memref<3x5x128x128xbf16, #tpu.memory_space<vmem>>, %arg3: memref<3x1x128xf32, #tpu.memory_space<vmem>>, %arg4: memref<3x1x128xf32, #tpu.memory_space<vmem>>, %arg5: memref<8x2x128xbf16, #tpu.memory_space<vmem>>, %arg6: memref<2x12x128xbf16, #tpu.memory_space<vmem>>) attributes {dimension_semantics = [#tpu.dimension_semantics<parallel>], iteration_bounds = array<i64: 1>, scalar_prefetch = 0 : i64, scratch_operands = 1 : i64, tpu.core_type = #tpu.core_type<tc>, window_params = [{transform_indices = @transform_0, window_bounds = array<i64: 2, 8, 128>}, {pipeline_mode = #tpu.pipeline_mode<synchronous>, transform_indices = @transform_1, window_bounds = array<i64: 3, 5, 128, 128>}, {pipeline_mode = #tpu.pipeline_mode<synchronous>, transform_indices = @transform_2, window_bounds = array<i64: 3, 1, 128>}, {pipeline_mode = #tpu.pipeline_mode<synchronous>, transform_indices = @transform_3, window_bounds = array<i64: 3, 1, 128>}, {transform_indices = @transform_4, window_bounds = array<i64: 8, 2, 128>}]} {
    %cst = arith.constant 0.000000e+00 : bf16
    %0 = vector.broadcast %cst : bf16 to vector<2x2x128xbf16>
    %c0 = arith.constant 0 : index
    %c0_0 = arith.constant 0 : index
    %c0_1 = arith.constant 0 : index
    %1 = vector.load %arg6[%c0, %c0_0, %c0_1] : memref<2x12x128xbf16, #tpu.memory_space<vmem>>, vector<2x2x128xbf16>
    tpu.vector_store %arg6[%c0, %c0_0, %c0_1], %0 {strides = array<i32>} : memref<2x12x128xbf16, #tpu.memory_space<vmem>>, vector<2x2x128xbf16>,
    %c0_2 = arith.constant 0 : index
    %c10 = arith.constant 10 : index
    %c0_3 = arith.constant 0 : index
    %2 = vector.load %arg6[%c0_2, %c10, %c0_3] : memref<2x12x128xbf16, #tpu.memory_space<vmem>>, vector<2x2x128xbf16>
    tpu.vector_store %arg6[%c0_2, %c10, %c0_3], %0 {strides = array<i32>} : memref<2x12x128xbf16, #tpu.memory_space<vmem>>, vector<2x2x128xbf16>,
    %c0_4 = arith.constant 0 : index
    %c0_5 = arith.constant 0 : index
    %c0_6 = arith.constant 0 : index
    %3 = vector.load %arg1[%c0_4, %c0_5, %c0_6] : memref<2x8x128xf32, #tpu.memory_space<vmem>>, vector<2x8x128xf32>
    %4 = arith.truncf %3 : vector<2x8x128xf32> to vector<2x8x128xbf16>
    %c0_7 = arith.constant 0 : index
    %c2 = arith.constant 2 : index
    %c0_8 = arith.constant 0 : index
    %5 = vector.load %arg6[%c0_7, %c2, %c0_8] : memref<2x12x128xbf16, #tpu.memory_space<vmem>>, vector<2x8x128xbf16>
    tpu.vector_store %arg6[%c0_7, %c2, %c0_8], %4 {strides = array<i32>} : memref<2x12x128xbf16, #tpu.memory_space<vmem>>, vector<2x8x128xbf16>,
    %c0_9 = arith.constant 0 : index
    %c0_10 = arith.constant 0 : index
    %c0_11 = arith.constant 0 : index
    %6 = vector.load %arg6[%c0_9, %c0_10, %c0_11] : memref<2x12x128xbf16, #tpu.memory_space<vmem>>, vector<2x12x128xbf16>
    %cst_12 = arith.constant 0.000000e+00 : f32
    %7 = vector.broadcast %cst_12 : f32 to vector<2x8x128xf32>
    %8 = vector.extract_strided_slice %6 {offsets = [0, 0, 0], sizes = [2, 8, 128], strides = [1, 1, 1]} : vector<2x12x128xbf16> to vector<2x8x128xbf16>
    %c0_13 = arith.constant 0 : index
    %c0_14 = arith.constant 0 : index
    %c0_15 = arith.constant 0 : index
    %c0_16 = arith.constant 0 : index
    %9 = vector.load %arg2[%c0_13, %c0_14, %c0_15, %c0_16] : memref<3x5x128x128xbf16, #tpu.memory_space<vmem>>, vector<1x1x128x128xbf16>
    %10 = vector.shape_cast %9 : vector<1x1x128x128xbf16> to vector<128x128xbf16>
    %11 = vector.shape_cast %10 : vector<128x128xbf16> to vector<1x128x128xbf16>
    %12 = vector.broadcast %11 : vector<1x128x128xbf16> to vector<2x128x128xbf16>
    "tpu.trace_start"() <{level = 10 : i32, message = "bte,beo->bto"}> : () -> ()
    %cst_17 = arith.constant dense<0.000000e+00> : vector<2x8x128xf32>
    %13 = tpu.matmul %8, %12, %cst_17 {dimension_numbers = #tpu.dot_dimension_numbers<[2], [1], [1], [2], [0, 0, 0, 1, 1, 2], [0], [0]>} : vector<2x8x128xbf16>, vector<2x128x128xbf16>, vector<2x8x128xf32> -> vector<2x8x128xf32>
    "tpu.trace_stop"() : () -> ()
    %14 = arith.addf %7, %13 : vector<2x8x128xf32>
    %15 = vector.extract_strided_slice %6 {offsets = [0, 1, 0], sizes = [2, 8, 128], strides = [1, 1, 1]} : vector<2x12x128xbf16> to vector<2x8x128xbf16>
    %c0_18 = arith.constant 0 : index
    %c1 = arith.constant 1 : index
    %c0_19 = arith.constant 0 : index
    %c0_20 = arith.constant 0 : index
    %16 = vector.load %arg2[%c0_18, %c1, %c0_19, %c0_20] : memref<3x5x128x128xbf16, #tpu.memory_space<vmem>>, vector<1x1x128x128xbf16>
    %17 = vector.shape_cast %16 : vector<1x1x128x128xbf16> to vector<128x128xbf16>
    %18 = vector.shape_cast %17 : vector<128x128xbf16> to vector<1x128x128xbf16>
    %19 = vector.broadcast %18 : vector<1x128x128xbf16> to vector<2x128x128xbf16>
    "tpu.trace_start"() <{level = 10 : i32, message = "bte,beo->bto"}> : () -> ()
    %cst_21 = arith.constant dense<0.000000e+00> : vector<2x8x128xf32>
    %20 = tpu.matmul %15, %19, %cst_21 {dimension_numbers = #tpu.dot_dimension_numbers<[2], [1], [1], [2], [0, 0, 0, 1, 1, 2], [0], [0]>} : vector<2x8x128xbf16>, vector<2x128x128xbf16>, vector<2x8x128xf32> -> vector<2x8x128xf32>
    "tpu.trace_stop"() : () -> ()
    %21 = arith.addf %14, %20 : vector<2x8x128xf32>
    %22 = vector.extract_strided_slice %6 {offsets = [0, 2, 0], sizes = [2, 8, 128], strides = [1, 1, 1]} : vector<2x12x128xbf16> to vector<2x8x128xbf16>
    %c0_22 = arith.constant 0 : index
    %c2_23 = arith.constant 2 : index
    %c0_24 = arith.constant 0 : index
    %c0_25 = arith.constant 0 : index
    %23 = vector.load %arg2[%c0_22, %c2_23, %c0_24, %c0_25] : memref<3x5x128x128xbf16, #tpu.memory_space<vmem>>, vector<1x1x128x128xbf16>
    %24 = vector.shape_cast %23 : vector<1x1x128x128xbf16> to vector<128x128xbf16>
    %25 = vector.shape_cast %24 : vector<128x128xbf16> to vector<1x128x128xbf16>
    %26 = vector.broadcast %25 : vector<1x128x128xbf16> to vector<2x128x128xbf16>
    "tpu.trace_start"() <{level = 10 : i32, message = "bte,beo->bto"}> : () -> ()
    %cst_26 = arith.constant dense<0.000000e+00> : vector<2x8x128xf32>
    %27 = tpu.matmul %22, %26, %cst_26 {dimension_numbers = #tpu.dot_dimension_numbers<[2], [1], [1], [2], [0, 0, 0, 1, 1, 2], [0], [0]>} : vector<2x8x128xbf16>, vector<2x128x128xbf16>, vector<2x8x128xf32> -> vector<2x8x128xf32>
    "tpu.trace_stop"() : () -> ()
    %28 = arith.addf %21, %27 : vector<2x8x128xf32>
    %29 = vector.extract_strided_slice %6 {offsets = [0, 3, 0], sizes = [2, 8, 128], strides = [1, 1, 1]} : vector<2x12x128xbf16> to vector<2x8x128xbf16>
    %c0_27 = arith.constant 0 : index
    %c3 = arith.constant 3 : index
    %c0_28 = arith.constant 0 : index
    %c0_29 = arith.constant 0 : index
    %30 = vector.load %arg2[%c0_27, %c3, %c0_28, %c0_29] : memref<3x5x128x128xbf16, #tpu.memory_space<vmem>>, vector<1x1x128x128xbf16>
    %31 = vector.shape_cast %30 : vector<1x1x128x128xbf16> to vector<128x128xbf16>
    %32 = vector.shape_cast %31 : vector<128x128xbf16> to vector<1x128x128xbf16>
    %33 = vector.broadcast %32 : vector<1x128x128xbf16> to vector<2x128x128xbf16>
    "tpu.trace_start"() <{level = 10 : i32, message = "bte,beo->bto"}> : () -> ()
    %cst_30 = arith.constant dense<0.000000e+00> : vector<2x8x128xf32>
    %34 = tpu.matmul %29, %33, %cst_30 {dimension_numbers = #tpu.dot_dimension_numbers<[2], [1], [1], [2], [0, 0, 0, 1, 1, 2], [0], [0]>} : vector<2x8x128xbf16>, vector<2x128x128xbf16>, vector<2x8x128xf32> -> vector<2x8x128xf32>
    "tpu.trace_stop"() : () -> ()
    %35 = arith.addf %28, %34 : vector<2x8x128xf32>
    %36 = vector.extract_strided_slice %6 {offsets = [0, 4, 0], sizes = [2, 8, 128], strides = [1, 1, 1]} : vector<2x12x128xbf16> to vector<2x8x128xbf16>
    %c0_31 = arith.constant 0 : index
    %c4 = arith.constant 4 : index
    %c0_32 = arith.constant 0 : index
    %c0_33 = arith.constant 0 : index
    %37 = vector.load %arg2[%c0_31, %c4, %c0_32, %c0_33] : memref<3x5x128x128xbf16, #tpu.memory_space<vmem>>, vector<1x1x128x128xbf16>
    %38 = vector.shape_cast %37 : vector<1x1x128x128xbf16> to vector<128x128xbf16>
    %39 = vector.shape_cast %38 : vector<128x128xbf16> to vector<1x128x128xbf16>
    %40 = vector.broadcast %39 : vector<1x128x128xbf16> to vector<2x128x128xbf16>
    "tpu.trace_start"() <{level = 10 : i32, message = "bte,beo->bto"}> : () -> ()
    %cst_34 = arith.constant dense<0.000000e+00> : vector<2x8x128xf32>
    %41 = tpu.matmul %36, %40, %cst_34 {dimension_numbers = #tpu.dot_dimension_numbers<[2], [1], [1], [2], [0, 0, 0, 1, 1, 2], [0], [0]>} : vector<2x8x128xbf16>, vector<2x128x128xbf16>, vector<2x8x128xf32> -> vector<2x8x128xf32>
    "tpu.trace_stop"() : () -> ()
    %42 = arith.addf %35, %41 : vector<2x8x128xf32>
    %c0_35 = arith.constant 0 : index
    %c0_36 = arith.constant 0 : index
    %c0_37 = arith.constant 0 : index
    %43 = vector.load %arg3[%c0_35, %c0_36, %c0_37] : memref<3x1x128xf32, #tpu.memory_space<vmem>>, vector<1x1x128xf32>
    %44 = vector.shape_cast %43 : vector<1x1x128xf32> to vector<1x128xf32>
    %45 = vector.shape_cast %44 : vector<1x128xf32> to vector<1x1x128xf32>
    %46 = vector.broadcast %45 : vector<1x1x128xf32> to vector<2x8x128xf32>
    %47 = arith.mulf %42, %46 : vector<2x8x128xf32>
    %c0_38 = arith.constant 0 : index
    %c0_39 = arith.constant 0 : index
    %c0_40 = arith.constant 0 : index
    %48 = vector.load %arg4[%c0_38, %c0_39, %c0_40] : memref<3x1x128xf32, #tpu.memory_space<vmem>>, vector<1x1x128xf32>
    %49 = vector.shape_cast %48 : vector<1x1x128xf32> to vector<1x128xf32>
    %50 = vector.shape_cast %49 : vector<1x128xf32> to vector<1x1x128xf32>
    %51 = vector.broadcast %50 : vector<1x1x128xf32> to vector<2x8x128xf32>
    %52 = arith.addf %47, %51 : vector<2x8x128xf32>
    %cst_41 = arith.constant 0.000000e+00 : f32
    %53 = vector.broadcast %cst_41 : f32 to vector<2x8x128xf32>
    %54 = arith.maximumf %52, %53 : vector<2x8x128xf32>
    %55 = arith.truncf %54 : vector<2x8x128xf32> to vector<2x8x128xbf16>
    %c0_42 = arith.constant 0 : index
    %c2_43 = arith.constant 2 : index
    %c0_44 = arith.constant 0 : index
    %56 = vector.load %arg6[%c0_42, %c2_43, %c0_44] : memref<2x12x128xbf16, #tpu.memory_space<vmem>>, vector<2x8x128xbf16>
    tpu.vector_store %arg6[%c0_42, %c2_43, %c0_44], %55 {strides = array<i32>} : memref<2x12x128xbf16, #tpu.memory_space<vmem>>, vector<2x8x128xbf16>,
    %c0_45 = arith.constant 0 : index
    %c0_46 = arith.constant 0 : index
    %c0_47 = arith.constant 0 : index
    %57 = vector.load %arg6[%c0_45, %c0_46, %c0_47] : memref<2x12x128xbf16, #tpu.memory_space<vmem>>, vector<2x12x128xbf16>
    %cst_48 = arith.constant 0.000000e+00 : f32
    %58 = vector.broadcast %cst_48 : f32 to vector<2x8x128xf32>
    %59 = vector.extract_strided_slice %57 {offsets = [0, 0, 0], sizes = [2, 8, 128], strides = [1, 1, 1]} : vector<2x12x128xbf16> to vector<2x8x128xbf16>
    %c1_49 = arith.constant 1 : index
    %c0_50 = arith.constant 0 : index
    %c0_51 = arith.constant 0 : index
    %c0_52 = arith.constant 0 : index
    %60 = vector.load %arg2[%c1_49, %c0_50, %c0_51, %c0_52] : memref<3x5x128x128xbf16, #tpu.memory_space<vmem>>, vector<1x1x128x128xbf16>
    %61 = vector.shape_cast %60 : vector<1x1x128x128xbf16> to vector<128x128xbf16>
    %62 = vector.shape_cast %61 : vector<128x128xbf16> to vector<1x128x128xbf16>
    %63 = vector.broadcast %62 : vector<1x128x128xbf16> to vector<2x128x128xbf16>
    "tpu.trace_start"() <{level = 10 : i32, message = "bte,beo->bto"}> : () -> ()
    %cst_53 = arith.constant dense<0.000000e+00> : vector<2x8x128xf32>
    %64 = tpu.matmul %59, %63, %cst_53 {dimension_numbers = #tpu.dot_dimension_numbers<[2], [1], [1], [2], [0, 0, 0, 1, 1, 2], [0], [0]>} : vector<2x8x128xbf16>, vector<2x128x128xbf16>, vector<2x8x128xf32> -> vector<2x8x128xf32>
    "tpu.trace_stop"() : () -> ()
    %65 = arith.addf %58, %64 : vector<2x8x128xf32>
    %66 = vector.extract_strided_slice %57 {offsets = [0, 1, 0], sizes = [2, 8, 128], strides = [1, 1, 1]} : vector<2x12x128xbf16> to vector<2x8x128xbf16>
    %c1_54 = arith.constant 1 : index
    %c1_55 = arith.constant 1 : index
    %c0_56 = arith.constant 0 : index
    %c0_57 = arith.constant 0 : index
    %67 = vector.load %arg2[%c1_54, %c1_55, %c0_56, %c0_57] : memref<3x5x128x128xbf16, #tpu.memory_space<vmem>>, vector<1x1x128x128xbf16>
    %68 = vector.shape_cast %67 : vector<1x1x128x128xbf16> to vector<128x128xbf16>
    %69 = vector.shape_cast %68 : vector<128x128xbf16> to vector<1x128x128xbf16>
    %70 = vector.broadcast %69 : vector<1x128x128xbf16> to vector<2x128x128xbf16>
    "tpu.trace_start"() <{level = 10 : i32, message = "bte,beo->bto"}> : () -> ()
    %cst_58 = arith.constant dense<0.000000e+00> : vector<2x8x128xf32>
    %71 = tpu.matmul %66, %70, %cst_58 {dimension_numbers = #tpu.dot_dimension_numbers<[2], [1], [1], [2], [0, 0, 0, 1, 1, 2], [0], [0]>} : vector<2x8x128xbf16>, vector<2x128x128xbf16>, vector<2x8x128xf32> -> vector<2x8x128xf32>
    "tpu.trace_stop"() : () -> ()
    %72 = arith.addf %65, %71 : vector<2x8x128xf32>
    %73 = vector.extract_strided_slice %57 {offsets = [0, 2, 0], sizes = [2, 8, 128], strides = [1, 1, 1]} : vector<2x12x128xbf16> to vector<2x8x128xbf16>
    %c1_59 = arith.constant 1 : index
    %c2_60 = arith.constant 2 : index
    %c0_61 = arith.constant 0 : index
    %c0_62 = arith.constant 0 : index
    %74 = vector.load %arg2[%c1_59, %c2_60, %c0_61, %c0_62] : memref<3x5x128x128xbf16, #tpu.memory_space<vmem>>, vector<1x1x128x128xbf16>
    %75 = vector.shape_cast %74 : vector<1x1x128x128xbf16> to vector<128x128xbf16>
    %76 = vector.shape_cast %75 : vector<128x128xbf16> to vector<1x128x128xbf16>
    %77 = vector.broadcast %76 : vector<1x128x128xbf16> to vector<2x128x128xbf16>
    "tpu.trace_start"() <{level = 10 : i32, message = "bte,beo->bto"}> : () -> ()
    %cst_63 = arith.constant dense<0.000000e+00> : vector<2x8x128xf32>
    %78 = tpu.matmul %73, %77, %cst_63 {dimension_numbers = #tpu.dot_dimension_numbers<[2], [1], [1], [2], [0, 0, 0, 1, 1, 2], [0], [0]>} : vector<2x8x128xbf16>, vector<2x128x128xbf16>, vector<2x8x128xf32> -> vector<2x8x128xf32>
    "tpu.trace_stop"() : () -> ()
    %79 = arith.addf %72, %78 : vector<2x8x128xf32>
    %80 = vector.extract_strided_slice %57 {offsets = [0, 3, 0], sizes = [2, 8, 128], strides = [1, 1, 1]} : vector<2x12x128xbf16> to vector<2x8x128xbf16>
    %c1_64 = arith.constant 1 : index
    %c3_65 = arith.constant 3 : index
    %c0_66 = arith.constant 0 : index
    %c0_67 = arith.constant 0 : index
    %81 = vector.load %arg2[%c1_64, %c3_65, %c0_66, %c0_67] : memref<3x5x128x128xbf16, #tpu.memory_space<vmem>>, vector<1x1x128x128xbf16>
    %82 = vector.shape_cast %81 : vector<1x1x128x128xbf16> to vector<128x128xbf16>
    %83 = vector.shape_cast %82 : vector<128x128xbf16> to vector<1x128x128xbf16>
    %84 = vector.broadcast %83 : vector<1x128x128xbf16> to vector<2x128x128xbf16>
    "tpu.trace_start"() <{level = 10 : i32, message = "bte,beo->bto"}> : () -> ()
    %cst_68 = arith.constant dense<0.000000e+00> : vector<2x8x128xf32>
    %85 = tpu.matmul %80, %84, %cst_68 {dimension_numbers = #tpu.dot_dimension_numbers<[2], [1], [1], [2], [0, 0, 0, 1, 1, 2], [0], [0]>} : vector<2x8x128xbf16>, vector<2x128x128xbf16>, vector<2x8x128xf32> -> vector<2x8x128xf32>
    "tpu.trace_stop"() : () -> ()
    %86 = arith.addf %79, %85 : vector<2x8x128xf32>
    %87 = vector.extract_strided_slice %57 {offsets = [0, 4, 0], sizes = [2, 8, 128], strides = [1, 1, 1]} : vector<2x12x128xbf16> to vector<2x8x128xbf16>
    %c1_69 = arith.constant 1 : index
    %c4_70 = arith.constant 4 : index
    %c0_71 = arith.constant 0 : index
    %c0_72 = arith.constant 0 : index
    %88 = vector.load %arg2[%c1_69, %c4_70, %c0_71, %c0_72] : memref<3x5x128x128xbf16, #tpu.memory_space<vmem>>, vector<1x1x128x128xbf16>
    %89 = vector.shape_cast %88 : vector<1x1x128x128xbf16> to vector<128x128xbf16>
    %90 = vector.shape_cast %89 : vector<128x128xbf16> to vector<1x128x128xbf16>
    %91 = vector.broadcast %90 : vector<1x128x128xbf16> to vector<2x128x128xbf16>
    "tpu.trace_start"() <{level = 10 : i32, message = "bte,beo->bto"}> : () -> ()
    %cst_73 = arith.constant dense<0.000000e+00> : vector<2x8x128xf32>
    %92 = tpu.matmul %87, %91, %cst_73 {dimension_numbers = #tpu.dot_dimension_numbers<[2], [1], [1], [2], [0, 0, 0, 1, 1, 2], [0], [0]>} : vector<2x8x128xbf16>, vector<2x128x128xbf16>, vector<2x8x128xf32> -> vector<2x8x128xf32>
    "tpu.trace_stop"() : () -> ()
    %93 = arith.addf %86, %92 : vector<2x8x128xf32>
    %c1_74 = arith.constant 1 : index
    %c0_75 = arith.constant 0 : index
    %c0_76 = arith.constant 0 : index
    %94 = vector.load %arg3[%c1_74, %c0_75, %c0_76] : memref<3x1x128xf32, #tpu.memory_space<vmem>>, vector<1x1x128xf32>
    %95 = vector.shape_cast %94 : vector<1x1x128xf32> to vector<1x128xf32>
    %96 = vector.shape_cast %95 : vector<1x128xf32> to vector<1x1x128xf32>
    %97 = vector.broadcast %96 : vector<1x1x128xf32> to vector<2x8x128xf32>
    %98 = arith.mulf %93, %97 : vector<2x8x128xf32>
    %c1_77 = arith.constant 1 : index
    %c0_78 = arith.constant 0 : index
    %c0_79 = arith.constant 0 : index
    %99 = vector.load %arg4[%c1_77, %c0_78, %c0_79] : memref<3x1x128xf32, #tpu.memory_space<vmem>>, vector<1x1x128xf32>
    %100 = vector.shape_cast %99 : vector<1x1x128xf32> to vector<1x128xf32>
    %101 = vector.shape_cast %100 : vector<1x128xf32> to vector<1x1x128xf32>
    %102 = vector.broadcast %101 : vector<1x1x128xf32> to vector<2x8x128xf32>
    %103 = arith.addf %98, %102 : vector<2x8x128xf32>
    %cst_80 = arith.constant 0.000000e+00 : f32
    %104 = vector.broadcast %cst_80 : f32 to vector<2x8x128xf32>
    %105 = arith.maximumf %103, %104 : vector<2x8x128xf32>
    %106 = arith.truncf %105 : vector<2x8x128xf32> to vector<2x8x128xbf16>
    %c0_81 = arith.constant 0 : index
    %c2_82 = arith.constant 2 : index
    %c0_83 = arith.constant 0 : index
    %107 = vector.load %arg6[%c0_81, %c2_82, %c0_83] : memref<2x12x128xbf16, #tpu.memory_space<vmem>>, vector<2x8x128xbf16>
    tpu.vector_store %arg6[%c0_81, %c2_82, %c0_83], %106 {strides = array<i32>} : memref<2x12x128xbf16, #tpu.memory_space<vmem>>, vector<2x8x128xbf16>,
    %c0_84 = arith.constant 0 : index
    %c0_85 = arith.constant 0 : index
    %c0_86 = arith.constant 0 : index
    %108 = vector.load %arg6[%c0_84, %c0_85, %c0_86] : memref<2x12x128xbf16, #tpu.memory_space<vmem>>, vector<2x12x128xbf16>
    %cst_87 = arith.constant 0.000000e+00 : f32
    %109 = vector.broadcast %cst_87 : f32 to vector<2x8x128xf32>
    %110 = vector.extract_strided_slice %108 {offsets = [0, 0, 0], sizes = [2, 8, 128], strides = [1, 1, 1]} : vector<2x12x128xbf16> to vector<2x8x128xbf16>
    %c2_88 = arith.constant 2 : index
    %c0_89 = arith.constant 0 : index
    %c0_90 = arith.constant 0 : index
    %c0_91 = arith.constant 0 : index
    %111 = vector.load %arg2[%c2_88, %c0_89, %c0_90, %c0_91] : memref<3x5x128x128xbf16, #tpu.memory_space<vmem>>, vector<1x1x128x128xbf16>
    %112 = vector.shape_cast %111 : vector<1x1x128x128xbf16> to vector<128x128xbf16>
    %113 = vector.shape_cast %112 : vector<128x128xbf16> to vector<1x128x128xbf16>
    %114 = vector.broadcast %113 : vector<1x128x128xbf16> to vector<2x128x128xbf16>
    "tpu.trace_start"() <{level = 10 : i32, message = "bte,beo->bto"}> : () -> ()
    %cst_92 = arith.constant dense<0.000000e+00> : vector<2x8x128xf32>
    %115 = tpu.matmul %110, %114, %cst_92 {dimension_numbers = #tpu.dot_dimension_numbers<[2], [1], [1], [2], [0, 0, 0, 1, 1, 2], [0], [0]>} : vector<2x8x128xbf16>, vector<2x128x128xbf16>, vector<2x8x128xf32> -> vector<2x8x128xf32>
    "tpu.trace_stop"() : () -> ()
    %116 = arith.addf %109, %115 : vector<2x8x128xf32>
    %117 = vector.extract_strided_slice %108 {offsets = [0, 1, 0], sizes = [2, 8, 128], strides = [1, 1, 1]} : vector<2x12x128xbf16> to vector<2x8x128xbf16>
    %c2_93 = arith.constant 2 : index
    %c1_94 = arith.constant 1 : index
    %c0_95 = arith.constant 0 : index
    %c0_96 = arith.constant 0 : index
    %118 = vector.load %arg2[%c2_93, %c1_94, %c0_95, %c0_96] : memref<3x5x128x128xbf16, #tpu.memory_space<vmem>>, vector<1x1x128x128xbf16>
    %119 = vector.shape_cast %118 : vector<1x1x128x128xbf16> to vector<128x128xbf16>
    %120 = vector.shape_cast %119 : vector<128x128xbf16> to vector<1x128x128xbf16>
    %121 = vector.broadcast %120 : vector<1x128x128xbf16> to vector<2x128x128xbf16>
    "tpu.trace_start"() <{level = 10 : i32, message = "bte,beo->bto"}> : () -> ()
    %cst_97 = arith.constant dense<0.000000e+00> : vector<2x8x128xf32>
    %122 = tpu.matmul %117, %121, %cst_97 {dimension_numbers = #tpu.dot_dimension_numbers<[2], [1], [1], [2], [0, 0, 0, 1, 1, 2], [0], [0]>} : vector<2x8x128xbf16>, vector<2x128x128xbf16>, vector<2x8x128xf32> -> vector<2x8x128xf32>
    "tpu.trace_stop"() : () -> ()
    %123 = arith.addf %116, %122 : vector<2x8x128xf32>
    %124 = vector.extract_strided_slice %108 {offsets = [0, 2, 0], sizes = [2, 8, 128], strides = [1, 1, 1]} : vector<2x12x128xbf16> to vector<2x8x128xbf16>
    %c2_98 = arith.constant 2 : index
    %c2_99 = arith.constant 2 : index
    %c0_100 = arith.constant 0 : index
    %c0_101 = arith.constant 0 : index
    %125 = vector.load %arg2[%c2_98, %c2_99, %c0_100, %c0_101] : memref<3x5x128x128xbf16, #tpu.memory_space<vmem>>, vector<1x1x128x128xbf16>
    %126 = vector.shape_cast %125 : vector<1x1x128x128xbf16> to vector<128x128xbf16>
    %127 = vector.shape_cast %126 : vector<128x128xbf16> to vector<1x128x128xbf16>
    %128 = vector.broadcast %127 : vector<1x128x128xbf16> to vector<2x128x128xbf16>
    "tpu.trace_start"() <{level = 10 : i32, message = "bte,beo->bto"}> : () -> ()
    %cst_102 = arith.constant dense<0.000000e+00> : vector<2x8x128xf32>
    %129 = tpu.matmul %124, %128, %cst_102 {dimension_numbers = #tpu.dot_dimension_numbers<[2], [1], [1], [2], [0, 0, 0, 1, 1, 2], [0], [0]>} : vector<2x8x128xbf16>, vector<2x128x128xbf16>, vector<2x8x128xf32> -> vector<2x8x128xf32>
    "tpu.trace_stop"() : () -> ()
    %130 = arith.addf %123, %129 : vector<2x8x128xf32>
    %131 = vector.extract_strided_slice %108 {offsets = [0, 3, 0], sizes = [2, 8, 128], strides = [1, 1, 1]} : vector<2x12x128xbf16> to vector<2x8x128xbf16>
    %c2_103 = arith.constant 2 : index
    %c3_104 = arith.constant 3 : index
    %c0_105 = arith.constant 0 : index
    %c0_106 = arith.constant 0 : index
    %132 = vector.load %arg2[%c2_103, %c3_104, %c0_105, %c0_106] : memref<3x5x128x128xbf16, #tpu.memory_space<vmem>>, vector<1x1x128x128xbf16>
    %133 = vector.shape_cast %132 : vector<1x1x128x128xbf16> to vector<128x128xbf16>
    %134 = vector.shape_cast %133 : vector<128x128xbf16> to vector<1x128x128xbf16>
    %135 = vector.broadcast %134 : vector<1x128x128xbf16> to vector<2x128x128xbf16>
    "tpu.trace_start"() <{level = 10 : i32, message = "bte,beo->bto"}> : () -> ()
    %cst_107 = arith.constant dense<0.000000e+00> : vector<2x8x128xf32>
    %136 = tpu.matmul %131, %135, %cst_107 {dimension_numbers = #tpu.dot_dimension_numbers<[2], [1], [1], [2], [0, 0, 0, 1, 1, 2], [0], [0]>} : vector<2x8x128xbf16>, vector<2x128x128xbf16>, vector<2x8x128xf32> -> vector<2x8x128xf32>
    "tpu.trace_stop"() : () -> ()
    %137 = arith.addf %130, %136 : vector<2x8x128xf32>
    %138 = vector.extract_strided_slice %108 {offsets = [0, 4, 0], sizes = [2, 8, 128], strides = [1, 1, 1]} : vector<2x12x128xbf16> to vector<2x8x128xbf16>
    %c2_108 = arith.constant 2 : index
    %c4_109 = arith.constant 4 : index
    %c0_110 = arith.constant 0 : index
    %c0_111 = arith.constant 0 : index
    %139 = vector.load %arg2[%c2_108, %c4_109, %c0_110, %c0_111] : memref<3x5x128x128xbf16, #tpu.memory_space<vmem>>, vector<1x1x128x128xbf16>
    %140 = vector.shape_cast %139 : vector<1x1x128x128xbf16> to vector<128x128xbf16>
    %141 = vector.shape_cast %140 : vector<128x128xbf16> to vector<1x128x128xbf16>
    %142 = vector.broadcast %141 : vector<1x128x128xbf16> to vector<2x128x128xbf16>
    "tpu.trace_start"() <{level = 10 : i32, message = "bte,beo->bto"}> : () -> ()
    %cst_112 = arith.constant dense<0.000000e+00> : vector<2x8x128xf32>
    %143 = tpu.matmul %138, %142, %cst_112 {dimension_numbers = #tpu.dot_dimension_numbers<[2], [1], [1], [2], [0, 0, 0, 1, 1, 2], [0], [0]>} : vector<2x8x128xbf16>, vector<2x128x128xbf16>, vector<2x8x128xf32> -> vector<2x8x128xf32>
    "tpu.trace_stop"() : () -> ()
    %144 = arith.addf %137, %143 : vector<2x8x128xf32>
    %c2_113 = arith.constant 2 : index
    %c0_114 = arith.constant 0 : index
    %c0_115 = arith.constant 0 : index
    %145 = vector.load %arg3[%c2_113, %c0_114, %c0_115] : memref<3x1x128xf32, #tpu.memory_space<vmem>>, vector<1x1x128xf32>
    %146 = vector.shape_cast %145 : vector<1x1x128xf32> to vector<1x128xf32>
    %147 = vector.shape_cast %146 : vector<1x128xf32> to vector<1x1x128xf32>
    %148 = vector.broadcast %147 : vector<1x1x128xf32> to vector<2x8x128xf32>
    %149 = arith.mulf %144, %148 : vector<2x8x128xf32>
    %c2_116 = arith.constant 2 : index
    %c0_117 = arith.constant 0 : index
    %c0_118 = arith.constant 0 : index
    %150 = vector.load %arg4[%c2_116, %c0_117, %c0_118] : memref<3x1x128xf32, #tpu.memory_space<vmem>>, vector<1x1x128xf32>
    %151 = vector.shape_cast %150 : vector<1x1x128xf32> to vector<1x128xf32>
    %152 = vector.shape_cast %151 : vector<1x128xf32> to vector<1x1x128xf32>
    %153 = vector.broadcast %152 : vector<1x1x128xf32> to vector<2x8x128xf32>
    %154 = arith.addf %149, %153 : vector<2x8x128xf32>
    %cst_119 = arith.constant 0.000000e+00 : f32
    %155 = vector.broadcast %cst_119 : f32 to vector<2x8x128xf32>
    %156 = arith.maximumf %154, %155 : vector<2x8x128xf32>
    %157 = arith.truncf %156 : vector<2x8x128xf32> to vector<2x8x128xbf16>
    %158 = vector.extract_strided_slice %157 {offsets = [0, 0, 0], sizes = [2, 1, 128], strides = [1, 1, 1]} : vector<2x8x128xbf16> to vector<2x1x128xbf16>
    %159 = vector.shape_cast %158 : vector<2x1x128xbf16> to vector<2x128xbf16>
    %c0_120 = arith.constant 0 : index
    %c0_121 = arith.constant 0 : index
    %c0_122 = arith.constant 0 : index
    %160 = vector.load %arg5[%c0_120, %c0_121, %c0_122] : memref<8x2x128xbf16, #tpu.memory_space<vmem>>, vector<1x2x128xbf16>
    %161 = vector.shape_cast %160 : vector<1x2x128xbf16> to vector<2x128xbf16>
    %162 = vector.shape_cast %159 : vector<2x128xbf16> to vector<1x2x128xbf16>
    tpu.vector_store %arg5[%c0_120, %c0_121, %c0_122], %162 {strides = array<i32>} : memref<8x2x128xbf16, #tpu.memory_space<vmem>>, vector<1x2x128xbf16>,
    %163 = vector.extract_strided_slice %157 {offsets = [0, 1, 0], sizes = [2, 1, 128], strides = [1, 1, 1]} : vector<2x8x128xbf16> to vector<2x1x128xbf16>
    %164 = vector.shape_cast %163 : vector<2x1x128xbf16> to vector<2x128xbf16>
    %c1_123 = arith.constant 1 : index
    %c0_124 = arith.constant 0 : index
    %c0_125 = arith.constant 0 : index
    %165 = vector.load %arg5[%c1_123, %c0_124, %c0_125] : memref<8x2x128xbf16, #tpu.memory_space<vmem>>, vector<1x2x128xbf16>
    %166 = vector.shape_cast %165 : vector<1x2x128xbf16> to vector<2x128xbf16>
    %167 = vector.shape_cast %164 : vector<2x128xbf16> to vector<1x2x128xbf16>
    tpu.vector_store %arg5[%c1_123, %c0_124, %c0_125], %167 {strides = array<i32>} : memref<8x2x128xbf16, #tpu.memory_space<vmem>>, vector<1x2x128xbf16>,
    %168 = vector.extract_strided_slice %157 {offsets = [0, 2, 0], sizes = [2, 1, 128], strides = [1, 1, 1]} : vector<2x8x128xbf16> to vector<2x1x128xbf16>
    %169 = vector.shape_cast %168 : vector<2x1x128xbf16> to vector<2x128xbf16>
    %c2_126 = arith.constant 2 : index
    %c0_127 = arith.constant 0 : index
    %c0_128 = arith.constant 0 : index
    %170 = vector.load %arg5[%c2_126, %c0_127, %c0_128] : memref<8x2x128xbf16, #tpu.memory_space<vmem>>, vector<1x2x128xbf16>
    %171 = vector.shape_cast %170 : vector<1x2x128xbf16> to vector<2x128xbf16>
    %172 = vector.shape_cast %169 : vector<2x128xbf16> to vector<1x2x128xbf16>
    tpu.vector_store %arg5[%c2_126, %c0_127, %c0_128], %172 {strides = array<i32>} : memref<8x2x128xbf16, #tpu.memory_space<vmem>>, vector<1x2x128xbf16>,
    %173 = vector.extract_strided_slice %157 {offsets = [0, 3, 0], sizes = [2, 1, 128], strides = [1, 1, 1]} : vector<2x8x128xbf16> to vector<2x1x128xbf16>
    %174 = vector.shape_cast %173 : vector<2x1x128xbf16> to vector<2x128xbf16>
    %c3_129 = arith.constant 3 : index
    %c0_130 = arith.constant 0 : index
    %c0_131 = arith.constant 0 : index
    %175 = vector.load %arg5[%c3_129, %c0_130, %c0_131] : memref<8x2x128xbf16, #tpu.memory_space<vmem>>, vector<1x2x128xbf16>
    %176 = vector.shape_cast %175 : vector<1x2x128xbf16> to vector<2x128xbf16>
    %177 = vector.shape_cast %174 : vector<2x128xbf16> to vector<1x2x128xbf16>
    tpu.vector_store %arg5[%c3_129, %c0_130, %c0_131], %177 {strides = array<i32>} : memref<8x2x128xbf16, #tpu.memory_space<vmem>>, vector<1x2x128xbf16>,
    %178 = vector.extract_strided_slice %157 {offsets = [0, 4, 0], sizes = [2, 1, 128], strides = [1, 1, 1]} : vector<2x8x128xbf16> to vector<2x1x128xbf16>
    %179 = vector.shape_cast %178 : vector<2x1x128xbf16> to vector<2x128xbf16>
    %c4_132 = arith.constant 4 : index
    %c0_133 = arith.constant 0 : index
    %c0_134 = arith.constant 0 : index
    %180 = vector.load %arg5[%c4_132, %c0_133, %c0_134] : memref<8x2x128xbf16, #tpu.memory_space<vmem>>, vector<1x2x128xbf16>
    %181 = vector.shape_cast %180 : vector<1x2x128xbf16> to vector<2x128xbf16>
    %182 = vector.shape_cast %179 : vector<2x128xbf16> to vector<1x2x128xbf16>
    tpu.vector_store %arg5[%c4_132, %c0_133, %c0_134], %182 {strides = array<i32>} : memref<8x2x128xbf16, #tpu.memory_space<vmem>>, vector<1x2x128xbf16>,
    %183 = vector.extract_strided_slice %157 {offsets = [0, 5, 0], sizes = [2, 1, 128], strides = [1, 1, 1]} : vector<2x8x128xbf16> to vector<2x1x128xbf16>
    %184 = vector.shape_cast %183 : vector<2x1x128xbf16> to vector<2x128xbf16>
    %c5 = arith.constant 5 : index
    %c0_135 = arith.constant 0 : index
    %c0_136 = arith.constant 0 : index
    %185 = vector.load %arg5[%c5, %c0_135, %c0_136] : memref<8x2x128xbf16, #tpu.memory_space<vmem>>, vector<1x2x128xbf16>
    %186 = vector.shape_cast %185 : vector<1x2x128xbf16> to vector<2x128xbf16>
    %187 = vector.shape_cast %184 : vector<2x128xbf16> to vector<1x2x128xbf16>
    tpu.vector_store %arg5[%c5, %c0_135, %c0_136], %187 {strides = array<i32>} : memref<8x2x128xbf16, #tpu.memory_space<vmem>>, vector<1x2x128xbf16>,
    %188 = vector.extract_strided_slice %157 {offsets = [0, 6, 0], sizes = [2, 1, 128], strides = [1, 1, 1]} : vector<2x8x128xbf16> to vector<2x1x128xbf16>
    %189 = vector.shape_cast %188 : vector<2x1x128xbf16> to vector<2x128xbf16>
    %c6 = arith.constant 6 : index
    %c0_137 = arith.constant 0 : index
    %c0_138 = arith.constant 0 : index
    %190 = vector.load %arg5[%c6, %c0_137, %c0_138] : memref<8x2x128xbf16, #tpu.memory_space<vmem>>, vector<1x2x128xbf16>
    %191 = vector.shape_cast %190 : vector<1x2x128xbf16> to vector<2x128xbf16>
    %192 = vector.shape_cast %189 : vector<2x128xbf16> to vector<1x2x128xbf16>
    tpu.vector_store %arg5[%c6, %c0_137, %c0_138], %192 {strides = array<i32>} : memref<8x2x128xbf16, #tpu.memory_space<vmem>>, vector<1x2x128xbf16>,
    %193 = vector.extract_strided_slice %157 {offsets = [0, 7, 0], sizes = [2, 1, 128], strides = [1, 1, 1]} : vector<2x8x128xbf16> to vector<2x1x128xbf16>
    %194 = vector.shape_cast %193 : vector<2x1x128xbf16> to vector<2x128xbf16>
    %c7 = arith.constant 7 : index
    %c0_139 = arith.constant 0 : index
    %c0_140 = arith.constant 0 : index
    %195 = vector.load %arg5[%c7, %c0_139, %c0_140] : memref<8x2x128xbf16, #tpu.memory_space<vmem>>, vector<1x2x128xbf16>
    %196 = vector.shape_cast %195 : vector<1x2x128xbf16> to vector<2x128xbf16>
    %197 = vector.shape_cast %194 : vector<2x128xbf16> to vector<1x2x128xbf16>
    tpu.vector_store %arg5[%c7, %c0_139, %c0_140], %197 {strides = array<i32>} : memref<8x2x128xbf16, #tpu.memory_space<vmem>>, vector<1x2x128xbf16>,
    return
  }
  func.func @transform_0(%arg0: i32) -> (i32, i32, i32) {
    %c0_i32 = arith.constant 0 : i32
    %c0_i32_0 = arith.constant 0 : i32
    %c0_i32_1 = arith.constant 0 : i32
    return %arg0, %c0_i32, %c0_i32_0 : i32, i32, i32
  }
  func.func @transform_1(%arg0: i32) -> (i32, i32, i32, i32) {
    %c0_i32 = arith.constant 0 : i32
    %c0_i32_0 = arith.constant 0 : i32
    %c0_i32_1 = arith.constant 0 : i32
    %c0_i32_2 = arith.constant 0 : i32
    %c0_i32_3 = arith.constant 0 : i32
    return %c0_i32, %c0_i32_0, %c0_i32_1, %c0_i32_2 : i32, i32, i32, i32
  }
  func.func @transform_2(%arg0: i32) -> (i32, i32, i32) {
    %c0_i32 = arith.constant 0 : i32
    %c0_i32_0 = arith.constant 0 : i32
    %c0_i32_1 = arith.constant 0 : i32
    %c0_i32_2 = arith.constant 0 : i32
    return %c0_i32, %c0_i32_0, %c0_i32_1 : i32, i32, i32
  }
  func.func @transform_3(%arg0: i32) -> (i32, i32, i32) {
    %c0_i32 = arith.constant 0 : i32
    %c0_i32_0 = arith.constant 0 : i32
    %c0_i32_1 = arith.constant 0 : i32
    %c0_i32_2 = arith.constant 0 : i32
    return %c0_i32, %c0_i32_0, %c0_i32_1 : i32, i32, i32
  }
  func.func @transform_4(%arg0: i32) -> (i32, i32, i32) {
    %c0_i32 = arith.constant 0 : i32
    %c0_i32_0 = arith.constant 0 : i32
    %c0_i32_1 = arith.constant 0 : i32
    return %c0_i32, %arg0, %c0_i32_0 : i32, i32, i32
  }
}

</mosaic_0001>

<llo_original>
// kernel: tpu_custom_call.1
$region0: #{tpu_custom_call.1}
  #allocation0 [shape = 'u32[]', space=smem, size = 0x4, offset = 0x4, fixed_abs, tag = 'smem constant byte address 0x4 - core index']
  #allocation1 [shape = 'u32[144,128]{1,0:T(1,128)}', space=vmem, size = 0x12000, scoped, tag = 'internal scratch']
  #allocation2 [shape = 'bf16[2,12,128]{2,1,0:T(8,128)(2,1)}', space=vmem, size = 0x2000, scoped, tag = 'scratch operand']
  %s0 = inlined_call_operand.hbm [shape: f32[2,8,128], index: 0, kind: input, shape index: {}]
  %s1 = inlined_call_operand.hbm [shape: bf16[3,5,128,128], index: 1, kind: input, shape index: {}]
  %s2 = inlined_call_operand.vmem [shape: f32[3,1,128], index: 2, kind: input, shape index: {}]
  %s3 = inlined_call_operand.vmem [shape: f32[3,1,128], index: 3, kind: input, shape index: {}]
  %s4 = inlined_call_operand.hbm [shape: bf16[8,2,128], index: 4, kind: output, shape index: {}]
  %s5 = sld [smem:[#allocation0]]
  $region34: #{tpu_custom_call.1} parent=0
    _
  %s7 = ssub.s32 1, %s5
  %s8 = scalar_select 0, %s7, %s5
  $region1: #{tpu_custom_call.1} parent=0
    #allocation3 [shape = 'u8[8192]{0}', space=vmem, size = 0x2000, scoped, tag = 'input window, operand 0, single buffered']
    #allocation4 [shape = 's32[1]{0}', space=sflag, size = 0x4, scoped, tag = 'scoped memory for tpu_custom_call.1']
    #allocation5 [shape = 's32[1]{0}', space=sflag, size = 0x4, scoped, tag = 'scoped memory for tpu_custom_call.1']
    #allocation6 [shape = 'u8[491520]{0}', space=vmem, size = 0x78000, scoped, tag = 'input window, operand 1, single buffered']
    #allocation7 [shape = 's32[1]{0}', space=sflag, size = 0x4, scoped, tag = 'scoped memory for tpu_custom_call.1']
    #allocation8 [shape = 'u8[4096]{0}', space=vmem, size = 0x1000, scoped, tag = 'output window, operand 0, single buffered']
    %9 = vsyncpa [#allocation4], 0
    %10 = vsyncpa [#allocation7], 0
    %11 = vsyncpa [#allocation5], 0
    // Predicated region
    $region2: #{tpu_custom_call.1} parent=1 // pred_check
      _
    $region3: #{tpu_custom_call.1} parent=1 // pred_check_branch
      %13 = sbr.rel (0) target = $region5
    $region4: #{tpu_custom_call.1} parent=1 // pred_region
      %s15 = ssub.s32 256, 256
      %16 = vsyncadd [#allocation4], %s15
      %s17 = sshll.u32 [#allocation3], 4
      %s18 = int_to_ptr.vmem [resolvable:$true] %s17
      %23 = dma.hbm_to_vmem [thread:$0]  %s0, 256, %s18, [#allocation4], 128, 128, 8
    $region5: #{tpu_custom_call.1} parent=1 // pred_fallthru
      _
    // Predicated region
    $region6: #{tpu_custom_call.1} parent=1 // pred_check
      _
    $region7: #{tpu_custom_call.1} parent=1 // pred_check_branch
      %25 = sbr.rel (0) target = $region9
    $region8: #{tpu_custom_call.1} parent=1 // pred_region
      %s27 = ssub.s32 15360, 15360
      %28 = vsyncadd [#allocation7], %s27
      %s29 = sshll.u32 [#allocation6], 4
      %s30 = int_to_ptr.vmem [resolvable:$true] %s29
      %35 = dma.hbm_to_vmem [thread:$0]  %s1, 15360, %s30, [#allocation7], 64, 64, 4
    $region9: #{tpu_custom_call.1} parent=1 // pred_fallthru
      _
    // Predicated region
    $region10: #{tpu_custom_call.1} parent=1 // pred_check
      _
    $region11: #{tpu_custom_call.1} parent=1 // pred_check_branch
      %37 = sbr.rel (0) target = $region13
    $region12: #{tpu_custom_call.1} parent=1 // pred_region
      _
    $region13: #{tpu_custom_call.1} parent=1 // pred_fallthru
      _
    // Predicated region
    $region14: #{tpu_custom_call.1} parent=1 // pred_check
      _
    $region15: #{tpu_custom_call.1} parent=1 // pred_check_branch
      %39 = sbr.rel (0) target = $region17
    $region16: #{tpu_custom_call.1} parent=1 // pred_region
      _
    $region17: #{tpu_custom_call.1} parent=1 // pred_fallthru
      _
    // Predicated region
    $region18: #{tpu_custom_call.1} parent=1 // pred_check
      _
    $region19: #{tpu_custom_call.1} parent=1 // pred_check_branch
      %41 = sbr.rel (0) target = $region21
    $region20: #{tpu_custom_call.1} parent=1 // pred_region
      %42 = dma.done [#allocation4], 256
    $region21: #{tpu_custom_call.1} parent=1 // pred_fallthru
      _
    // Predicated region
    $region22: #{tpu_custom_call.1} parent=1 // pred_check
      _
    $region23: #{tpu_custom_call.1} parent=1 // pred_check_branch
      %44 = sbr.rel (0) target = $region25
    $region24: #{tpu_custom_call.1} parent=1 // pred_region
      %45 = dma.done [#allocation7], 15360
    $region25: #{tpu_custom_call.1} parent=1 // pred_fallthru
      _
    %47 = vst [vmem:[#allocation2] sm:$0x1] 0
    %48 = vst [vmem:[#allocation2 + $0x8] sm:$0x1] 0
    %49 = vst [vmem:[#allocation2 + $0x4] sm:$0x2] 0
    %50 = vst [vmem:[#allocation2 + $0xc] sm:$0x2] 0
    %v51 = vld [vmem:[#allocation3] sm:$0xff]
    %v52 = vld [vmem:[#allocation3 + $0x8] sm:$0xff]
    %v53 = vpack.c.bf16 %v51, %v51
    %v54 = vpack.c.bf16 %v52, %v52
    %v57 = vunpack.c.l.b16 %v53
    %v58 = vunpack.c.l.b16 %v54
    %v59 = vpack.c.b16 %v57, %v57
    %v60 = vpack.c.b16 %v58, %v58
    %v61 = vrot.slane %v59, 7
    %v62 = vrot.slane %v61, 4
    %v63 = vrot.slane %v60, 7
    %v64 = vrot.slane %v63, 4
    %69 = vst [vmem:[#allocation2] sm:$0xe] %v61
    %70 = vst [vmem:[#allocation2 + $0x4] sm:$0x1] %v62
    %71 = vst [vmem:[#allocation2 + $0x8] sm:$0xe] %v63
    %72 = vst [vmem:[#allocation2 + $0xc] sm:$0x1] %v64
    %v73 = vld [vmem:[#allocation2] sm:$0xf]
    %v74 = vld [vmem:[#allocation2 + $0x4] sm:$0x3]
    %v75 = vld [vmem:[#allocation2 + $0x8] sm:$0xf]
    %v76 = vld [vmem:[#allocation2 + $0xc] sm:$0x3]
    %v77 = vld [vmem:[#allocation6] sm:$0xf]
    %v78 = vld [vmem:[#allocation6 + $0x4] sm:$0xf]
    %v79 = vld [vmem:[#allocation6 + $0x8] sm:$0xf]
    %v80 = vld [vmem:[#allocation6 + $0xc] sm:$0xf]
    %v81 = vld [vmem:[#allocation6 + $0x10] sm:$0xf]
    %v82 = vld [vmem:[#allocation6 + $0x14] sm:$0xf]
    %v83 = vld [vmem:[#allocation6 + $0x18] sm:$0xf]
    %v84 = vld [vmem:[#allocation6 + $0x1c] sm:$0xf]
    %v85 = vld [vmem:[#allocation6 + $0x20] sm:$0xf]
    %v86 = vld [vmem:[#allocation6 + $0x24] sm:$0xf]
    %v87 = vld [vmem:[#allocation6 + $0x28] sm:$0xf]
    %v88 = vld [vmem:[#allocation6 + $0x2c] sm:$0xf]
    %v89 = vld [vmem:[#allocation6 + $0x30] sm:$0xf]
    %v90 = vld [vmem:[#allocation6 + $0x34] sm:$0xf]
    %v91 = vld [vmem:[#allocation6 + $0x38] sm:$0xf]
    %v92 = vld [vmem:[#allocation6 + $0x3c] sm:$0xf]
    %s93 = scalar_lea.vmem [#allocation6], 64
    %v94 = vld [vmem:[%s93] sm:$0xf]
    %v95 = vld [vmem:[%s93 + $0x4] sm:$0xf]
    %v96 = vld [vmem:[%s93 + $0x8] sm:$0xf]
    %v97 = vld [vmem:[%s93 + $0xc] sm:$0xf]
    %v98 = vld [vmem:[%s93 + $0x10] sm:$0xf]
    %v99 = vld [vmem:[%s93 + $0x14] sm:$0xf]
    %v100 = vld [vmem:[%s93 + $0x18] sm:$0xf]
    %v101 = vld [vmem:[%s93 + $0x1c] sm:$0xf]
    %v102 = vld [vmem:[%s93 + $0x20] sm:$0xf]
    %v103 = vld [vmem:[%s93 + $0x24] sm:$0xf]
    %v104 = vld [vmem:[%s93 + $0x28] sm:$0xf]
    %v105 = vld [vmem:[%s93 + $0x2c] sm:$0xf]
    %v106 = vld [vmem:[%s93 + $0x30] sm:$0xf]
    %v107 = vld [vmem:[%s93 + $0x34] sm:$0xf]
    %v108 = vld [vmem:[%s93 + $0x38] sm:$0xf]
    %v109 = vld [vmem:[%s93 + $0x3c] sm:$0xf]
    %v112 = vunpack.c.l.b16 %v73
    %v113 = vunpack.c.l.b16 %v74
    %v114 = vpack.c.b16 %v113, %v112
    %v116 = vshrl.u32 %v114, 16
    %v118 = vshll.u32 %v114, 16
    %v120 = vrot.slane %v118, 1
    %v121 = vor.u32 %v116, %v120
    %v139 = vunpack.c.l.b16 %v94
    %v140 = vunpack.c.l.b16 %v95
    %v141 = vunpack.c.l.b16 %v96
    %v142 = vunpack.c.l.b16 %v97
    %v143 = vunpack.c.l.b16 %v98
    %v144 = vunpack.c.l.b16 %v99
    %v145 = vunpack.c.l.b16 %v100
    %v146 = vunpack.c.l.b16 %v101
    %v147 = vunpack.c.l.b16 %v102
    %v148 = vunpack.c.l.b16 %v103
    %v149 = vunpack.c.l.b16 %v104
    %v150 = vunpack.c.l.b16 %v105
    %v151 = vunpack.c.l.b16 %v106
    %v152 = vunpack.c.l.b16 %v107
    %v153 = vunpack.c.l.b16 %v108
    %v154 = vunpack.c.l.b16 %v109
    %v155 = vpack.c.b16 %v140, %v139
    %v156 = vpack.c.b16 %v142, %v141
    %v157 = vpack.c.b16 %v144, %v143
    %v158 = vpack.c.b16 %v146, %v145
    %v159 = vpack.c.b16 %v148, %v147
    %v160 = vpack.c.b16 %v150, %v149
    %v161 = vpack.c.b16 %v152, %v151
    %v162 = vpack.c.b16 %v154, %v153
    %171 = vmatprep.subr.bf16.mxu0 0
    %172 = vmatpush1.bf16.msra.mxu0 %v155
    %173 = vmatprep.subr.bf16.mxu0 0
    %174 = vmatpush1.bf16.msra.mxu0 %v156
    %175 = vmatprep.subr.bf16.mxu0 0
    %176 = vmatpush1.bf16.msra.mxu0 %v157
    %177 = vmatprep.subr.bf16.mxu0 0
    %178 = vmatpush1.bf16.msra.mxu0 %v158
    %179 = vmatprep.subr.bf16.mxu0 0
    %180 = vmatpush1.bf16.msra.mxu0 %v159
    %181 = vmatprep.subr.bf16.mxu0 0
    %182 = vmatpush1.bf16.msra.mxu0 %v160
    %183 = vmatprep.subr.bf16.mxu0 0
    %184 = vmatpush1.bf16.msra.mxu0 %v161
    %185 = vmatprep.subr.bf16.mxu0 0
    %186 = vmatpush1.bf16.msra.mxu0 %v162
    %187 = vmatprep.subr.bf16.mxu0 0
    %188 = vmatpush1.bf16.msra.mxu0 0
    %189 = vmatprep.subr.bf16.mxu0 0
    %190 = vmatpush1.bf16.msra.mxu0 0
    %191 = vmatprep.subr.bf16.mxu0 0
    %192 = vmatpush1.bf16.msra.mxu0 0
    %193 = vmatprep.subr.bf16.mxu0 0
    %194 = vmatpush1.bf16.msra.mxu0 0
    %195 = vmatprep.subr.bf16.mxu0 0
    %196 = vmatpush1.bf16.msra.mxu0 0
    %197 = vmatprep.subr.bf16.mxu0 0
    %198 = vmatpush1.bf16.msra.mxu0 0
    %199 = vmatprep.subr.bf16.mxu0 0
    %200 = vmatpush1.bf16.msra.mxu0 0
    %201 = vmatprep.subr.bf16.mxu0 0
    %202 = vmatpush1.bf16.msra.mxu0 0
    %203 = vmatprep.mubr.bf16.mxu0 0
    %204 = vmatmul.mubr.bf16.gmra.mrb[0].mxu0 %v121
    %v205 = vpop.f32.mrb[0].mxu0
    %v206 = vadd.f32 0.0, %v205
    %v207 = vpop.f32.mrb[0].mxu0
    %v208 = vpop.f32.mrb[0].mxu0
    %v209 = vpop.f32.mrb[0].mxu0
    %210 = vdwg.mxu0
    %v213 = vunpack.c.l.b16 %v75
    %v214 = vunpack.c.l.b16 %v76
    %v215 = vpack.c.b16 %v214, %v213
    %v217 = vshrl.u32 %v215, 16
    %v219 = vshll.u32 %v215, 16
    %v221 = vrot.slane %v219, 1
    %v222 = vor.u32 %v217, %v221
    %224 = vmatprep.subr.bf16.mxu0 0
    %225 = vmatpush1.bf16.msra.mxu0 %v155
    %226 = vmatprep.subr.bf16.mxu0 0
    %227 = vmatpush1.bf16.msra.mxu0 %v156
    %228 = vmatprep.subr.bf16.mxu0 0
    %229 = vmatpush1.bf16.msra.mxu0 %v157
    %230 = vmatprep.subr.bf16.mxu0 0
    %231 = vmatpush1.bf16.msra.mxu0 %v158
    %232 = vmatprep.subr.bf16.mxu0 0
    %233 = vmatpush1.bf16.msra.mxu0 %v159
    %234 = vmatprep.subr.bf16.mxu0 0
    %235 = vmatpush1.bf16.msra.mxu0 %v160
    %236 = vmatprep.subr.bf16.mxu0 0
    %237 = vmatpush1.bf16.msra.mxu0 %v161
    %238 = vmatprep.subr.bf16.mxu0 0
    %239 = vmatpush1.bf16.msra.mxu0 %v162
    %240 = vmatprep.subr.bf16.mxu0 0
    %241 = vmatpush1.bf16.msra.mxu0 0
    %242 = vmatprep.subr.bf16.mxu0 0
    %243 = vmatpush1.bf16.msra.mxu0 0
    %244 = vmatprep.subr.bf16.mxu0 0
    %245 = vmatpush1.bf16.msra.mxu0 0
    %246 = vmatprep.subr.bf16.mxu0 0
    %247 = vmatpush1.bf16.msra.mxu0 0
    %248 = vmatprep.subr.bf16.mxu0 0
    %249 = vmatpush1.bf16.msra.mxu0 0
    %250 = vmatprep.subr.bf16.mxu0 0
    %251 = vmatpush1.bf16.msra.mxu0 0
    %252 = vmatprep.subr.bf16.mxu0 0
    %253 = vmatpush1.bf16.msra.mxu0 0
    %254 = vmatprep.subr.bf16.mxu0 0
    %255 = vmatpush1.bf16.msra.mxu0 0
    %256 = vmatprep.mubr.bf16.mxu0 0
    %257 = vmatmul.mubr.bf16.gmra.mrb[0].mxu0 %v222
    %v258 = vpop.f32.mrb[0].mxu0
    %v259 = vadd.f32 0.0, %v258
    %v260 = vpop.f32.mrb[0].mxu0
    %v261 = vpop.f32.mrb[0].mxu0
    %v262 = vpop.f32.mrb[0].mxu0
    %263 = vdwg.mxu0
    %v280 = vunpack.c.l.b16 %v77
    %v281 = vunpack.c.l.b16 %v78
    %v282 = vunpack.c.l.b16 %v79
    %v283 = vunpack.c.l.b16 %v80
    %v284 = vunpack.c.l.b16 %v81
    %v285 = vunpack.c.l.b16 %v82
    %v286 = vunpack.c.l.b16 %v83
    %v287 = vunpack.c.l.b16 %v84
    %v288 = vunpack.c.l.b16 %v85
    %v289 = vunpack.c.l.b16 %v86
    %v290 = vunpack.c.l.b16 %v87
    %v291 = vunpack.c.l.b16 %v88
    %v292 = vunpack.c.l.b16 %v89
    %v293 = vunpack.c.l.b16 %v90
    %v294 = vunpack.c.l.b16 %v91
    %v295 = vunpack.c.l.b16 %v92
    %v296 = vpack.c.b16 %v281, %v280
    %v297 = vpack.c.b16 %v283, %v282
    %v298 = vpack.c.b16 %v285, %v284
    %v299 = vpack.c.b16 %v287, %v286
    %v300 = vpack.c.b16 %v289, %v288
    %v301 = vpack.c.b16 %v291, %v290
    %v302 = vpack.c.b16 %v293, %v292
    %v303 = vpack.c.b16 %v295, %v294
    %312 = vmatprep.subr.bf16.mxu0 0
    %313 = vmatpush1.bf16.msra.mxu0 %v296
    %314 = vmatprep.subr.bf16.mxu0 0
    %315 = vmatpush1.bf16.msra.mxu0 %v297
    %316 = vmatprep.subr.bf16.mxu0 0
    %317 = vmatpush1.bf16.msra.mxu0 %v298
    %318 = vmatprep.subr.bf16.mxu0 0
    %319 = vmatpush1.bf16.msra.mxu0 %v299
    %320 = vmatprep.subr.bf16.mxu0 0
    %321 = vmatpush1.bf16.msra.mxu0 %v300
    %322 = vmatprep.subr.bf16.mxu0 0
    %323 = vmatpush1.bf16.msra.mxu0 %v301
    %324 = vmatprep.subr.bf16.mxu0 0
    %325 = vmatpush1.bf16.msra.mxu0 %v302
    %326 = vmatprep.subr.bf16.mxu0 0
    %327 = vmatpush1.bf16.msra.mxu0 %v303
    %328 = vmatprep.subr.bf16.mxu0 0
    %329 = vmatpush1.bf16.msra.mxu0 0
    %330 = vmatprep.subr.bf16.mxu0 0
    %331 = vmatpush1.bf16.msra.mxu0 0
    %332 = vmatprep.subr.bf16.mxu0 0
    %333 = vmatpush1.bf16.msra.mxu0 0
    %334 = vmatprep.subr.bf16.mxu0 0
    %335 = vmatpush1.bf16.msra.mxu0 0
    %336 = vmatprep.subr.bf16.mxu0 0
    %337 = vmatpush1.bf16.msra.mxu0 0
    %338 = vmatprep.subr.bf16.mxu0 0
    %339 = vmatpush1.bf16.msra.mxu0 0
    %340 = vmatprep.subr.bf16.mxu0 0
    %341 = vmatpush1.bf16.msra.mxu0 0
    %342 = vmatprep.subr.bf16.mxu0 0
    %343 = vmatpush1.bf16.msra.mxu0 0
    %344 = vmatprep.mubr.bf16.mxu0 0
    %345 = vmatmul.mubr.bf16.gmra.mrb[0].mxu0 %v73
    %v346 = vpop.f32.mrb[0].mxu0
    %v347 = vadd.f32 %v206, %v346
    %v348 = vpop.f32.mrb[0].mxu0
    %v349 = vpop.f32.mrb[0].mxu0
    %v350 = vpop.f32.mrb[0].mxu0
    %351 = vdwg.mxu0
    %352 = vmatprep.subr.bf16.mxu0 0
    %353 = vmatpush1.bf16.msra.mxu0 %v296
    %354 = vmatprep.subr.bf16.mxu0 0
    %355 = vmatpush1.bf16.msra.mxu0 %v297
    %356 = vmatprep.subr.bf16.mxu0 0
    %357 = vmatpush1.bf16.msra.mxu0 %v298
    %358 = vmatprep.subr.bf16.mxu0 0
    %359 = vmatpush1.bf16.msra.mxu0 %v299
    %360 = vmatprep.subr.bf16.mxu0 0
    %361 = vmatpush1.bf16.msra.mxu0 %v300
    %362 = vmatprep.subr.bf16.mxu0 0
    %363 = vmatpush1.bf16.msra.mxu0 %v301
    %364 = vmatprep.subr.bf16.mxu0 0
    %365 = vmatpush1.bf16.msra.mxu0 %v302
    %366 = vmatprep.subr.bf16.mxu0 0
    %367 = vmatpush1.bf16.msra.mxu0 %v303
    %368 = vmatprep.subr.bf16.mxu0 0
    %369 = vmatpush1.bf16.msra.mxu0 0
    %370 = vmatprep.subr.bf16.mxu0 0
    %371 = vmatpush1.bf16.msra.mxu0 0
    %372 = vmatprep.subr.bf16.mxu0 0
    %373 = vmatpush1.bf16.msra.mxu0 0
    %374 = vmatprep.subr.bf16.mxu0 0
    %375 = vmatpush1.bf16.msra.mxu0 0
    %376 = vmatprep.subr.bf16.mxu0 0
    %377 = vmatpush1.bf16.msra.mxu0 0
    %378 = vmatprep.subr.bf16.mxu0 0
    %379 = vmatpush1.bf16.msra.mxu0 0
    %380 = vmatprep.subr.bf16.mxu0 0
    %381 = vmatpush1.bf16.msra.mxu0 0
    %382 = vmatprep.subr.bf16.mxu0 0
    %383 = vmatpush1.bf16.msra.mxu0 0
    %384 = vmatprep.mubr.bf16.mxu0 0
    %385 = vmatmul.mubr.bf16.gmra.mrb[0].mxu0 %v75
    %v386 = vpop.f32.mrb[0].mxu0
    %v387 = vadd.f32 %v259, %v386
    %v388 = vpop.f32.mrb[0].mxu0
    %v389 = vpop.f32.mrb[0].mxu0
    %v390 = vpop.f32.mrb[0].mxu0
    %391 = vdwg.mxu0
    %s392 = scalar_lea.vmem [#allocation6], 128
    %v393 = vld [vmem:[%s392] sm:$0xf]
    %v394 = vld [vmem:[%s392 + $0x4] sm:$0xf]
    %v395 = vld [vmem:[%s392 + $0x8] sm:$0xf]
    %v396 = vld [vmem:[%s392 + $0xc] sm:$0xf]
    %v397 = vld [vmem:[%s392 + $0x10] sm:$0xf]
    %v398 = vld [vmem:[%s392 + $0x14] sm:$0xf]
    %v399 = vld [vmem:[%s392 + $0x18] sm:$0xf]
    %v400 = vld [vmem:[%s392 + $0x1c] sm:$0xf]
    %v401 = vld [vmem:[%s392 + $0x20] sm:$0xf]
    %v402 = vld [vmem:[%s392 + $0x24] sm:$0xf]
    %v403 = vld [vmem:[%s392 + $0x28] sm:$0xf]
    %v404 = vld [vmem:[%s392 + $0x2c] sm:$0xf]
    %v405 = vld [vmem:[%s392 + $0x30] sm:$0xf]
    %v406 = vld [vmem:[%s392 + $0x34] sm:$0xf]
    %v407 = vld [vmem:[%s392 + $0x38] sm:$0xf]
    %v408 = vld [vmem:[%s392 + $0x3c] sm:$0xf]
    %v409 = vrot.slane %v114, 1
    %v427 = vunpack.c.l.b16 %v393
    %v428 = vunpack.c.l.b16 %v394
    %v429 = vunpack.c.l.b16 %v395
    %v430 = vunpack.c.l.b16 %v396
    %v431 = vunpack.c.l.b16 %v397
    %v432 = vunpack.c.l.b16 %v398
    %v433 = vunpack.c.l.b16 %v399
    %v434 = vunpack.c.l.b16 %v400
    %v435 = vunpack.c.l.b16 %v401
    %v436 = vunpack.c.l.b16 %v402
    %v437 = vunpack.c.l.b16 %v403
    %v438 = vunpack.c.l.b16 %v404
    %v439 = vunpack.c.l.b16 %v405
    %v440 = vunpack.c.l.b16 %v406
    %v441 = vunpack.c.l.b16 %v407
    %v442 = vunpack.c.l.b16 %v408
    %v443 = vpack.c.b16 %v428, %v427
    %v444 = vpack.c.b16 %v430, %v429
    %v445 = vpack.c.b16 %v432, %v431
    %v446 = vpack.c.b16 %v434, %v433
    %v447 = vpack.c.b16 %v436, %v435
    %v448 = vpack.c.b16 %v438, %v437
    %v449 = vpack.c.b16 %v440, %v439
    %v450 = vpack.c.b16 %v442, %v441
    %459 = vmatprep.subr.bf16.mxu0 0
    %460 = vmatpush1.bf16.msra.mxu0 %v443
    %461 = vmatprep.subr.bf16.mxu0 0
    %462 = vmatpush1.bf16.msra.mxu0 %v444
    %463 = vmatprep.subr.bf16.mxu0 0
    %464 = vmatpush1.bf16.msra.mxu0 %v445
    %465 = vmatprep.subr.bf16.mxu0 0
    %466 = vmatpush1.bf16.msra.mxu0 %v446
    %467 = vmatprep.subr.bf16.mxu0 0
    %468 = vmatpush1.bf16.msra.mxu0 %v447
    %469 = vmatprep.subr.bf16.mxu0 0
    %470 = vmatpush1.bf16.msra.mxu0 %v448
    %471 = vmatprep.subr.bf16.mxu0 0
    %472 = vmatpush1.bf16.msra.mxu0 %v449
    %473 = vmatprep.subr.bf16.mxu0 0
    %474 = vmatpush1.bf16.msra.mxu0 %v450
    %475 = vmatprep.subr.bf16.mxu0 0
    %476 = vmatpush1.bf16.msra.mxu0 0
    %477 = vmatprep.subr.bf16.mxu0 0
    %478 = vmatpush1.bf16.msra.mxu0 0
    %479 = vmatprep.subr.bf16.mxu0 0
    %480 = vmatpush1.bf16.msra.mxu0 0
    %481 = vmatprep.subr.bf16.mxu0 0
    %482 = vmatpush1.bf16.msra.mxu0 0
    %483 = vmatprep.subr.bf16.mxu0 0
    %484 = vmatpush1.bf16.msra.mxu0 0
    %485 = vmatprep.subr.bf16.mxu0 0
    %486 = vmatpush1.bf16.msra.mxu0 0
    %487 = vmatprep.subr.bf16.mxu0 0
    %488 = vmatpush1.bf16.msra.mxu0 0
    %489 = vmatprep.subr.bf16.mxu0 0
    %490 = vmatpush1.bf16.msra.mxu0 0
    %491 = vmatprep.mubr.bf16.mxu0 0
    %492 = vmatmul.mubr.bf16.gmra.mrb[0].mxu0 %v409
    %v493 = vpop.f32.mrb[0].mxu0
    %v494 = vadd.f32 0.0, %v493
    %v495 = vpop.f32.mrb[0].mxu0
    %v496 = vpop.f32.mrb[0].mxu0
    %v497 = vpop.f32.mrb[0].mxu0
    %498 = vdwg.mxu0
    %v499 = vrot.slane %v215, 1
    %501 = vmatprep.subr.bf16.mxu0 0
    %502 = vmatpush1.bf16.msra.mxu0 %v443
    %503 = vmatprep.subr.bf16.mxu0 0
    %504 = vmatpush1.bf16.msra.mxu0 %v444
    %505 = vmatprep.subr.bf16.mxu0 0
    %506 = vmatpush1.bf16.msra.mxu0 %v445
    %507 = vmatprep.subr.bf16.mxu0 0
    %508 = vmatpush1.bf16.msra.mxu0 %v446
    %509 = vmatprep.subr.bf16.mxu0 0
    %510 = vmatpush1.bf16.msra.mxu0 %v447
    %511 = vmatprep.subr.bf16.mxu0 0
    %512 = vmatpush1.bf16.msra.mxu0 %v448
    %513 = vmatprep.subr.bf16.mxu0 0
    %514 = vmatpush1.bf16.msra.mxu0 %v449
    %515 = vmatprep.subr.bf16.mxu0 0
    %516 = vmatpush1.bf16.msra.mxu0 %v450
    %517 = vmatprep.subr.bf16.mxu0 0
    %518 = vmatpush1.bf16.msra.mxu0 0
    %519 = vmatprep.subr.bf16.mxu0 0
    %520 = vmatpush1.bf16.msra.mxu0 0
    %521 = vmatprep.subr.bf16.mxu0 0
    %522 = vmatpush1.bf16.msra.mxu0 0
    %523 = vmatprep.subr.bf16.mxu0 0
    %524 = vmatpush1.bf16.msra.mxu0 0
    %525 = vmatprep.subr.bf16.mxu0 0
    %526 = vmatpush1.bf16.msra.mxu0 0
    %527 = vmatprep.subr.bf16.mxu0 0
    %528 = vmatpush1.bf16.msra.mxu0 0
    %529 = vmatprep.subr.bf16.mxu0 0
    %530 = vmatpush1.bf16.msra.mxu0 0
    %531 = vmatprep.subr.bf16.mxu0 0
    %532 = vmatpush1.bf16.msra.mxu0 0
    %533 = vmatprep.mubr.bf16.mxu0 0
    %534 = vmatmul.mubr.bf16.gmra.mrb[0].mxu0 %v499
    %v535 = vpop.f32.mrb[0].mxu0
    %v536 = vadd.f32 0.0, %v535
    %v537 = vpop.f32.mrb[0].mxu0
    %v538 = vpop.f32.mrb[0].mxu0
    %v539 = vpop.f32.mrb[0].mxu0
    %540 = vdwg.mxu0
    %v541 = vadd.f32 %v347, %v494
    %v542 = vadd.f32 %v387, %v536
    %s543 = scalar_lea.vmem [#allocation6], 192
    %v544 = vld [vmem:[%s543] sm:$0xf]
    %v545 = vld [vmem:[%s543 + $0x4] sm:$0xf]
    %v546 = vld [vmem:[%s543 + $0x8] sm:$0xf]
    %v547 = vld [vmem:[%s543 + $0xc] sm:$0xf]
    %v548 = vld [vmem:[%s543 + $0x10] sm:$0xf]
    %v549 = vld [vmem:[%s543 + $0x14] sm:$0xf]
    %v550 = vld [vmem:[%s543 + $0x18] sm:$0xf]
    %v551 = vld [vmem:[%s543 + $0x1c] sm:$0xf]
    %v552 = vld [vmem:[%s543 + $0x20] sm:$0xf]
    %v553 = vld [vmem:[%s543 + $0x24] sm:$0xf]
    %v554 = vld [vmem:[%s543 + $0x28] sm:$0xf]
    %v555 = vld [vmem:[%s543 + $0x2c] sm:$0xf]
    %v556 = vld [vmem:[%s543 + $0x30] sm:$0xf]
    %v557 = vld [vmem:[%s543 + $0x34] sm:$0xf]
    %v558 = vld [vmem:[%s543 + $0x38] sm:$0xf]
    %v559 = vld [vmem:[%s543 + $0x3c] sm:$0xf]
    %v560 = vrot.slane %v116, 1
    %v561 = vrot.slane %v118, 2
    %v562 = vor.u32 %v560, %v561
    %v580 = vunpack.c.l.b16 %v544
    %v581 = vunpack.c.l.b16 %v545
    %v582 = vunpack.c.l.b16 %v546
    %v583 = vunpack.c.l.b16 %v547
    %v584 = vunpack.c.l.b16 %v548
    %v585 = vunpack.c.l.b16 %v549
    %v586 = vunpack.c.l.b16 %v550
    %v587 = vunpack.c.l.b16 %v551
    %v588 = vunpack.c.l.b16 %v552
    %v589 = vunpack.c.l.b16 %v553
    %v590 = vunpack.c.l.b16 %v554
    %v591 = vunpack.c.l.b16 %v555
    %v592 = vunpack.c.l.b16 %v556
    %v593 = vunpack.c.l.b16 %v557
    %v594 = vunpack.c.l.b16 %v558
    %v595 = vunpack.c.l.b16 %v559
    %v596 = vpack.c.b16 %v581, %v580
    %v597 = vpack.c.b16 %v583, %v582
    %v598 = vpack.c.b16 %v585, %v584
    %v599 = vpack.c.b16 %v587, %v586
    %v600 = vpack.c.b16 %v589, %v588
    %v601 = vpack.c.b16 %v591, %v590
    %v602 = vpack.c.b16 %v593, %v592
    %v603 = vpack.c.b16 %v595, %v594
    %612 = vmatprep.subr.bf16.mxu0 0
    %613 = vmatpush1.bf16.msra.mxu0 %v596
    %614 = vmatprep.subr.bf16.mxu0 0
    %615 = vmatpush1.bf16.msra.mxu0 %v597
    %616 = vmatprep.subr.bf16.mxu0 0
    %617 = vmatpush1.bf16.msra.mxu0 %v598
    %618 = vmatprep.subr.bf16.mxu0 0
    %619 = vmatpush1.bf16.msra.mxu0 %v599
    %620 = vmatprep.subr.bf16.mxu0 0
    %621 = vmatpush1.bf16.msra.mxu0 %v600
    %622 = vmatprep.subr.bf16.mxu0 0
    %623 = vmatpush1.bf16.msra.mxu0 %v601
    %624 = vmatprep.subr.bf16.mxu0 0
    %625 = vmatpush1.bf16.msra.mxu0 %v602
    %626 = vmatprep.subr.bf16.mxu0 0
    %627 = vmatpush1.bf16.msra.mxu0 %v603
    %628 = vmatprep.subr.bf16.mxu0 0
    %629 = vmatpush1.bf16.msra.mxu0 0
    %630 = vmatprep.subr.bf16.mxu0 0
    %631 = vmatpush1.bf16.msra.mxu0 0
    %632 = vmatprep.subr.bf16.mxu0 0
    %633 = vmatpush1.bf16.msra.mxu0 0
    %634 = vmatprep.subr.bf16.mxu0 0
    %635 = vmatpush1.bf16.msra.mxu0 0
    %636 = vmatprep.subr.bf16.mxu0 0
    %637 = vmatpush1.bf16.msra.mxu0 0
    %638 = vmatprep.subr.bf16.mxu0 0
    %639 = vmatpush1.bf16.msra.mxu0 0
    %640 = vmatprep.subr.bf16.mxu0 0
    %641 = vmatpush1.bf16.msra.mxu0 0
    %642 = vmatprep.subr.bf16.mxu0 0
    %643 = vmatpush1.bf16.msra.mxu0 0
    %644 = vmatprep.mubr.bf16.mxu0 0
    %645 = vmatmul.mubr.bf16.gmra.mrb[0].mxu0 %v562
    %v646 = vpop.f32.mrb[0].mxu0
    %v647 = vadd.f32 0.0, %v646
    %v648 = vpop.f32.mrb[0].mxu0
    %v649 = vpop.f32.mrb[0].mxu0
    %v650 = vpop.f32.mrb[0].mxu0
    %651 = vdwg.mxu0
    %v652 = vrot.slane %v217, 1
    %v653 = vrot.slane %v219, 2
    %v654 = vor.u32 %v652, %v653
    %656 = vmatprep.subr.bf16.mxu0 0
    %657 = vmatpush1.bf16.msra.mxu0 %v596
    %658 = vmatprep.subr.bf16.mxu0 0
    %659 = vmatpush1.bf16.msra.mxu0 %v597
    %660 = vmatprep.subr.bf16.mxu0 0
    %661 = vmatpush1.bf16.msra.mxu0 %v598
    %662 = vmatprep.subr.bf16.mxu0 0
    %663 = vmatpush1.bf16.msra.mxu0 %v599
    %664 = vmatprep.subr.bf16.mxu0 0
    %665 = vmatpush1.bf16.msra.mxu0 %v600
    %666 = vmatprep.subr.bf16.mxu0 0
    %667 = vmatpush1.bf16.msra.mxu0 %v601
    %668 = vmatprep.subr.bf16.mxu0 0
    %669 = vmatpush1.bf16.msra.mxu0 %v602
    %670 = vmatprep.subr.bf16.mxu0 0
    %671 = vmatpush1.bf16.msra.mxu0 %v603
    %672 = vmatprep.subr.bf16.mxu0 0
    %673 = vmatpush1.bf16.msra.mxu0 0
    %674 = vmatprep.subr.bf16.mxu0 0
    %675 = vmatpush1.bf16.msra.mxu0 0
    %676 = vmatprep.subr.bf16.mxu0 0
    %677 = vmatpush1.bf16.msra.mxu0 0
    %678 = vmatprep.subr.bf16.mxu0 0
    %679 = vmatpush1.bf16.msra.mxu0 0
    %680 = vmatprep.subr.bf16.mxu0 0
    %681 = vmatpush1.bf16.msra.mxu0 0
    %682 = vmatprep.subr.bf16.mxu0 0
    %683 = vmatpush1.bf16.msra.mxu0 0
    %684 = vmatprep.subr.bf16.mxu0 0
    %685 = vmatpush1.bf16.msra.mxu0 0
    %686 = vmatprep.subr.bf16.mxu0 0
    %687 = vmatpush1.bf16.msra.mxu0 0
    %688 = vmatprep.mubr.bf16.mxu0 0
    %689 = vmatmul.mubr.bf16.gmra.mrb[0].mxu0 %v654
    %v690 = vpop.f32.mrb[0].mxu0
    %v691 = vadd.f32 0.0, %v690
    %v692 = vpop.f32.mrb[0].mxu0
    %v693 = vpop.f32.mrb[0].mxu0
    %v694 = vpop.f32.mrb[0].mxu0
    %695 = vdwg.mxu0
    %v696 = vadd.f32 %v541, %v647
    %v697 = vadd.f32 %v542, %v691
    %s698 = scalar_lea.vmem [#allocation6], 256
    %v699 = vld [vmem:[%s698] sm:$0xf]
    %v700 = vld [vmem:[%s698 + $0x4] sm:$0xf]
    %v701 = vld [vmem:[%s698 + $0x8] sm:$0xf]
    %v702 = vld [vmem:[%s698 + $0xc] sm:$0xf]
    %v703 = vld [vmem:[%s698 + $0x10] sm:$0xf]
    %v704 = vld [vmem:[%s698 + $0x14] sm:$0xf]
    %v705 = vld [vmem:[%s698 + $0x18] sm:$0xf]
    %v706 = vld [vmem:[%s698 + $0x1c] sm:$0xf]
    %v707 = vld [vmem:[%s698 + $0x20] sm:$0xf]
    %v708 = vld [vmem:[%s698 + $0x24] sm:$0xf]
    %v709 = vld [vmem:[%s698 + $0x28] sm:$0xf]
    %v710 = vld [vmem:[%s698 + $0x2c] sm:$0xf]
    %v711 = vld [vmem:[%s698 + $0x30] sm:$0xf]
    %v712 = vld [vmem:[%s698 + $0x34] sm:$0xf]
    %v713 = vld [vmem:[%s698 + $0x38] sm:$0xf]
    %v714 = vld [vmem:[%s698 + $0x3c] sm:$0xf]
    %v715 = vrot.slane %v114, 2
    %v733 = vunpack.c.l.b16 %v699
    %v734 = vunpack.c.l.b16 %v700
    %v735 = vunpack.c.l.b16 %v701
    %v736 = vunpack.c.l.b16 %v702
    %v737 = vunpack.c.l.b16 %v703
    %v738 = vunpack.c.l.b16 %v704
    %v739 = vunpack.c.l.b16 %v705
    %v740 = vunpack.c.l.b16 %v706
    %v741 = vunpack.c.l.b16 %v707
    %v742 = vunpack.c.l.b16 %v708
    %v743 = vunpack.c.l.b16 %v709
    %v744 = vunpack.c.l.b16 %v710
    %v745 = vunpack.c.l.b16 %v711
    %v746 = vunpack.c.l.b16 %v712
    %v747 = vunpack.c.l.b16 %v713
    %v748 = vunpack.c.l.b16 %v714
    %v749 = vpack.c.b16 %v734, %v733
    %v750 = vpack.c.b16 %v736, %v735
    %v751 = vpack.c.b16 %v738, %v737
    %v752 = vpack.c.b16 %v740, %v739
    %v753 = vpack.c.b16 %v742, %v741
    %v754 = vpack.c.b16 %v744, %v743
    %v755 = vpack.c.b16 %v746, %v745
    %v756 = vpack.c.b16 %v748, %v747
    %765 = vmatprep.subr.bf16.mxu0 0
    %766 = vmatpush1.bf16.msra.mxu0 %v749
    %767 = vmatprep.subr.bf16.mxu0 0
    %768 = vmatpush1.bf16.msra.mxu0 %v750
    %769 = vmatprep.subr.bf16.mxu0 0
    %770 = vmatpush1.bf16.msra.mxu0 %v751
    %771 = vmatprep.subr.bf16.mxu0 0
    %772 = vmatpush1.bf16.msra.mxu0 %v752
    %773 = vmatprep.subr.bf16.mxu0 0
    %774 = vmatpush1.bf16.msra.mxu0 %v753
    %775 = vmatprep.subr.bf16.mxu0 0
    %776 = vmatpush1.bf16.msra.mxu0 %v754
    %777 = vmatprep.subr.bf16.mxu0 0
    %778 = vmatpush1.bf16.msra.mxu0 %v755
    %779 = vmatprep.subr.bf16.mxu0 0
    %780 = vmatpush1.bf16.msra.mxu0 %v756
    %781 = vmatprep.subr.bf16.mxu0 0
    %782 = vmatpush1.bf16.msra.mxu0 0
    %783 = vmatprep.subr.bf16.mxu0 0
    %784 = vmatpush1.bf16.msra.mxu0 0
    %785 = vmatprep.subr.bf16.mxu0 0
    %786 = vmatpush1.bf16.msra.mxu0 0
    %787 = vmatprep.subr.bf16.mxu0 0
    %788 = vmatpush1.bf16.msra.mxu0 0
    %789 = vmatprep.subr.bf16.mxu0 0
    %790 = vmatpush1.bf16.msra.mxu0 0
    %791 = vmatprep.subr.bf16.mxu0 0
    %792 = vmatpush1.bf16.msra.mxu0 0
    %793 = vmatprep.subr.bf16.mxu0 0
    %794 = vmatpush1.bf16.msra.mxu0 0
    %795 = vmatprep.subr.bf16.mxu0 0
    %796 = vmatpush1.bf16.msra.mxu0 0
    %797 = vmatprep.mubr.bf16.mxu0 0
    %798 = vmatmul.mubr.bf16.gmra.mrb[0].mxu0 %v715
    %v799 = vpop.f32.mrb[0].mxu0
    %v800 = vadd.f32 0.0, %v799
    %v801 = vpop.f32.mrb[0].mxu0
    %v802 = vpop.f32.mrb[0].mxu0
    %v803 = vpop.f32.mrb[0].mxu0
    %804 = vdwg.mxu0
    %v805 = vrot.slane %v215, 2
    %807 = vmatprep.subr.bf16.mxu0 0
    %808 = vmatpush1.bf16.msra.mxu0 %v749
    %809 = vmatprep.subr.bf16.mxu0 0
    %810 = vmatpush1.bf16.msra.mxu0 %v750
    %811 = vmatprep.subr.bf16.mxu0 0
    %812 = vmatpush1.bf16.msra.mxu0 %v751
    %813 = vmatprep.subr.bf16.mxu0 0
    %814 = vmatpush1.bf16.msra.mxu0 %v752
    %815 = vmatprep.subr.bf16.mxu0 0
    %816 = vmatpush1.bf16.msra.mxu0 %v753
    %817 = vmatprep.subr.bf16.mxu0 0
    %818 = vmatpush1.bf16.msra.mxu0 %v754
    %819 = vmatprep.subr.bf16.mxu0 0
    %820 = vmatpush1.bf16.msra.mxu0 %v755
    %821 = vmatprep.subr.bf16.mxu0 0
    %822 = vmatpush1.bf16.msra.mxu0 %v756
    %823 = vmatprep.subr.bf16.mxu0 0
    %824 = vmatpush1.bf16.msra.mxu0 0
    %825 = vmatprep.subr.bf16.mxu0 0
    %826 = vmatpush1.bf16.msra.mxu0 0
    %827 = vmatprep.subr.bf16.mxu0 0
    %828 = vmatpush1.bf16.msra.mxu0 0
    %829 = vmatprep.subr.bf16.mxu0 0
    %830 = vmatpush1.bf16.msra.mxu0 0
    %831 = vmatprep.subr.bf16.mxu0 0
    %832 = vmatpush1.bf16.msra.mxu0 0
    %833 = vmatprep.subr.bf16.mxu0 0
    %834 = vmatpush1.bf16.msra.mxu0 0
    %835 = vmatprep.subr.bf16.mxu0 0
    %836 = vmatpush1.bf16.msra.mxu0 0
    %837 = vmatprep.subr.bf16.mxu0 0
    %838 = vmatpush1.bf16.msra.mxu0 0
    %839 = vmatprep.mubr.bf16.mxu0 0
    %840 = vmatmul.mubr.bf16.gmra.mrb[0].mxu0 %v805
    %v841 = vpop.f32.mrb[0].mxu0
    %v842 = vadd.f32 0.0, %v841
    %v843 = vpop.f32.mrb[0].mxu0
    %v844 = vpop.f32.mrb[0].mxu0
    %v845 = vpop.f32.mrb[0].mxu0
    %846 = vdwg.mxu0
    %v847 = vadd.f32 %v696, %v800
    %v848 = vadd.f32 %v697, %v842
    %v849 = vld [vmem:[%s2] sm:$0x1]
    %v851 = vlaneseq
    %v852 = vshrl.u32 %v851, 7
    %v853 = vsub.s32 0, %v852
    %v854 = vrot.slane %v849, %v853
    %v856 = vmul.f32 %v847, %v854
    %v857 = vmul.f32 %v848, %v854
    %v858 = vld [vmem:[%s3] sm:$0x1]
    %v860 = vlaneseq
    %v861 = vshrl.u32 %v860, 7
    %v862 = vsub.s32 0, %v861
    %v863 = vrot.slane %v858, %v862
    %v865 = vadd.f32 %v856, %v863
    %v866 = vadd.f32 %v857, %v863
    %v867 = vmax.f32 %v865, 0.0
    %v868 = vmax.f32 %v866, 0.0
    %v869 = vpack.c.bf16 %v867, %v867
    %v870 = vpack.c.bf16 %v868, %v868
    %v873 = vunpack.c.l.b16 %v869
    %v874 = vunpack.c.l.b16 %v870
    %v875 = vpack.c.b16 %v873, %v873
    %v876 = vpack.c.b16 %v874, %v874
    %v877 = vrot.slane %v875, 7
    %v878 = vrot.slane %v877, 4
    %v879 = vrot.slane %v876, 7
    %v880 = vrot.slane %v879, 4
    %885 = vst [vmem:[#allocation2] sm:$0xe] %v877
    %886 = vst [vmem:[#allocation2 + $0x4] sm:$0x1] %v878
    %887 = vst [vmem:[#allocation2 + $0x8] sm:$0xe] %v879
    %888 = vst [vmem:[#allocation2 + $0xc] sm:$0x1] %v880
    %v889 = vld [vmem:[#allocation2] sm:$0xf]
    %v890 = vld [vmem:[#allocation2 + $0x4] sm:$0x3]
    %v891 = vld [vmem:[#allocation2 + $0x8] sm:$0xf]
    %v892 = vld [vmem:[#allocation2 + $0xc] sm:$0x3]
    %s893 = scalar_lea.vmem [#allocation6], 320
    %v894 = vld [vmem:[%s893] sm:$0xf]
    %v895 = vld [vmem:[%s893 + $0x4] sm:$0xf]
    %v896 = vld [vmem:[%s893 + $0x8] sm:$0xf]
    %v897 = vld [vmem:[%s893 + $0xc] sm:$0xf]
    %v898 = vld [vmem:[%s893 + $0x10] sm:$0xf]
    %v899 = vld [vmem:[%s893 + $0x14] sm:$0xf]
    %v900 = vld [vmem:[%s893 + $0x18] sm:$0xf]
    %v901 = vld [vmem:[%s893 + $0x1c] sm:$0xf]
    %v902 = vld [vmem:[%s893 + $0x20] sm:$0xf]
    %v903 = vld [vmem:[%s893 + $0x24] sm:$0xf]
    %v904 = vld [vmem:[%s893 + $0x28] sm:$0xf]
    %v905 = vld [vmem:[%s893 + $0x2c] sm:$0xf]
    %v906 = vld [vmem:[%s893 + $0x30] sm:$0xf]
    %v907 = vld [vmem:[%s893 + $0x34] sm:$0xf]
    %v908 = vld [vmem:[%s893 + $0x38] sm:$0xf]
    %v909 = vld [vmem:[%s893 + $0x3c] sm:$0xf]
    %s910 = scalar_lea.vmem [#allocation6], 384
    %v911 = vld [vmem:[%s910] sm:$0xf]
    %v912 = vld [vmem:[%s910 + $0x4] sm:$0xf]
    %v913 = vld [vmem:[%s910 + $0x8] sm:$0xf]
    %v914 = vld [vmem:[%s910 + $0xc] sm:$0xf]
    %v915 = vld [vmem:[%s910 + $0x10] sm:$0xf]
    %v916 = vld [vmem:[%s910 + $0x14] sm:$0xf]
    %v917 = vld [vmem:[%s910 + $0x18] sm:$0xf]
    %v918 = vld [vmem:[%s910 + $0x1c] sm:$0xf]
    %v919 = vld [vmem:[%s910 + $0x20] sm:$0xf]
    %v920 = vld [vmem:[%s910 + $0x24] sm:$0xf]
    %v921 = vld [vmem:[%s910 + $0x28] sm:$0xf]
    %v922 = vld [vmem:[%s910 + $0x2c] sm:$0xf]
    %v923 = vld [vmem:[%s910 + $0x30] sm:$0xf]
    %v924 = vld [vmem:[%s910 + $0x34] sm:$0xf]
    %v925 = vld [vmem:[%s910 + $0x38] sm:$0xf]
    %v926 = vld [vmem:[%s910 + $0x3c] sm:$0xf]
    %v929 = vunpack.c.l.b16 %v889
    %v930 = vunpack.c.l.b16 %v890
    %v931 = vpack.c.b16 %v930, %v929
    %v933 = vshrl.u32 %v931, 16
    %v935 = vshll.u32 %v931, 16
    %v937 = vrot.slane %v935, 1
    %v938 = vor.u32 %v933, %v937
    %v956 = vunpack.c.l.b16 %v911
    %v957 = vunpack.c.l.b16 %v912
    %v958 = vunpack.c.l.b16 %v913
    %v959 = vunpack.c.l.b16 %v914
    %v960 = vunpack.c.l.b16 %v915
    %v961 = vunpack.c.l.b16 %v916
    %v962 = vunpack.c.l.b16 %v917
    %v963 = vunpack.c.l.b16 %v918
    %v964 = vunpack.c.l.b16 %v919
    %v965 = vunpack.c.l.b16 %v920
    %v966 = vunpack.c.l.b16 %v921
    %v967 = vunpack.c.l.b16 %v922
    %v968 = vunpack.c.l.b16 %v923
    %v969 = vunpack.c.l.b16 %v924
    %v970 = vunpack.c.l.b16 %v925
    %v971 = vunpack.c.l.b16 %v926
    %v972 = vpack.c.b16 %v957, %v956
    %v973 = vpack.c.b16 %v959, %v958
    %v974 = vpack.c.b16 %v961, %v960
    %v975 = vpack.c.b16 %v963, %v962
    %v976 = vpack.c.b16 %v965, %v964
    %v977 = vpack.c.b16 %v967, %v966
    %v978 = vpack.c.b16 %v969, %v968
    %v979 = vpack.c.b16 %v971, %v970
    %988 = vmatprep.subr.bf16.mxu0 0
    %989 = vmatpush1.bf16.msra.mxu0 %v972
    %990 = vmatprep.subr.bf16.mxu0 0
    %991 = vmatpush1.bf16.msra.mxu0 %v973
    %992 = vmatprep.subr.bf16.mxu0 0
    %993 = vmatpush1.bf16.msra.mxu0 %v974
    %994 = vmatprep.subr.bf16.mxu0 0
    %995 = vmatpush1.bf16.msra.mxu0 %v975
    %996 = vmatprep.subr.bf16.mxu0 0
    %997 = vmatpush1.bf16.msra.mxu0 %v976
    %998 = vmatprep.subr.bf16.mxu0 0
    %999 = vmatpush1.bf16.msra.mxu0 %v977
    %1000 = vmatprep.subr.bf16.mxu0 0
    %1001 = vmatpush1.bf16.msra.mxu0 %v978
    %1002 = vmatprep.subr.bf16.mxu0 0
    %1003 = vmatpush1.bf16.msra.mxu0 %v979
    %1004 = vmatprep.subr.bf16.mxu0 0
    %1005 = vmatpush1.bf16.msra.mxu0 0
    %1006 = vmatprep.subr.bf16.mxu0 0
    %1007 = vmatpush1.bf16.msra.mxu0 0
    %1008 = vmatprep.subr.bf16.mxu0 0
    %1009 = vmatpush1.bf16.msra.mxu0 0
    %1010 = vmatprep.subr.bf16.mxu0 0
    %1011 = vmatpush1.bf16.msra.mxu0 0
    %1012 = vmatprep.subr.bf16.mxu0 0
    %1013 = vmatpush1.bf16.msra.mxu0 0
    %1014 = vmatprep.subr.bf16.mxu0 0
    %1015 = vmatpush1.bf16.msra.mxu0 0
    %1016 = vmatprep.subr.bf16.mxu0 0
    %1017 = vmatpush1.bf16.msra.mxu0 0
    %1018 = vmatprep.subr.bf16.mxu0 0
    %1019 = vmatpush1.bf16.msra.mxu0 0
    %1020 = vmatprep.mubr.bf16.mxu0 0
    %1021 = vmatmul.mubr.bf16.gmra.mrb[0].mxu0 %v938
    %v1022 = vpop.f32.mrb[0].mxu0
    %v1023 = vadd.f32 0.0, %v1022
    %v1024 = vpop.f32.mrb[0].mxu0
    %v1025 = vpop.f32.mrb[0].mxu0
    %v1026 = vpop.f32.mrb[0].mxu0
    %1027 = vdwg.mxu0
    %v1030 = vunpack.c.l.b16 %v891
    %v1031 = vunpack.c.l.b16 %v892
    %v1032 = vpack.c.b16 %v1031, %v1030
    %v1034 = vshrl.u32 %v1032, 16
    %v1036 = vshll.u32 %v1032, 16
    %v1038 = vrot.slane %v1036, 1
    %v1039 = vor.u32 %v1034, %v1038
    %1041 = vmatprep.subr.bf16.mxu0 0
    %1042 = vmatpush1.bf16.msra.mxu0 %v972
    %1043 = vmatprep.subr.bf16.mxu0 0
    %1044 = vmatpush1.bf16.msra.mxu0 %v973
    %1045 = vmatprep.subr.bf16.mxu0 0
    %1046 = vmatpush1.bf16.msra.mxu0 %v974
    %1047 = vmatprep.subr.bf16.mxu0 0
    %1048 = vmatpush1.bf16.msra.mxu0 %v975
    %1049 = vmatprep.subr.bf16.mxu0 0
    %1050 = vmatpush1.bf16.msra.mxu0 %v976
    %1051 = vmatprep.subr.bf16.mxu0 0
    %1052 = vmatpush1.bf16.msra.mxu0 %v977
    %1053 = vmatprep.subr.bf16.mxu0 0
    %1054 = vmatpush1.bf16.msra.mxu0 %v978
    %1055 = vmatprep.subr.bf16.mxu0 0
    %1056 = vmatpush1.bf16.msra.mxu0 %v979
    %1057 = vmatprep.subr.bf16.mxu0 0
    %1058 = vmatpush1.bf16.msra.mxu0 0
    %1059 = vmatprep.subr.bf16.mxu0 0
    %1060 = vmatpush1.bf16.msra.mxu0 0
    %1061 = vmatprep.subr.bf16.mxu0 0
    %1062 = vmatpush1.bf16.msra.mxu0 0
    %1063 = vmatprep.subr.bf16.mxu0 0
    %1064 = vmatpush1.bf16.msra.mxu0 0
    %1065 = vmatprep.subr.bf16.mxu0 0
    %1066 = vmatpush1.bf16.msra.mxu0 0
    %1067 = vmatprep.subr.bf16.mxu0 0
    %1068 = vmatpush1.bf16.msra.mxu0 0
    %1069 = vmatprep.subr.bf16.mxu0 0
    %1070 = vmatpush1.bf16.msra.mxu0 0
    %1071 = vmatprep.subr.bf16.mxu0 0
    %1072 = vmatpush1.bf16.msra.mxu0 0
    %1073 = vmatprep.mubr.bf16.mxu0 0
    %1074 = vmatmul.mubr.bf16.gmra.mrb[0].mxu0 %v1039
    %v1075 = vpop.f32.mrb[0].mxu0
    %v1076 = vadd.f32 0.0, %v1075
    %v1077 = vpop.f32.mrb[0].mxu0
    %v1078 = vpop.f32.mrb[0].mxu0
    %v1079 = vpop.f32.mrb[0].mxu0
    %1080 = vdwg.mxu0
    %v1097 = vunpack.c.l.b16 %v894
    %v1098 = vunpack.c.l.b16 %v895
    %v1099 = vunpack.c.l.b16 %v896
    %v1100 = vunpack.c.l.b16 %v897
    %v1101 = vunpack.c.l.b16 %v898
    %v1102 = vunpack.c.l.b16 %v899
    %v1103 = vunpack.c.l.b16 %v900
    %v1104 = vunpack.c.l.b16 %v901
    %v1105 = vunpack.c.l.b16 %v902
    %v1106 = vunpack.c.l.b16 %v903
    %v1107 = vunpack.c.l.b16 %v904
    %v1108 = vunpack.c.l.b16 %v905
    %v1109 = vunpack.c.l.b16 %v906
    %v1110 = vunpack.c.l.b16 %v907
    %v1111 = vunpack.c.l.b16 %v908
    %v1112 = vunpack.c.l.b16 %v909
    %v1113 = vpack.c.b16 %v1098, %v1097
    %v1114 = vpack.c.b16 %v1100, %v1099
    %v1115 = vpack.c.b16 %v1102, %v1101
    %v1116 = vpack.c.b16 %v1104, %v1103
    %v1117 = vpack.c.b16 %v1106, %v1105
    %v1118 = vpack.c.b16 %v1108, %v1107
    %v1119 = vpack.c.b16 %v1110, %v1109
    %v1120 = vpack.c.b16 %v1112, %v1111
    %1129 = vmatprep.subr.bf16.mxu0 0
    %1130 = vmatpush1.bf16.msra.mxu0 %v1113
    %1131 = vmatprep.subr.bf16.mxu0 0
    %1132 = vmatpush1.bf16.msra.mxu0 %v1114
    %1133 = vmatprep.subr.bf16.mxu0 0
    %1134 = vmatpush1.bf16.msra.mxu0 %v1115
    %1135 = vmatprep.subr.bf16.mxu0 0
    %1136 = vmatpush1.bf16.msra.mxu0 %v1116
    %1137 = vmatprep.subr.bf16.mxu0 0
    %1138 = vmatpush1.bf16.msra.mxu0 %v1117
    %1139 = vmatprep.subr.bf16.mxu0 0
    %1140 = vmatpush1.bf16.msra.mxu0 %v1118
    %1141 = vmatprep.subr.bf16.mxu0 0
    %1142 = vmatpush1.bf16.msra.mxu0 %v1119
    %1143 = vmatprep.subr.bf16.mxu0 0
    %1144 = vmatpush1.bf16.msra.mxu0 %v1120
    %1145 = vmatprep.subr.bf16.mxu0 0
    %1146 = vmatpush1.bf16.msra.mxu0 0
    %1147 = vmatprep.subr.bf16.mxu0 0
    %1148 = vmatpush1.bf16.msra.mxu0 0
    %1149 = vmatprep.subr.bf16.mxu0 0
    %1150 = vmatpush1.bf16.msra.mxu0 0
    %1151 = vmatprep.subr.bf16.mxu0 0
    %1152 = vmatpush1.bf16.msra.mxu0 0
    %1153 = vmatprep.subr.bf16.mxu0 0
    %1154 = vmatpush1.bf16.msra.mxu0 0
    %1155 = vmatprep.subr.bf16.mxu0 0
    %1156 = vmatpush1.bf16.msra.mxu0 0
    %1157 = vmatprep.subr.bf16.mxu0 0
    %1158 = vmatpush1.bf16.msra.mxu0 0
    %1159 = vmatprep.subr.bf16.mxu0 0
    %1160 = vmatpush1.bf16.msra.mxu0 0
    %1161 = vmatprep.mubr.bf16.mxu0 0
    %1162 = vmatmul.mubr.bf16.gmra.mrb[0].mxu0 %v889
    %v1163 = vpop.f32.mrb[0].mxu0
    %v1164 = vadd.f32 %v1023, %v1163
    %v1165 = vpop.f32.mrb[0].mxu0
    %v1166 = vpop.f32.mrb[0].mxu0
    %v1167 = vpop.f32.mrb[0].mxu0
    %1168 = vdwg.mxu0
    %1169 = vmatprep.subr.bf16.mxu0 0
    %1170 = vmatpush1.bf16.msra.mxu0 %v1113
    %1171 = vmatprep.subr.bf16.mxu0 0
    %1172 = vmatpush1.bf16.msra.mxu0 %v1114
    %1173 = vmatprep.subr.bf16.mxu0 0
    %1174 = vmatpush1.bf16.msra.mxu0 %v1115
    %1175 = vmatprep.subr.bf16.mxu0 0
    %1176 = vmatpush1.bf16.msra.mxu0 %v1116
    %1177 = vmatprep.subr.bf16.mxu0 0
    %1178 = vmatpush1.bf16.msra.mxu0 %v1117
    %1179 = vmatprep.subr.bf16.mxu0 0
    %1180 = vmatpush1.bf16.msra.mxu0 %v1118
    %1181 = vmatprep.subr.bf16.mxu0 0
    %1182 = vmatpush1.bf16.msra.mxu0 %v1119
    %1183 = vmatprep.subr.bf16.mxu0 0
    %1184 = vmatpush1.bf16.msra.mxu0 %v1120
    %1185 = vmatprep.subr.bf16.mxu0 0
    %1186 = vmatpush1.bf16.msra.mxu0 0
    %1187 = vmatprep.subr.bf16.mxu0 0
    %1188 = vmatpush1.bf16.msra.mxu0 0
    %1189 = vmatprep.subr.bf16.mxu0 0
    %1190 = vmatpush1.bf16.msra.mxu0 0
    %1191 = vmatprep.subr.bf16.mxu0 0
    %1192 = vmatpush1.bf16.msra.mxu0 0
    %1193 = vmatprep.subr.bf16.mxu0 0
    %1194 = vmatpush1.bf16.msra.mxu0 0
    %1195 = vmatprep.subr.bf16.mxu0 0
    %1196 = vmatpush1.bf16.msra.mxu0 0
    %1197 = vmatprep.subr.bf16.mxu0 0
    %1198 = vmatpush1.bf16.msra.mxu0 0
    %1199 = vmatprep.subr.bf16.mxu0 0
    %1200 = vmatpush1.bf16.msra.mxu0 0
    %1201 = vmatprep.mubr.bf16.mxu0 0
    %1202 = vmatmul.mubr.bf16.gmra.mrb[0].mxu0 %v891
    %v1203 = vpop.f32.mrb[0].mxu0
    %v1204 = vadd.f32 %v1076, %v1203
    %v1205 = vpop.f32.mrb[0].mxu0
    %v1206 = vpop.f32.mrb[0].mxu0
    %v1207 = vpop.f32.mrb[0].mxu0
    %1208 = vdwg.mxu0
    %s1209 = scalar_lea.vmem [#allocation6], 448
    %v1210 = vld [vmem:[%s1209] sm:$0xf]
    %v1211 = vld [vmem:[%s1209 + $0x4] sm:$0xf]
    %v1212 = vld [vmem:[%s1209 + $0x8] sm:$0xf]
    %v1213 = vld [vmem:[%s1209 + $0xc] sm:$0xf]
    %v1214 = vld [vmem:[%s1209 + $0x10] sm:$0xf]
    %v1215 = vld [vmem:[%s1209 + $0x14] sm:$0xf]
    %v1216 = vld [vmem:[%s1209 + $0x18] sm:$0xf]
    %v1217 = vld [vmem:[%s1209 + $0x1c] sm:$0xf]
    %v1218 = vld [vmem:[%s1209 + $0x20] sm:$0xf]
    %v1219 = vld [vmem:[%s1209 + $0x24] sm:$0xf]
    %v1220 = vld [vmem:[%s1209 + $0x28] sm:$0xf]
    %v1221 = vld [vmem:[%s1209 + $0x2c] sm:$0xf]
    %v1222 = vld [vmem:[%s1209 + $0x30] sm:$0xf]
    %v1223 = vld [vmem:[%s1209 + $0x34] sm:$0xf]
    %v1224 = vld [vmem:[%s1209 + $0x38] sm:$0xf]
    %v1225 = vld [vmem:[%s1209 + $0x3c] sm:$0xf]
    %v1226 = vrot.slane %v931, 1
    %v1244 = vunpack.c.l.b16 %v1210
    %v1245 = vunpack.c.l.b16 %v1211
    %v1246 = vunpack.c.l.b16 %v1212
    %v1247 = vunpack.c.l.b16 %v1213
    %v1248 = vunpack.c.l.b16 %v1214
    %v1249 = vunpack.c.l.b16 %v1215
    %v1250 = vunpack.c.l.b16 %v1216
    %v1251 = vunpack.c.l.b16 %v1217
    %v1252 = vunpack.c.l.b16 %v1218
    %v1253 = vunpack.c.l.b16 %v1219
    %v1254 = vunpack.c.l.b16 %v1220
    %v1255 = vunpack.c.l.b16 %v1221
    %v1256 = vunpack.c.l.b16 %v1222
    %v1257 = vunpack.c.l.b16 %v1223
    %v1258 = vunpack.c.l.b16 %v1224
    %v1259 = vunpack.c.l.b16 %v1225
    %v1260 = vpack.c.b16 %v1245, %v1244
    %v1261 = vpack.c.b16 %v1247, %v1246
    %v1262 = vpack.c.b16 %v1249, %v1248
    %v1263 = vpack.c.b16 %v1251, %v1250
    %v1264 = vpack.c.b16 %v1253, %v1252
    %v1265 = vpack.c.b16 %v1255, %v1254
    %v1266 = vpack.c.b16 %v1257, %v1256
    %v1267 = vpack.c.b16 %v1259, %v1258
    %1276 = vmatprep.subr.bf16.mxu0 0
    %1277 = vmatpush1.bf16.msra.mxu0 %v1260
    %1278 = vmatprep.subr.bf16.mxu0 0
    %1279 = vmatpush1.bf16.msra.mxu0 %v1261
    %1280 = vmatprep.subr.bf16.mxu0 0
    %1281 = vmatpush1.bf16.msra.mxu0 %v1262
    %1282 = vmatprep.subr.bf16.mxu0 0
    %1283 = vmatpush1.bf16.msra.mxu0 %v1263
    %1284 = vmatprep.subr.bf16.mxu0 0
    %1285 = vmatpush1.bf16.msra.mxu0 %v1264
    %1286 = vmatprep.subr.bf16.mxu0 0
    %1287 = vmatpush1.bf16.msra.mxu0 %v1265
    %1288 = vmatprep.subr.bf16.mxu0 0
    %1289 = vmatpush1.bf16.msra.mxu0 %v1266
    %1290 = vmatprep.subr.bf16.mxu0 0
    %1291 = vmatpush1.bf16.msra.mxu0 %v1267
    %1292 = vmatprep.subr.bf16.mxu0 0
    %1293 = vmatpush1.bf16.msra.mxu0 0
    %1294 = vmatprep.subr.bf16.mxu0 0
    %1295 = vmatpush1.bf16.msra.mxu0 0
    %1296 = vmatprep.subr.bf16.mxu0 0
    %1297 = vmatpush1.bf16.msra.mxu0 0
    %1298 = vmatprep.subr.bf16.mxu0 0
    %1299 = vmatpush1.bf16.msra.mxu0 0
    %1300 = vmatprep.subr.bf16.mxu0 0
    %1301 = vmatpush1.bf16.msra.mxu0 0
    %1302 = vmatprep.subr.bf16.mxu0 0
    %1303 = vmatpush1.bf16.msra.mxu0 0
    %1304 = vmatprep.subr.bf16.mxu0 0
    %1305 = vmatpush1.bf16.msra.mxu0 0
    %1306 = vmatprep.subr.bf16.mxu0 0
    %1307 = vmatpush1.bf16.msra.mxu0 0
    %1308 = vmatprep.mubr.bf16.mxu0 0
    %1309 = vmatmul.mubr.bf16.gmra.mrb[0].mxu0 %v1226
    %v1310 = vpop.f32.mrb[0].mxu0
    %v1311 = vadd.f32 0.0, %v1310
    %v1312 = vpop.f32.mrb[0].mxu0
    %v1313 = vpop.f32.mrb[0].mxu0
    %v1314 = vpop.f32.mrb[0].mxu0
    %1315 = vdwg.mxu0
    %v1316 = vrot.slane %v1032, 1
    %1318 = vmatprep.subr.bf16.mxu0 0
    %1319 = vmatpush1.bf16.msra.mxu0 %v1260
    %1320 = vmatprep.subr.bf16.mxu0 0
    %1321 = vmatpush1.bf16.msra.mxu0 %v1261
    %1322 = vmatprep.subr.bf16.mxu0 0
    %1323 = vmatpush1.bf16.msra.mxu0 %v1262
    %1324 = vmatprep.subr.bf16.mxu0 0
    %1325 = vmatpush1.bf16.msra.mxu0 %v1263
    %1326 = vmatprep.subr.bf16.mxu0 0
    %1327 = vmatpush1.bf16.msra.mxu0 %v1264
    %1328 = vmatprep.subr.bf16.mxu0 0
    %1329 = vmatpush1.bf16.msra.mxu0 %v1265
    %1330 = vmatprep.subr.bf16.mxu0 0
    %1331 = vmatpush1.bf16.msra.mxu0 %v1266
    %1332 = vmatprep.subr.bf16.mxu0 0
    %1333 = vmatpush1.bf16.msra.mxu0 %v1267
    %1334 = vmatprep.subr.bf16.mxu0 0
    %1335 = vmatpush1.bf16.msra.mxu0 0
    %1336 = vmatprep.subr.bf16.mxu0 0
    %1337 = vmatpush1.bf16.msra.mxu0 0
    %1338 = vmatprep.subr.bf16.mxu0 0
    %1339 = vmatpush1.bf16.msra.mxu0 0
    %1340 = vmatprep.subr.bf16.mxu0 0
    %1341 = vmatpush1.bf16.msra.mxu0 0
    %1342 = vmatprep.subr.bf16.mxu0 0
    %1343 = vmatpush1.bf16.msra.mxu0 0
    %1344 = vmatprep.subr.bf16.mxu0 0
    %1345 = vmatpush1.bf16.msra.mxu0 0
    %1346 = vmatprep.subr.bf16.mxu0 0
    %1347 = vmatpush1.bf16.msra.mxu0 0
    %1348 = vmatprep.subr.bf16.mxu0 0
    %1349 = vmatpush1.bf16.msra.mxu0 0
    %1350 = vmatprep.mubr.bf16.mxu0 0
    %1351 = vmatmul.mubr.bf16.gmra.mrb[0].mxu0 %v1316
    %v1352 = vpop.f32.mrb[0].mxu0
    %v1353 = vadd.f32 0.0, %v1352
    %v1354 = vpop.f32.mrb[0].mxu0
    %v1355 = vpop.f32.mrb[0].mxu0
    %v1356 = vpop.f32.mrb[0].mxu0
    %1357 = vdwg.mxu0
    %v1358 = vadd.f32 %v1164, %v1311
    %v1359 = vadd.f32 %v1204, %v1353
    %s1360 = scalar_lea.vmem [#allocation6], 512
    %v1361 = vld [vmem:[%s1360] sm:$0xf]
    %v1362 = vld [vmem:[%s1360 + $0x4] sm:$0xf]
    %v1363 = vld [vmem:[%s1360 + $0x8] sm:$0xf]
    %v1364 = vld [vmem:[%s1360 + $0xc] sm:$0xf]
    %v1365 = vld [vmem:[%s1360 + $0x10] sm:$0xf]
    %v1366 = vld [vmem:[%s1360 + $0x14] sm:$0xf]
    %v1367 = vld [vmem:[%s1360 + $0x18] sm:$0xf]
    %v1368 = vld [vmem:[%s1360 + $0x1c] sm:$0xf]
    %v1369 = vld [vmem:[%s1360 + $0x20] sm:$0xf]
    %v1370 = vld [vmem:[%s1360 + $0x24] sm:$0xf]
    %v1371 = vld [vmem:[%s1360 + $0x28] sm:$0xf]
    %v1372 = vld [vmem:[%s1360 + $0x2c] sm:$0xf]
    %v1373 = vld [vmem:[%s1360 + $0x30] sm:$0xf]
    %v1374 = vld [vmem:[%s1360 + $0x34] sm:$0xf]
    %v1375 = vld [vmem:[%s1360 + $0x38] sm:$0xf]
    %v1376 = vld [vmem:[%s1360 + $0x3c] sm:$0xf]
    %v1377 = vrot.slane %v933, 1
    %v1378 = vrot.slane %v935, 2
    %v1379 = vor.u32 %v1377, %v1378
    %v1397 = vunpack.c.l.b16 %v1361
    %v1398 = vunpack.c.l.b16 %v1362
    %v1399 = vunpack.c.l.b16 %v1363
    %v1400 = vunpack.c.l.b16 %v1364
    %v1401 = vunpack.c.l.b16 %v1365
    %v1402 = vunpack.c.l.b16 %v1366
    %v1403 = vunpack.c.l.b16 %v1367
    %v1404 = vunpack.c.l.b16 %v1368
    %v1405 = vunpack.c.l.b16 %v1369
    %v1406 = vunpack.c.l.b16 %v1370
    %v1407 = vunpack.c.l.b16 %v1371
    %v1408 = vunpack.c.l.b16 %v1372
    %v1409 = vunpack.c.l.b16 %v1373
    %v1410 = vunpack.c.l.b16 %v1374
    %v1411 = vunpack.c.l.b16 %v1375
    %v1412 = vunpack.c.l.b16 %v1376
    %v1413 = vpack.c.b16 %v1398, %v1397
    %v1414 = vpack.c.b16 %v1400, %v1399
    %v1415 = vpack.c.b16 %v1402, %v1401
    %v1416 = vpack.c.b16 %v1404, %v1403
    %v1417 = vpack.c.b16 %v1406, %v1405
    %v1418 = vpack.c.b16 %v1408, %v1407
    %v1419 = vpack.c.b16 %v1410, %v1409
    %v1420 = vpack.c.b16 %v1412, %v1411
    %1429 = vmatprep.subr.bf16.mxu0 0
    %1430 = vmatpush1.bf16.msra.mxu0 %v1413
    %1431 = vmatprep.subr.bf16.mxu0 0
    %1432 = vmatpush1.bf16.msra.mxu0 %v1414
    %1433 = vmatprep.subr.bf16.mxu0 0
    %1434 = vmatpush1.bf16.msra.mxu0 %v1415
    %1435 = vmatprep.subr.bf16.mxu0 0
    %1436 = vmatpush1.bf16.msra.mxu0 %v1416
    %1437 = vmatprep.subr.bf16.mxu0 0
    %1438 = vmatpush1.bf16.msra.mxu0 %v1417
    %1439 = vmatprep.subr.bf16.mxu0 0
    %1440 = vmatpush1.bf16.msra.mxu0 %v1418
    %1441 = vmatprep.subr.bf16.mxu0 0
    %1442 = vmatpush1.bf16.msra.mxu0 %v1419
    %1443 = vmatprep.subr.bf16.mxu0 0
    %1444 = vmatpush1.bf16.msra.mxu0 %v1420
    %1445 = vmatprep.subr.bf16.mxu0 0
    %1446 = vmatpush1.bf16.msra.mxu0 0
    %1447 = vmatprep.subr.bf16.mxu0 0
    %1448 = vmatpush1.bf16.msra.mxu0 0
    %1449 = vmatprep.subr.bf16.mxu0 0
    %1450 = vmatpush1.bf16.msra.mxu0 0
    %1451 = vmatprep.subr.bf16.mxu0 0
    %1452 = vmatpush1.bf16.msra.mxu0 0
    %1453 = vmatprep.subr.bf16.mxu0 0
    %1454 = vmatpush1.bf16.msra.mxu0 0
    %1455 = vmatprep.subr.bf16.mxu0 0
    %1456 = vmatpush1.bf16.msra.mxu0 0
    %1457 = vmatprep.subr.bf16.mxu0 0
    %1458 = vmatpush1.bf16.msra.mxu0 0
    %1459 = vmatprep.subr.bf16.mxu0 0
    %1460 = vmatpush1.bf16.msra.mxu0 0
    %1461 = vmatprep.mubr.bf16.mxu0 0
    %1462 = vmatmul.mubr.bf16.gmra.mrb[0].mxu0 %v1379
    %v1463 = vpop.f32.mrb[0].mxu0
    %v1464 = vadd.f32 0.0, %v1463
    %v1465 = vpop.f32.mrb[0].mxu0
    %v1466 = vpop.f32.mrb[0].mxu0
    %v1467 = vpop.f32.mrb[0].mxu0
    %1468 = vdwg.mxu0
    %v1469 = vrot.slane %v1034, 1
    %v1470 = vrot.slane %v1036, 2
    %v1471 = vor.u32 %v1469, %v1470
    %1473 = vmatprep.subr.bf16.mxu0 0
    %1474 = vmatpush1.bf16.msra.mxu0 %v1413
    %1475 = vmatprep.subr.bf16.mxu0 0
    %1476 = vmatpush1.bf16.msra.mxu0 %v1414
    %1477 = vmatprep.subr.bf16.mxu0 0
    %1478 = vmatpush1.bf16.msra.mxu0 %v1415
    %1479 = vmatprep.subr.bf16.mxu0 0
    %1480 = vmatpush1.bf16.msra.mxu0 %v1416
    %1481 = vmatprep.subr.bf16.mxu0 0
    %1482 = vmatpush1.bf16.msra.mxu0 %v1417
    %1483 = vmatprep.subr.bf16.mxu0 0
    %1484 = vmatpush1.bf16.msra.mxu0 %v1418
    %1485 = vmatprep.subr.bf16.mxu0 0
    %1486 = vmatpush1.bf16.msra.mxu0 %v1419
    %1487 = vmatprep.subr.bf16.mxu0 0
    %1488 = vmatpush1.bf16.msra.mxu0 %v1420
    %1489 = vmatprep.subr.bf16.mxu0 0
    %1490 = vmatpush1.bf16.msra.mxu0 0
    %1491 = vmatprep.subr.bf16.mxu0 0
    %1492 = vmatpush1.bf16.msra.mxu0 0
    %1493 = vmatprep.subr.bf16.mxu0 0
    %1494 = vmatpush1.bf16.msra.mxu0 0
    %1495 = vmatprep.subr.bf16.mxu0 0
    %1496 = vmatpush1.bf16.msra.mxu0 0
    %1497 = vmatprep.subr.bf16.mxu0 0
    %1498 = vmatpush1.bf16.msra.mxu0 0
    %1499 = vmatprep.subr.bf16.mxu0 0
    %1500 = vmatpush1.bf16.msra.mxu0 0
    %1501 = vmatprep.subr.bf16.mxu0 0
    %1502 = vmatpush1.bf16.msra.mxu0 0
    %1503 = vmatprep.subr.bf16.mxu0 0
    %1504 = vmatpush1.bf16.msra.mxu0 0
    %1505 = vmatprep.mubr.bf16.mxu0 0
    %1506 = vmatmul.mubr.bf16.gmra.mrb[0].mxu0 %v1471
    %v1507 = vpop.f32.mrb[0].mxu0
    %v1508 = vadd.f32 0.0, %v1507
    %v1509 = vpop.f32.mrb[0].mxu0
    %v1510 = vpop.f32.mrb[0].mxu0
    %v1511 = vpop.f32.mrb[0].mxu0
    %1512 = vdwg.mxu0
    %v1513 = vadd.f32 %v1358, %v1464
    %v1514 = vadd.f32 %v1359, %v1508
    %s1515 = scalar_lea.vmem [#allocation6], 576
    %v1516 = vld [vmem:[%s1515] sm:$0xf]
    %v1517 = vld [vmem:[%s1515 + $0x4] sm:$0xf]
    %v1518 = vld [vmem:[%s1515 + $0x8] sm:$0xf]
    %v1519 = vld [vmem:[%s1515 + $0xc] sm:$0xf]
    %v1520 = vld [vmem:[%s1515 + $0x10] sm:$0xf]
    %v1521 = vld [vmem:[%s1515 + $0x14] sm:$0xf]
    %v1522 = vld [vmem:[%s1515 + $0x18] sm:$0xf]
    %v1523 = vld [vmem:[%s1515 + $0x1c] sm:$0xf]
    %v1524 = vld [vmem:[%s1515 + $0x20] sm:$0xf]
    %v1525 = vld [vmem:[%s1515 + $0x24] sm:$0xf]
    %v1526 = vld [vmem:[%s1515 + $0x28] sm:$0xf]
    %v1527 = vld [vmem:[%s1515 + $0x2c] sm:$0xf]
    %v1528 = vld [vmem:[%s1515 + $0x30] sm:$0xf]
    %v1529 = vld [vmem:[%s1515 + $0x34] sm:$0xf]
    %v1530 = vld [vmem:[%s1515 + $0x38] sm:$0xf]
    %v1531 = vld [vmem:[%s1515 + $0x3c] sm:$0xf]
    %v1532 = vrot.slane %v931, 2
    %v1550 = vunpack.c.l.b16 %v1516
    %v1551 = vunpack.c.l.b16 %v1517
    %v1552 = vunpack.c.l.b16 %v1518
    %v1553 = vunpack.c.l.b16 %v1519
    %v1554 = vunpack.c.l.b16 %v1520
    %v1555 = vunpack.c.l.b16 %v1521
    %v1556 = vunpack.c.l.b16 %v1522
    %v1557 = vunpack.c.l.b16 %v1523
    %v1558 = vunpack.c.l.b16 %v1524
    %v1559 = vunpack.c.l.b16 %v1525
    %v1560 = vunpack.c.l.b16 %v1526
    %v1561 = vunpack.c.l.b16 %v1527
    %v1562 = vunpack.c.l.b16 %v1528
    %v1563 = vunpack.c.l.b16 %v1529
    %v1564 = vunpack.c.l.b16 %v1530
    %v1565 = vunpack.c.l.b16 %v1531
    %v1566 = vpack.c.b16 %v1551, %v1550
    %v1567 = vpack.c.b16 %v1553, %v1552
    %v1568 = vpack.c.b16 %v1555, %v1554
    %v1569 = vpack.c.b16 %v1557, %v1556
    %v1570 = vpack.c.b16 %v1559, %v1558
    %v1571 = vpack.c.b16 %v1561, %v1560
    %v1572 = vpack.c.b16 %v1563, %v1562
    %v1573 = vpack.c.b16 %v1565, %v1564
    %1582 = vmatprep.subr.bf16.mxu0 0
    %1583 = vmatpush1.bf16.msra.mxu0 %v1566
    %1584 = vmatprep.subr.bf16.mxu0 0
    %1585 = vmatpush1.bf16.msra.mxu0 %v1567
    %1586 = vmatprep.subr.bf16.mxu0 0
    %1587 = vmatpush1.bf16.msra.mxu0 %v1568
    %1588 = vmatprep.subr.bf16.mxu0 0
    %1589 = vmatpush1.bf16.msra.mxu0 %v1569
    %1590 = vmatprep.subr.bf16.mxu0 0
    %1591 = vmatpush1.bf16.msra.mxu0 %v1570
    %1592 = vmatprep.subr.bf16.mxu0 0
    %1593 = vmatpush1.bf16.msra.mxu0 %v1571
    %1594 = vmatprep.subr.bf16.mxu0 0
    %1595 = vmatpush1.bf16.msra.mxu0 %v1572
    %1596 = vmatprep.subr.bf16.mxu0 0
    %1597 = vmatpush1.bf16.msra.mxu0 %v1573
    %1598 = vmatprep.subr.bf16.mxu0 0
    %1599 = vmatpush1.bf16.msra.mxu0 0
    %1600 = vmatprep.subr.bf16.mxu0 0
    %1601 = vmatpush1.bf16.msra.mxu0 0
    %1602 = vmatprep.subr.bf16.mxu0 0
    %1603 = vmatpush1.bf16.msra.mxu0 0
    %1604 = vmatprep.subr.bf16.mxu0 0
    %1605 = vmatpush1.bf16.msra.mxu0 0
    %1606 = vmatprep.subr.bf16.mxu0 0
    %1607 = vmatpush1.bf16.msra.mxu0 0
    %1608 = vmatprep.subr.bf16.mxu0 0
    %1609 = vmatpush1.bf16.msra.mxu0 0
    %1610 = vmatprep.subr.bf16.mxu0 0
    %1611 = vmatpush1.bf16.msra.mxu0 0
    %1612 = vmatprep.subr.bf16.mxu0 0
    %1613 = vmatpush1.bf16.msra.mxu0 0
    %1614 = vmatprep.mubr.bf16.mxu0 0
    %1615 = vmatmul.mubr.bf16.gmra.mrb[0].mxu0 %v1532
    %v1616 = vpop.f32.mrb[0].mxu0
    %v1617 = vadd.f32 0.0, %v1616
    %v1618 = vpop.f32.mrb[0].mxu0
    %v1619 = vpop.f32.mrb[0].mxu0
    %v1620 = vpop.f32.mrb[0].mxu0
    %1621 = vdwg.mxu0
    %v1622 = vrot.slane %v1032, 2
    %1624 = vmatprep.subr.bf16.mxu0 0
    %1625 = vmatpush1.bf16.msra.mxu0 %v1566
    %1626 = vmatprep.subr.bf16.mxu0 0
    %1627 = vmatpush1.bf16.msra.mxu0 %v1567
    %1628 = vmatprep.subr.bf16.mxu0 0
    %1629 = vmatpush1.bf16.msra.mxu0 %v1568
    %1630 = vmatprep.subr.bf16.mxu0 0
    %1631 = vmatpush1.bf16.msra.mxu0 %v1569
    %1632 = vmatprep.subr.bf16.mxu0 0
    %1633 = vmatpush1.bf16.msra.mxu0 %v1570
    %1634 = vmatprep.subr.bf16.mxu0 0
    %1635 = vmatpush1.bf16.msra.mxu0 %v1571
    %1636 = vmatprep.subr.bf16.mxu0 0
    %1637 = vmatpush1.bf16.msra.mxu0 %v1572
    %1638 = vmatprep.subr.bf16.mxu0 0
    %1639 = vmatpush1.bf16.msra.mxu0 %v1573
    %1640 = vmatprep.subr.bf16.mxu0 0
    %1641 = vmatpush1.bf16.msra.mxu0 0
    %1642 = vmatprep.subr.bf16.mxu0 0
    %1643 = vmatpush1.bf16.msra.mxu0 0
    %1644 = vmatprep.subr.bf16.mxu0 0
    %1645 = vmatpush1.bf16.msra.mxu0 0
    %1646 = vmatprep.subr.bf16.mxu0 0
    %1647 = vmatpush1.bf16.msra.mxu0 0
    %1648 = vmatprep.subr.bf16.mxu0 0
    %1649 = vmatpush1.bf16.msra.mxu0 0
    %1650 = vmatprep.subr.bf16.mxu0 0
    %1651 = vmatpush1.bf16.msra.mxu0 0
    %1652 = vmatprep.subr.bf16.mxu0 0
    %1653 = vmatpush1.bf16.msra.mxu0 0
    %1654 = vmatprep.subr.bf16.mxu0 0
    %1655 = vmatpush1.bf16.msra.mxu0 0
    %1656 = vmatprep.mubr.bf16.mxu0 0
    %1657 = vmatmul.mubr.bf16.gmra.mrb[0].mxu0 %v1622
    %v1658 = vpop.f32.mrb[0].mxu0
    %v1659 = vadd.f32 0.0, %v1658
    %v1660 = vpop.f32.mrb[0].mxu0
    %v1661 = vpop.f32.mrb[0].mxu0
    %v1662 = vpop.f32.mrb[0].mxu0
    %1663 = vdwg.mxu0
    %v1664 = vadd.f32 %v1513, %v1617
    %v1665 = vadd.f32 %v1514, %v1659
    %s1666 = scalar_lea.vmem %s2, 1
    %v1667 = vld [vmem:[%s1666] sm:$0x1]
    %v1669 = vlaneseq
    %v1670 = vshrl.u32 %v1669, 7
    %v1671 = vsub.s32 0, %v1670
    %v1672 = vrot.slane %v1667, %v1671
    %v1674 = vmul.f32 %v1664, %v1672
    %v1675 = vmul.f32 %v1665, %v1672
    %s1676 = scalar_lea.vmem %s3, 1
    %v1677 = vld [vmem:[%s1676] sm:$0x1]
    %v1679 = vlaneseq
    %v1680 = vshrl.u32 %v1679, 7
    %v1681 = vsub.s32 0, %v1680
    %v1682 = vrot.slane %v1677, %v1681
    %v1684 = vadd.f32 %v1674, %v1682
    %v1685 = vadd.f32 %v1675, %v1682
    %v1686 = vmax.f32 %v1684, 0.0
    %v1687 = vmax.f32 %v1685, 0.0
    %v1688 = vpack.c.bf16 %v1686, %v1686
    %v1689 = vpack.c.bf16 %v1687, %v1687
    %v1692 = vunpack.c.l.b16 %v1688
    %v1693 = vunpack.c.l.b16 %v1689
    %v1694 = vpack.c.b16 %v1692, %v1692
    %v1695 = vpack.c.b16 %v1693, %v1693
    %v1696 = vrot.slane %v1694, 7
    %v1697 = vrot.slane %v1696, 4
    %v1698 = vrot.slane %v1695, 7
    %v1699 = vrot.slane %v1698, 4
    %1704 = vst [vmem:[#allocation2] sm:$0xe] %v1696
    %1705 = vst [vmem:[#allocation2 + $0x4] sm:$0x1] %v1697
    %1706 = vst [vmem:[#allocation2 + $0x8] sm:$0xe] %v1698
    %1707 = vst [vmem:[#allocation2 + $0xc] sm:$0x1] %v1699
    %v1708 = vld [vmem:[#allocation2] sm:$0xf]
    %v1709 = vld [vmem:[#allocation2 + $0x4] sm:$0x3]
    %v1710 = vld [vmem:[#allocation2 + $0x8] sm:$0xf]
    %v1711 = vld [vmem:[#allocation2 + $0xc] sm:$0x3]
    %s1712 = scalar_lea.vmem [#allocation6], 640
    %v1713 = vld [vmem:[%s1712] sm:$0xf]
    %v1714 = vld [vmem:[%s1712 + $0x4] sm:$0xf]
    %v1715 = vld [vmem:[%s1712 + $0x8] sm:$0xf]
    %v1716 = vld [vmem:[%s1712 + $0xc] sm:$0xf]
    %v1717 = vld [vmem:[%s1712 + $0x10] sm:$0xf]
    %v1718 = vld [vmem:[%s1712 + $0x14] sm:$0xf]
    %v1719 = vld [vmem:[%s1712 + $0x18] sm:$0xf]
    %v1720 = vld [vmem:[%s1712 + $0x1c] sm:$0xf]
    %v1721 = vld [vmem:[%s1712 + $0x20] sm:$0xf]
    %v1722 = vld [vmem:[%s1712 + $0x24] sm:$0xf]
    %v1723 = vld [vmem:[%s1712 + $0x28] sm:$0xf]
    %v1724 = vld [vmem:[%s1712 + $0x2c] sm:$0xf]
    %v1725 = vld [vmem:[%s1712 + $0x30] sm:$0xf]
    %v1726 = vld [vmem:[%s1712 + $0x34] sm:$0xf]
    %v1727 = vld [vmem:[%s1712 + $0x38] sm:$0xf]
    %v1728 = vld [vmem:[%s1712 + $0x3c] sm:$0xf]
    %s1729 = scalar_lea.vmem [#allocation6], 704
    %v1730 = vld [vmem:[%s1729] sm:$0xf]
    %v1731 = vld [vmem:[%s1729 + $0x4] sm:$0xf]
    %v1732 = vld [vmem:[%s1729 + $0x8] sm:$0xf]
    %v1733 = vld [vmem:[%s1729 + $0xc] sm:$0xf]
    %v1734 = vld [vmem:[%s1729 + $0x10] sm:$0xf]
    %v1735 = vld [vmem:[%s1729 + $0x14] sm:$0xf]
    %v1736 = vld [vmem:[%s1729 + $0x18] sm:$0xf]
    %v1737 = vld [vmem:[%s1729 + $0x1c] sm:$0xf]
    %v1738 = vld [vmem:[%s1729 + $0x20] sm:$0xf]
    %v1739 = vld [vmem:[%s1729 + $0x24] sm:$0xf]
    %v1740 = vld [vmem:[%s1729 + $0x28] sm:$0xf]
    %v1741 = vld [vmem:[%s1729 + $0x2c] sm:$0xf]
    %v1742 = vld [vmem:[%s1729 + $0x30] sm:$0xf]
    %v1743 = vld [vmem:[%s1729 + $0x34] sm:$0xf]
    %v1744 = vld [vmem:[%s1729 + $0x38] sm:$0xf]
    %v1745 = vld [vmem:[%s1729 + $0x3c] sm:$0xf]
    %v1748 = vunpack.c.l.b16 %v1708
    %v1749 = vunpack.c.l.b16 %v1709
    %v1750 = vpack.c.b16 %v1749, %v1748
    %v1752 = vshrl.u32 %v1750, 16
    %v1754 = vshll.u32 %v1750, 16
    %v1756 = vrot.slane %v1754, 1
    %v1757 = vor.u32 %v1752, %v1756
    %v1775 = vunpack.c.l.b16 %v1730
    %v1776 = vunpack.c.l.b16 %v1731
    %v1777 = vunpack.c.l.b16 %v1732
    %v1778 = vunpack.c.l.b16 %v1733
    %v1779 = vunpack.c.l.b16 %v1734
    %v1780 = vunpack.c.l.b16 %v1735
    %v1781 = vunpack.c.l.b16 %v1736
    %v1782 = vunpack.c.l.b16 %v1737
    %v1783 = vunpack.c.l.b16 %v1738
    %v1784 = vunpack.c.l.b16 %v1739
    %v1785 = vunpack.c.l.b16 %v1740
    %v1786 = vunpack.c.l.b16 %v1741
    %v1787 = vunpack.c.l.b16 %v1742
    %v1788 = vunpack.c.l.b16 %v1743
    %v1789 = vunpack.c.l.b16 %v1744
    %v1790 = vunpack.c.l.b16 %v1745
    %v1791 = vpack.c.b16 %v1776, %v1775
    %v1792 = vpack.c.b16 %v1778, %v1777
    %v1793 = vpack.c.b16 %v1780, %v1779
    %v1794 = vpack.c.b16 %v1782, %v1781
    %v1795 = vpack.c.b16 %v1784, %v1783
    %v1796 = vpack.c.b16 %v1786, %v1785
    %v1797 = vpack.c.b16 %v1788, %v1787
    %v1798 = vpack.c.b16 %v1790, %v1789
    %1807 = vmatprep.subr.bf16.mxu0 0
    %1808 = vmatpush1.bf16.msra.mxu0 %v1791
    %1809 = vmatprep.subr.bf16.mxu0 0
    %1810 = vmatpush1.bf16.msra.mxu0 %v1792
    %1811 = vmatprep.subr.bf16.mxu0 0
    %1812 = vmatpush1.bf16.msra.mxu0 %v1793
    %1813 = vmatprep.subr.bf16.mxu0 0
    %1814 = vmatpush1.bf16.msra.mxu0 %v1794
    %1815 = vmatprep.subr.bf16.mxu0 0
    %1816 = vmatpush1.bf16.msra.mxu0 %v1795
    %1817 = vmatprep.subr.bf16.mxu0 0
    %1818 = vmatpush1.bf16.msra.mxu0 %v1796
    %1819 = vmatprep.subr.bf16.mxu0 0
    %1820 = vmatpush1.bf16.msra.mxu0 %v1797
    %1821 = vmatprep.subr.bf16.mxu0 0
    %1822 = vmatpush1.bf16.msra.mxu0 %v1798
    %1823 = vmatprep.subr.bf16.mxu0 0
    %1824 = vmatpush1.bf16.msra.mxu0 0
    %1825 = vmatprep.subr.bf16.mxu0 0
    %1826 = vmatpush1.bf16.msra.mxu0 0
    %1827 = vmatprep.subr.bf16.mxu0 0
    %1828 = vmatpush1.bf16.msra.mxu0 0
    %1829 = vmatprep.subr.bf16.mxu0 0
    %1830 = vmatpush1.bf16.msra.mxu0 0
    %1831 = vmatprep.subr.bf16.mxu0 0
    %1832 = vmatpush1.bf16.msra.mxu0 0
    %1833 = vmatprep.subr.bf16.mxu0 0
    %1834 = vmatpush1.bf16.msra.mxu0 0
    %1835 = vmatprep.subr.bf16.mxu0 0
    %1836 = vmatpush1.bf16.msra.mxu0 0
    %1837 = vmatprep.subr.bf16.mxu0 0
    %1838 = vmatpush1.bf16.msra.mxu0 0
    %1839 = vmatprep.mubr.bf16.mxu0 0
    %1840 = vmatmul.mubr.bf16.gmra.mrb[0].mxu0 %v1757
    %v1841 = vpop.f32.mrb[0].mxu0
    %v1842 = vadd.f32 0.0, %v1841
    %v1843 = vpop.f32.mrb[0].mxu0
    %v1844 = vpop.f32.mrb[0].mxu0
    %v1845 = vpop.f32.mrb[0].mxu0
    %1846 = vdwg.mxu0
    %v1849 = vunpack.c.l.b16 %v1710
    %v1850 = vunpack.c.l.b16 %v1711
    %v1851 = vpack.c.b16 %v1850, %v1849
    %v1853 = vshrl.u32 %v1851, 16
    %v1855 = vshll.u32 %v1851, 16
    %v1857 = vrot.slane %v1855, 1
    %v1858 = vor.u32 %v1853, %v1857
    %1860 = vmatprep.subr.bf16.mxu0 0
    %1861 = vmatpush1.bf16.msra.mxu0 %v1791
    %1862 = vmatprep.subr.bf16.mxu0 0
    %1863 = vmatpush1.bf16.msra.mxu0 %v1792
    %1864 = vmatprep.subr.bf16.mxu0 0
    %1865 = vmatpush1.bf16.msra.mxu0 %v1793
    %1866 = vmatprep.subr.bf16.mxu0 0
    %1867 = vmatpush1.bf16.msra.mxu0 %v1794
    %1868 = vmatprep.subr.bf16.mxu0 0
    %1869 = vmatpush1.bf16.msra.mxu0 %v1795
    %1870 = vmatprep.subr.bf16.mxu0 0
    %1871 = vmatpush1.bf16.msra.mxu0 %v1796
    %1872 = vmatprep.subr.bf16.mxu0 0
    %1873 = vmatpush1.bf16.msra.mxu0 %v1797
    %1874 = vmatprep.subr.bf16.mxu0 0
    %1875 = vmatpush1.bf16.msra.mxu0 %v1798
    %1876 = vmatprep.subr.bf16.mxu0 0
    %1877 = vmatpush1.bf16.msra.mxu0 0
    %1878 = vmatprep.subr.bf16.mxu0 0
    %1879 = vmatpush1.bf16.msra.mxu0 0
    %1880 = vmatprep.subr.bf16.mxu0 0
    %1881 = vmatpush1.bf16.msra.mxu0 0
    %1882 = vmatprep.subr.bf16.mxu0 0
    %1883 = vmatpush1.bf16.msra.mxu0 0
    %1884 = vmatprep.subr.bf16.mxu0 0
    %1885 = vmatpush1.bf16.msra.mxu0 0
    %1886 = vmatprep.subr.bf16.mxu0 0
    %1887 = vmatpush1.bf16.msra.mxu0 0
    %1888 = vmatprep.subr.bf16.mxu0 0
    %1889 = vmatpush1.bf16.msra.mxu0 0
    %1890 = vmatprep.subr.bf16.mxu0 0
    %1891 = vmatpush1.bf16.msra.mxu0 0
    %1892 = vmatprep.mubr.bf16.mxu0 0
    %1893 = vmatmul.mubr.bf16.gmra.mrb[0].mxu0 %v1858
    %v1894 = vpop.f32.mrb[0].mxu0
    %v1895 = vadd.f32 0.0, %v1894
    %v1896 = vpop.f32.mrb[0].mxu0
    %v1897 = vpop.f32.mrb[0].mxu0
    %v1898 = vpop.f32.mrb[0].mxu0
    %1899 = vdwg.mxu0
    %v1916 = vunpack.c.l.b16 %v1713
    %v1917 = vunpack.c.l.b16 %v1714
    %v1918 = vunpack.c.l.b16 %v1715
    %v1919 = vunpack.c.l.b16 %v1716
    %v1920 = vunpack.c.l.b16 %v1717
    %v1921 = vunpack.c.l.b16 %v1718
    %v1922 = vunpack.c.l.b16 %v1719
    %v1923 = vunpack.c.l.b16 %v1720
    %v1924 = vunpack.c.l.b16 %v1721
    %v1925 = vunpack.c.l.b16 %v1722
    %v1926 = vunpack.c.l.b16 %v1723
    %v1927 = vunpack.c.l.b16 %v1724
    %v1928 = vunpack.c.l.b16 %v1725
    %v1929 = vunpack.c.l.b16 %v1726
    %v1930 = vunpack.c.l.b16 %v1727
    %v1931 = vunpack.c.l.b16 %v1728
    %v1932 = vpack.c.b16 %v1917, %v1916
    %v1933 = vpack.c.b16 %v1919, %v1918
    %v1934 = vpack.c.b16 %v1921, %v1920
    %v1935 = vpack.c.b16 %v1923, %v1922
    %v1936 = vpack.c.b16 %v1925, %v1924
    %v1937 = vpack.c.b16 %v1927, %v1926
    %v1938 = vpack.c.b16 %v1929, %v1928
    %v1939 = vpack.c.b16 %v1931, %v1930
    %1948 = vmatprep.subr.bf16.mxu0 0
    %1949 = vmatpush1.bf16.msra.mxu0 %v1932
    %1950 = vmatprep.subr.bf16.mxu0 0
    %1951 = vmatpush1.bf16.msra.mxu0 %v1933
    %1952 = vmatprep.subr.bf16.mxu0 0
    %1953 = vmatpush1.bf16.msra.mxu0 %v1934
    %1954 = vmatprep.subr.bf16.mxu0 0
    %1955 = vmatpush1.bf16.msra.mxu0 %v1935
    %1956 = vmatprep.subr.bf16.mxu0 0
    %1957 = vmatpush1.bf16.msra.mxu0 %v1936
    %1958 = vmatprep.subr.bf16.mxu0 0
    %1959 = vmatpush1.bf16.msra.mxu0 %v1937
    %1960 = vmatprep.subr.bf16.mxu0 0
    %1961 = vmatpush1.bf16.msra.mxu0 %v1938
    %1962 = vmatprep.subr.bf16.mxu0 0
    %1963 = vmatpush1.bf16.msra.mxu0 %v1939
    %1964 = vmatprep.subr.bf16.mxu0 0
    %1965 = vmatpush1.bf16.msra.mxu0 0
    %1966 = vmatprep.subr.bf16.mxu0 0
    %1967 = vmatpush1.bf16.msra.mxu0 0
    %1968 = vmatprep.subr.bf16.mxu0 0
    %1969 = vmatpush1.bf16.msra.mxu0 0
    %1970 = vmatprep.subr.bf16.mxu0 0
    %1971 = vmatpush1.bf16.msra.mxu0 0
    %1972 = vmatprep.subr.bf16.mxu0 0
    %1973 = vmatpush1.bf16.msra.mxu0 0
    %1974 = vmatprep.subr.bf16.mxu0 0
    %1975 = vmatpush1.bf16.msra.mxu0 0
    %1976 = vmatprep.subr.bf16.mxu0 0
    %1977 = vmatpush1.bf16.msra.mxu0 0
    %1978 = vmatprep.subr.bf16.mxu0 0
    %1979 = vmatpush1.bf16.msra.mxu0 0
    %1980 = vmatprep.mubr.bf16.mxu0 0
    %1981 = vmatmul.mubr.bf16.gmra.mrb[0].mxu0 %v1708
    %v1982 = vpop.f32.mrb[0].mxu0
    %v1983 = vadd.f32 %v1842, %v1982
    %v1984 = vpop.f32.mrb[0].mxu0
    %v1985 = vpop.f32.mrb[0].mxu0
    %v1986 = vpop.f32.mrb[0].mxu0
    %1987 = vdwg.mxu0
    %1988 = vmatprep.subr.bf16.mxu0 0
    %1989 = vmatpush1.bf16.msra.mxu0 %v1932
    %1990 = vmatprep.subr.bf16.mxu0 0
    %1991 = vmatpush1.bf16.msra.mxu0 %v1933
    %1992 = vmatprep.subr.bf16.mxu0 0
    %1993 = vmatpush1.bf16.msra.mxu0 %v1934
    %1994 = vmatprep.subr.bf16.mxu0 0
    %1995 = vmatpush1.bf16.msra.mxu0 %v1935
    %1996 = vmatprep.subr.bf16.mxu0 0
    %1997 = vmatpush1.bf16.msra.mxu0 %v1936
    %1998 = vmatprep.subr.bf16.mxu0 0
    %1999 = vmatpush1.bf16.msra.mxu0 %v1937
    %2000 = vmatprep.subr.bf16.mxu0 0
    %2001 = vmatpush1.bf16.msra.mxu0 %v1938
    %2002 = vmatprep.subr.bf16.mxu0 0
    %2003 = vmatpush1.bf16.msra.mxu0 %v1939
    %2004 = vmatprep.subr.bf16.mxu0 0
    %2005 = vmatpush1.bf16.msra.mxu0 0
    %2006 = vmatprep.subr.bf16.mxu0 0
    %2007 = vmatpush1.bf16.msra.mxu0 0
    %2008 = vmatprep.subr.bf16.mxu0 0
    %2009 = vmatpush1.bf16.msra.mxu0 0
    %2010 = vmatprep.subr.bf16.mxu0 0
    %2011 = vmatpush1.bf16.msra.mxu0 0
    %2012 = vmatprep.subr.bf16.mxu0 0
    %2013 = vmatpush1.bf16.msra.mxu0 0
    %2014 = vmatprep.subr.bf16.mxu0 0
    %2015 = vmatpush1.bf16.msra.mxu0 0
    %2016 = vmatprep.subr.bf16.mxu0 0
    %2017 = vmatpush1.bf16.msra.mxu0 0
    %2018 = vmatprep.subr.bf16.mxu0 0
    %2019 = vmatpush1.bf16.msra.mxu0 0
    %2020 = vmatprep.mubr.bf16.mxu0 0
    %2021 = vmatmul.mubr.bf16.gmra.mrb[0].mxu0 %v1710
    %v2022 = vpop.f32.mrb[0].mxu0
    %v2023 = vadd.f32 %v1895, %v2022
    %v2024 = vpop.f32.mrb[0].mxu0
    %v2025 = vpop.f32.mrb[0].mxu0
    %v2026 = vpop.f32.mrb[0].mxu0
    %2027 = vdwg.mxu0
    %s2028 = scalar_lea.vmem [#allocation6], 768
    %v2029 = vld [vmem:[%s2028] sm:$0xf]
    %v2030 = vld [vmem:[%s2028 + $0x4] sm:$0xf]
    %v2031 = vld [vmem:[%s2028 + $0x8] sm:$0xf]
    %v2032 = vld [vmem:[%s2028 + $0xc] sm:$0xf]
    %v2033 = vld [vmem:[%s2028 + $0x10] sm:$0xf]
    %v2034 = vld [vmem:[%s2028 + $0x14] sm:$0xf]
    %v2035 = vld [vmem:[%s2028 + $0x18] sm:$0xf]
    %v2036 = vld [vmem:[%s2028 + $0x1c] sm:$0xf]
    %v2037 = vld [vmem:[%s2028 + $0x20] sm:$0xf]
    %v2038 = vld [vmem:[%s2028 + $0x24] sm:$0xf]
    %v2039 = vld [vmem:[%s2028 + $0x28] sm:$0xf]
    %v2040 = vld [vmem:[%s2028 + $0x2c] sm:$0xf]
    %v2041 = vld [vmem:[%s2028 + $0x30] sm:$0xf]
    %v2042 = vld [vmem:[%s2028 + $0x34] sm:$0xf]
    %v2043 = vld [vmem:[%s2028 + $0x38] sm:$0xf]
    %v2044 = vld [vmem:[%s2028 + $0x3c] sm:$0xf]
    %v2045 = vrot.slane %v1750, 1
    %v2063 = vunpack.c.l.b16 %v2029
    %v2064 = vunpack.c.l.b16 %v2030
    %v2065 = vunpack.c.l.b16 %v2031
    %v2066 = vunpack.c.l.b16 %v2032
    %v2067 = vunpack.c.l.b16 %v2033
    %v2068 = vunpack.c.l.b16 %v2034
    %v2069 = vunpack.c.l.b16 %v2035
    %v2070 = vunpack.c.l.b16 %v2036
    %v2071 = vunpack.c.l.b16 %v2037
    %v2072 = vunpack.c.l.b16 %v2038
    %v2073 = vunpack.c.l.b16 %v2039
    %v2074 = vunpack.c.l.b16 %v2040
    %v2075 = vunpack.c.l.b16 %v2041
    %v2076 = vunpack.c.l.b16 %v2042
    %v2077 = vunpack.c.l.b16 %v2043
    %v2078 = vunpack.c.l.b16 %v2044
    %v2079 = vpack.c.b16 %v2064, %v2063
    %v2080 = vpack.c.b16 %v2066, %v2065
    %v2081 = vpack.c.b16 %v2068, %v2067
    %v2082 = vpack.c.b16 %v2070, %v2069
    %v2083 = vpack.c.b16 %v2072, %v2071
    %v2084 = vpack.c.b16 %v2074, %v2073
    %v2085 = vpack.c.b16 %v2076, %v2075
    %v2086 = vpack.c.b16 %v2078, %v2077
    %2095 = vmatprep.subr.bf16.mxu0 0
    %2096 = vmatpush1.bf16.msra.mxu0 %v2079
    %2097 = vmatprep.subr.bf16.mxu0 0
    %2098 = vmatpush1.bf16.msra.mxu0 %v2080
    %2099 = vmatprep.subr.bf16.mxu0 0
    %2100 = vmatpush1.bf16.msra.mxu0 %v2081
    %2101 = vmatprep.subr.bf16.mxu0 0
    %2102 = vmatpush1.bf16.msra.mxu0 %v2082
    %2103 = vmatprep.subr.bf16.mxu0 0
    %2104 = vmatpush1.bf16.msra.mxu0 %v2083
    %2105 = vmatprep.subr.bf16.mxu0 0
    %2106 = vmatpush1.bf16.msra.mxu0 %v2084
    %2107 = vmatprep.subr.bf16.mxu0 0
    %2108 = vmatpush1.bf16.msra.mxu0 %v2085
    %2109 = vmatprep.subr.bf16.mxu0 0
    %2110 = vmatpush1.bf16.msra.mxu0 %v2086
    %2111 = vmatprep.subr.bf16.mxu0 0
    %2112 = vmatpush1.bf16.msra.mxu0 0
    %2113 = vmatprep.subr.bf16.mxu0 0
    %2114 = vmatpush1.bf16.msra.mxu0 0
    %2115 = vmatprep.subr.bf16.mxu0 0
    %2116 = vmatpush1.bf16.msra.mxu0 0
    %2117 = vmatprep.subr.bf16.mxu0 0
    %2118 = vmatpush1.bf16.msra.mxu0 0
    %2119 = vmatprep.subr.bf16.mxu0 0
    %2120 = vmatpush1.bf16.msra.mxu0 0
    %2121 = vmatprep.subr.bf16.mxu0 0
    %2122 = vmatpush1.bf16.msra.mxu0 0
    %2123 = vmatprep.subr.bf16.mxu0 0
    %2124 = vmatpush1.bf16.msra.mxu0 0
    %2125 = vmatprep.subr.bf16.mxu0 0
    %2126 = vmatpush1.bf16.msra.mxu0 0
    %2127 = vmatprep.mubr.bf16.mxu0 0
    %2128 = vmatmul.mubr.bf16.gmra.mrb[0].mxu0 %v2045
    %v2129 = vpop.f32.mrb[0].mxu0
    %v2130 = vadd.f32 0.0, %v2129
    %v2131 = vpop.f32.mrb[0].mxu0
    %v2132 = vpop.f32.mrb[0].mxu0
    %v2133 = vpop.f32.mrb[0].mxu0
    %2134 = vdwg.mxu0
    %v2135 = vrot.slane %v1851, 1
    %2137 = vmatprep.subr.bf16.mxu0 0
    %2138 = vmatpush1.bf16.msra.mxu0 %v2079
    %2139 = vmatprep.subr.bf16.mxu0 0
    %2140 = vmatpush1.bf16.msra.mxu0 %v2080
    %2141 = vmatprep.subr.bf16.mxu0 0
    %2142 = vmatpush1.bf16.msra.mxu0 %v2081
    %2143 = vmatprep.subr.bf16.mxu0 0
    %2144 = vmatpush1.bf16.msra.mxu0 %v2082
    %2145 = vmatprep.subr.bf16.mxu0 0
    %2146 = vmatpush1.bf16.msra.mxu0 %v2083
    %2147 = vmatprep.subr.bf16.mxu0 0
    %2148 = vmatpush1.bf16.msra.mxu0 %v2084
    %2149 = vmatprep.subr.bf16.mxu0 0
    %2150 = vmatpush1.bf16.msra.mxu0 %v2085
    %2151 = vmatprep.subr.bf16.mxu0 0
    %2152 = vmatpush1.bf16.msra.mxu0 %v2086
    %2153 = vmatprep.subr.bf16.mxu0 0
    %2154 = vmatpush1.bf16.msra.mxu0 0
    %2155 = vmatprep.subr.bf16.mxu0 0
    %2156 = vmatpush1.bf16.msra.mxu0 0
    %2157 = vmatprep.subr.bf16.mxu0 0
    %2158 = vmatpush1.bf16.msra.mxu0 0
    %2159 = vmatprep.subr.bf16.mxu0 0
    %2160 = vmatpush1.bf16.msra.mxu0 0
    %2161 = vmatprep.subr.bf16.mxu0 0
    %2162 = vmatpush1.bf16.msra.mxu0 0
    %2163 = vmatprep.subr.bf16.mxu0 0
    %2164 = vmatpush1.bf16.msra.mxu0 0
    %2165 = vmatprep.subr.bf16.mxu0 0
    %2166 = vmatpush1.bf16.msra.mxu0 0
    %2167 = vmatprep.subr.bf16.mxu0 0
    %2168 = vmatpush1.bf16.msra.mxu0 0
    %2169 = vmatprep.mubr.bf16.mxu0 0
    %2170 = vmatmul.mubr.bf16.gmra.mrb[0].mxu0 %v2135
    %v2171 = vpop.f32.mrb[0].mxu0
    %v2172 = vadd.f32 0.0, %v2171
    %v2173 = vpop.f32.mrb[0].mxu0
    %v2174 = vpop.f32.mrb[0].mxu0
    %v2175 = vpop.f32.mrb[0].mxu0
    %2176 = vdwg.mxu0
    %v2177 = vadd.f32 %v1983, %v2130
    %v2178 = vadd.f32 %v2023, %v2172
    %s2179 = scalar_lea.vmem [#allocation6], 832
    %v2180 = vld [vmem:[%s2179] sm:$0xf]
    %v2181 = vld [vmem:[%s2179 + $0x4] sm:$0xf]
    %v2182 = vld [vmem:[%s2179 + $0x8] sm:$0xf]
    %v2183 = vld [vmem:[%s2179 + $0xc] sm:$0xf]
    %v2184 = vld [vmem:[%s2179 + $0x10] sm:$0xf]
    %v2185 = vld [vmem:[%s2179 + $0x14] sm:$0xf]
    %v2186 = vld [vmem:[%s2179 + $0x18] sm:$0xf]
    %v2187 = vld [vmem:[%s2179 + $0x1c] sm:$0xf]
    %v2188 = vld [vmem:[%s2179 + $0x20] sm:$0xf]
    %v2189 = vld [vmem:[%s2179 + $0x24] sm:$0xf]
    %v2190 = vld [vmem:[%s2179 + $0x28] sm:$0xf]
    %v2191 = vld [vmem:[%s2179 + $0x2c] sm:$0xf]
    %v2192 = vld [vmem:[%s2179 + $0x30] sm:$0xf]
    %v2193 = vld [vmem:[%s2179 + $0x34] sm:$0xf]
    %v2194 = vld [vmem:[%s2179 + $0x38] sm:$0xf]
    %v2195 = vld [vmem:[%s2179 + $0x3c] sm:$0xf]
    %v2196 = vrot.slane %v1752, 1
    %v2197 = vrot.slane %v1754, 2
    %v2198 = vor.u32 %v2196, %v2197
    %v2216 = vunpack.c.l.b16 %v2180
    %v2217 = vunpack.c.l.b16 %v2181
    %v2218 = vunpack.c.l.b16 %v2182
    %v2219 = vunpack.c.l.b16 %v2183
    %v2220 = vunpack.c.l.b16 %v2184
    %v2221 = vunpack.c.l.b16 %v2185
    %v2222 = vunpack.c.l.b16 %v2186
    %v2223 = vunpack.c.l.b16 %v2187
    %v2224 = vunpack.c.l.b16 %v2188
    %v2225 = vunpack.c.l.b16 %v2189
    %v2226 = vunpack.c.l.b16 %v2190
    %v2227 = vunpack.c.l.b16 %v2191
    %v2228 = vunpack.c.l.b16 %v2192
    %v2229 = vunpack.c.l.b16 %v2193
    %v2230 = vunpack.c.l.b16 %v2194
    %v2231 = vunpack.c.l.b16 %v2195
    %v2232 = vpack.c.b16 %v2217, %v2216
    %v2233 = vpack.c.b16 %v2219, %v2218
    %v2234 = vpack.c.b16 %v2221, %v2220
    %v2235 = vpack.c.b16 %v2223, %v2222
    %v2236 = vpack.c.b16 %v2225, %v2224
    %v2237 = vpack.c.b16 %v2227, %v2226
    %v2238 = vpack.c.b16 %v2229, %v2228
    %v2239 = vpack.c.b16 %v2231, %v2230
    %2248 = vmatprep.subr.bf16.mxu0 0
    %2249 = vmatpush1.bf16.msra.mxu0 %v2232
    %2250 = vmatprep.subr.bf16.mxu0 0
    %2251 = vmatpush1.bf16.msra.mxu0 %v2233
    %2252 = vmatprep.subr.bf16.mxu0 0
    %2253 = vmatpush1.bf16.msra.mxu0 %v2234
    %2254 = vmatprep.subr.bf16.mxu0 0
    %2255 = vmatpush1.bf16.msra.mxu0 %v2235
    %2256 = vmatprep.subr.bf16.mxu0 0
    %2257 = vmatpush1.bf16.msra.mxu0 %v2236
    %2258 = vmatprep.subr.bf16.mxu0 0
    %2259 = vmatpush1.bf16.msra.mxu0 %v2237
    %2260 = vmatprep.subr.bf16.mxu0 0
    %2261 = vmatpush1.bf16.msra.mxu0 %v2238
    %2262 = vmatprep.subr.bf16.mxu0 0
    %2263 = vmatpush1.bf16.msra.mxu0 %v2239
    %2264 = vmatprep.subr.bf16.mxu0 0
    %2265 = vmatpush1.bf16.msra.mxu0 0
    %2266 = vmatprep.subr.bf16.mxu0 0
    %2267 = vmatpush1.bf16.msra.mxu0 0
    %2268 = vmatprep.subr.bf16.mxu0 0
    %2269 = vmatpush1.bf16.msra.mxu0 0
    %2270 = vmatprep.subr.bf16.mxu0 0
    %2271 = vmatpush1.bf16.msra.mxu0 0
    %2272 = vmatprep.subr.bf16.mxu0 0
    %2273 = vmatpush1.bf16.msra.mxu0 0
    %2274 = vmatprep.subr.bf16.mxu0 0
    %2275 = vmatpush1.bf16.msra.mxu0 0
    %2276 = vmatprep.subr.bf16.mxu0 0
    %2277 = vmatpush1.bf16.msra.mxu0 0
    %2278 = vmatprep.subr.bf16.mxu0 0
    %2279 = vmatpush1.bf16.msra.mxu0 0
    %2280 = vmatprep.mubr.bf16.mxu0 0
    %2281 = vmatmul.mubr.bf16.gmra.mrb[0].mxu0 %v2198
    %v2282 = vpop.f32.mrb[0].mxu0
    %v2283 = vadd.f32 0.0, %v2282
    %v2284 = vpop.f32.mrb[0].mxu0
    %v2285 = vpop.f32.mrb[0].mxu0
    %v2286 = vpop.f32.mrb[0].mxu0
    %2287 = vdwg.mxu0
    %v2288 = vrot.slane %v1853, 1
    %v2289 = vrot.slane %v1855, 2
    %v2290 = vor.u32 %v2288, %v2289
    %2292 = vmatprep.subr.bf16.mxu0 0
    %2293 = vmatpush1.bf16.msra.mxu0 %v2232
    %2294 = vmatprep.subr.bf16.mxu0 0
    %2295 = vmatpush1.bf16.msra.mxu0 %v2233
    %2296 = vmatprep.subr.bf16.mxu0 0
    %2297 = vmatpush1.bf16.msra.mxu0 %v2234
    %2298 = vmatprep.subr.bf16.mxu0 0
    %2299 = vmatpush1.bf16.msra.mxu0 %v2235
    %2300 = vmatprep.subr.bf16.mxu0 0
    %2301 = vmatpush1.bf16.msra.mxu0 %v2236
    %2302 = vmatprep.subr.bf16.mxu0 0
    %2303 = vmatpush1.bf16.msra.mxu0 %v2237
    %2304 = vmatprep.subr.bf16.mxu0 0
    %2305 = vmatpush1.bf16.msra.mxu0 %v2238
    %2306 = vmatprep.subr.bf16.mxu0 0
    %2307 = vmatpush1.bf16.msra.mxu0 %v2239
    %2308 = vmatprep.subr.bf16.mxu0 0
    %2309 = vmatpush1.bf16.msra.mxu0 0
    %2310 = vmatprep.subr.bf16.mxu0 0
    %2311 = vmatpush1.bf16.msra.mxu0 0
    %2312 = vmatprep.subr.bf16.mxu0 0
    %2313 = vmatpush1.bf16.msra.mxu0 0
    %2314 = vmatprep.subr.bf16.mxu0 0
    %2315 = vmatpush1.bf16.msra.mxu0 0
    %2316 = vmatprep.subr.bf16.mxu0 0
    %2317 = vmatpush1.bf16.msra.mxu0 0
    %2318 = vmatprep.subr.bf16.mxu0 0
    %2319 = vmatpush1.bf16.msra.mxu0 0
    %2320 = vmatprep.subr.bf16.mxu0 0
    %2321 = vmatpush1.bf16.msra.mxu0 0
    %2322 = vmatprep.subr.bf16.mxu0 0
    %2323 = vmatpush1.bf16.msra.mxu0 0
    %2324 = vmatprep.mubr.bf16.mxu0 0
    %2325 = vmatmul.mubr.bf16.gmra.mrb[0].mxu0 %v2290
    %v2326 = vpop.f32.mrb[0].mxu0
    %v2327 = vadd.f32 0.0, %v2326
    %v2328 = vpop.f32.mrb[0].mxu0
    %v2329 = vpop.f32.mrb[0].mxu0
    %v2330 = vpop.f32.mrb[0].mxu0
    %2331 = vdwg.mxu0
    %v2332 = vadd.f32 %v2177, %v2283
    %v2333 = vadd.f32 %v2178, %v2327
    %s2334 = scalar_lea.vmem [#allocation6], 896
    %v2335 = vld [vmem:[%s2334] sm:$0xf]
    %v2336 = vld [vmem:[%s2334 + $0x4] sm:$0xf]
    %v2337 = vld [vmem:[%s2334 + $0x8] sm:$0xf]
    %v2338 = vld [vmem:[%s2334 + $0xc] sm:$0xf]
    %v2339 = vld [vmem:[%s2334 + $0x10] sm:$0xf]
    %v2340 = vld [vmem:[%s2334 + $0x14] sm:$0xf]
    %v2341 = vld [vmem:[%s2334 + $0x18] sm:$0xf]
    %v2342 = vld [vmem:[%s2334 + $0x1c] sm:$0xf]
    %v2343 = vld [vmem:[%s2334 + $0x20] sm:$0xf]
    %v2344 = vld [vmem:[%s2334 + $0x24] sm:$0xf]
    %v2345 = vld [vmem:[%s2334 + $0x28] sm:$0xf]
    %v2346 = vld [vmem:[%s2334 + $0x2c] sm:$0xf]
    %v2347 = vld [vmem:[%s2334 + $0x30] sm:$0xf]
    %v2348 = vld [vmem:[%s2334 + $0x34] sm:$0xf]
    %v2349 = vld [vmem:[%s2334 + $0x38] sm:$0xf]
    %v2350 = vld [vmem:[%s2334 + $0x3c] sm:$0xf]
    %v2351 = vrot.slane %v1750, 2
    %v2369 = vunpack.c.l.b16 %v2335
    %v2370 = vunpack.c.l.b16 %v2336
    %v2371 = vunpack.c.l.b16 %v2337
    %v2372 = vunpack.c.l.b16 %v2338
    %v2373 = vunpack.c.l.b16 %v2339
    %v2374 = vunpack.c.l.b16 %v2340
    %v2375 = vunpack.c.l.b16 %v2341
    %v2376 = vunpack.c.l.b16 %v2342
    %v2377 = vunpack.c.l.b16 %v2343
    %v2378 = vunpack.c.l.b16 %v2344
    %v2379 = vunpack.c.l.b16 %v2345
    %v2380 = vunpack.c.l.b16 %v2346
    %v2381 = vunpack.c.l.b16 %v2347
    %v2382 = vunpack.c.l.b16 %v2348
    %v2383 = vunpack.c.l.b16 %v2349
    %v2384 = vunpack.c.l.b16 %v2350
    %v2385 = vpack.c.b16 %v2370, %v2369
    %v2386 = vpack.c.b16 %v2372, %v2371
    %v2387 = vpack.c.b16 %v2374, %v2373
    %v2388 = vpack.c.b16 %v2376, %v2375
    %v2389 = vpack.c.b16 %v2378, %v2377
    %v2390 = vpack.c.b16 %v2380, %v2379
    %v2391 = vpack.c.b16 %v2382, %v2381
    %v2392 = vpack.c.b16 %v2384, %v2383
    %2401 = vmatprep.subr.bf16.mxu0 0
    %2402 = vmatpush1.bf16.msra.mxu0 %v2385
    %2403 = vmatprep.subr.bf16.mxu0 0
    %2404 = vmatpush1.bf16.msra.mxu0 %v2386
    %2405 = vmatprep.subr.bf16.mxu0 0
    %2406 = vmatpush1.bf16.msra.mxu0 %v2387
    %2407 = vmatprep.subr.bf16.mxu0 0
    %2408 = vmatpush1.bf16.msra.mxu0 %v2388
    %2409 = vmatprep.subr.bf16.mxu0 0
    %2410 = vmatpush1.bf16.msra.mxu0 %v2389
    %2411 = vmatprep.subr.bf16.mxu0 0
    %2412 = vmatpush1.bf16.msra.mxu0 %v2390
    %2413 = vmatprep.subr.bf16.mxu0 0
    %2414 = vmatpush1.bf16.msra.mxu0 %v2391
    %2415 = vmatprep.subr.bf16.mxu0 0
    %2416 = vmatpush1.bf16.msra.mxu0 %v2392
    %2417 = vmatprep.subr.bf16.mxu0 0
    %2418 = vmatpush1.bf16.msra.mxu0 0
    %2419 = vmatprep.subr.bf16.mxu0 0
    %2420 = vmatpush1.bf16.msra.mxu0 0
    %2421 = vmatprep.subr.bf16.mxu0 0
    %2422 = vmatpush1.bf16.msra.mxu0 0
    %2423 = vmatprep.subr.bf16.mxu0 0
    %2424 = vmatpush1.bf16.msra.mxu0 0
    %2425 = vmatprep.subr.bf16.mxu0 0
    %2426 = vmatpush1.bf16.msra.mxu0 0
    %2427 = vmatprep.subr.bf16.mxu0 0
    %2428 = vmatpush1.bf16.msra.mxu0 0
    %2429 = vmatprep.subr.bf16.mxu0 0
    %2430 = vmatpush1.bf16.msra.mxu0 0
    %2431 = vmatprep.subr.bf16.mxu0 0
    %2432 = vmatpush1.bf16.msra.mxu0 0
    %2433 = vmatprep.mubr.bf16.mxu0 0
    %2434 = vmatmul.mubr.bf16.gmra.mrb[0].mxu0 %v2351
    %v2435 = vpop.f32.mrb[0].mxu0
    %v2436 = vadd.f32 0.0, %v2435
    %v2437 = vpop.f32.mrb[0].mxu0
    %v2438 = vpop.f32.mrb[0].mxu0
    %v2439 = vpop.f32.mrb[0].mxu0
    %2440 = vdwg.mxu0
    %v2441 = vrot.slane %v1851, 2
    %2443 = vmatprep.subr.bf16.mxu0 0
    %2444 = vmatpush1.bf16.msra.mxu0 %v2385
    %2445 = vmatprep.subr.bf16.mxu0 0
    %2446 = vmatpush1.bf16.msra.mxu0 %v2386
    %2447 = vmatprep.subr.bf16.mxu0 0
    %2448 = vmatpush1.bf16.msra.mxu0 %v2387
    %2449 = vmatprep.subr.bf16.mxu0 0
    %2450 = vmatpush1.bf16.msra.mxu0 %v2388
    %2451 = vmatprep.subr.bf16.mxu0 0
    %2452 = vmatpush1.bf16.msra.mxu0 %v2389
    %2453 = vmatprep.subr.bf16.mxu0 0
    %2454 = vmatpush1.bf16.msra.mxu0 %v2390
    %2455 = vmatprep.subr.bf16.mxu0 0
    %2456 = vmatpush1.bf16.msra.mxu0 %v2391
    %2457 = vmatprep.subr.bf16.mxu0 0
    %2458 = vmatpush1.bf16.msra.mxu0 %v2392
    %2459 = vmatprep.subr.bf16.mxu0 0
    %2460 = vmatpush1.bf16.msra.mxu0 0
    %2461 = vmatprep.subr.bf16.mxu0 0
    %2462 = vmatpush1.bf16.msra.mxu0 0
    %2463 = vmatprep.subr.bf16.mxu0 0
    %2464 = vmatpush1.bf16.msra.mxu0 0
    %2465 = vmatprep.subr.bf16.mxu0 0
    %2466 = vmatpush1.bf16.msra.mxu0 0
    %2467 = vmatprep.subr.bf16.mxu0 0
    %2468 = vmatpush1.bf16.msra.mxu0 0
    %2469 = vmatprep.subr.bf16.mxu0 0
    %2470 = vmatpush1.bf16.msra.mxu0 0
    %2471 = vmatprep.subr.bf16.mxu0 0
    %2472 = vmatpush1.bf16.msra.mxu0 0
    %2473 = vmatprep.subr.bf16.mxu0 0
    %2474 = vmatpush1.bf16.msra.mxu0 0
    %2475 = vmatprep.mubr.bf16.mxu0 0
    %2476 = vmatmul.mubr.bf16.gmra.mrb[0].mxu0 %v2441
    %v2477 = vpop.f32.mrb[0].mxu0
    %v2478 = vadd.f32 0.0, %v2477
    %v2479 = vpop.f32.mrb[0].mxu0
    %v2480 = vpop.f32.mrb[0].mxu0
    %v2481 = vpop.f32.mrb[0].mxu0
    %2482 = vdwg.mxu0
    %v2483 = vadd.f32 %v2332, %v2436
    %v2484 = vadd.f32 %v2333, %v2478
    %s2485 = scalar_lea.vmem %s2, 2
    %v2486 = vld [vmem:[%s2485] sm:$0x1]
    %v2488 = vlaneseq
    %v2489 = vshrl.u32 %v2488, 7
    %v2490 = vsub.s32 0, %v2489
    %v2491 = vrot.slane %v2486, %v2490
    %v2493 = vmul.f32 %v2483, %v2491
    %v2494 = vmul.f32 %v2484, %v2491
    %s2495 = scalar_lea.vmem %s3, 2
    %v2496 = vld [vmem:[%s2495] sm:$0x1]
    %v2498 = vlaneseq
    %v2499 = vshrl.u32 %v2498, 7
    %v2500 = vsub.s32 0, %v2499
    %v2501 = vrot.slane %v2496, %v2500
    %v2503 = vadd.f32 %v2493, %v2501
    %v2504 = vadd.f32 %v2494, %v2501
    %v2505 = vmax.f32 %v2503, 0.0
    %v2506 = vmax.f32 %v2504, 0.0
    %v2507 = vpack.c.bf16 %v2505, %v2505
    %v2508 = vpack.c.bf16 %v2506, %v2506
    %v2512 = vunpack.c.l.s4 1966171168
    %v2513 = vunpack.c.0.s8 %v2512
    %v2514 = vlaneseq
    %v2515 = vshrl.u32 %v2514, 7
    %v2516 = vsub.s32 %v2513, %v2515
    %v2517 = vrot.slane %v2507, %v2516
    %v2519 = vunpack.c.l.s4 1966171168
    %v2520 = vunpack.c.0.s8 %v2519
    %v2521 = vlaneseq
    %v2522 = vshrl.u32 %v2521, 7
    %v2523 = vsub.s32 %v2520, %v2522
    %v2524 = vrot.slane %v2517, %v2523
    %v2526 = vunpack.c.l.s4 1966171168
    %v2527 = vunpack.c.0.s8 %v2526
    %v2528 = vlaneseq
    %v2529 = vshrl.u32 %v2528, 7
    %v2530 = vsub.s32 %v2527, %v2529
    %v2531 = vrot.slane %v2508, %v2530
    %v2533 = vunpack.c.l.s4 1966171168
    %v2534 = vunpack.c.0.s8 %v2533
    %v2535 = vlaneseq
    %v2536 = vshrl.u32 %v2535, 7
    %v2537 = vsub.s32 %v2534, %v2536
    %v2538 = vrot.slane %v2531, %v2537
    %v2540 = vunpack.c.l.s4 1935823168
    %v2541 = vunpack.c.0.s8 %v2540
    %v2542 = vlaneseq
    %v2543 = vshrl.u32 %v2542, 7
    %v2544 = vsub.s32 %v2541, %v2543
    %v2545 = vrot.slane %v2524, %v2544
    %v2547 = vunpack.c.l.s4 1935823168
    %v2548 = vunpack.c.0.s8 %v2547
    %v2549 = vlaneseq
    %v2550 = vshrl.u32 %v2549, 7
    %v2551 = vsub.s32 %v2548, %v2550
    %v2552 = vrot.slane %v2545, %v2551
    %v2554 = vunpack.c.l.s4 1935823168
    %v2555 = vunpack.c.0.s8 %v2554
    %v2556 = vlaneseq
    %v2557 = vshrl.u32 %v2556, 7
    %v2558 = vsub.s32 %v2555, %v2557
    %v2559 = vrot.slane %v2538, %v2558
    %v2561 = vunpack.c.l.s4 1935823168
    %v2562 = vunpack.c.0.s8 %v2561
    %v2563 = vlaneseq
    %v2564 = vshrl.u32 %v2563, 7
    %v2565 = vsub.s32 %v2562, %v2564
    %v2566 = vrot.slane %v2559, %v2565
    %v2567 = vunpack.c.l.b16 %v2552
    %v2568 = vunpack.c.l.b16 %v2566
    %v2569 = vrot.slane %v2568, 7
    %vm2570 = vcmask 1041409
    %v2571 = vsel %vm2570, %v2569, %v2567
    %v2572 = vpack.c.b16 %v2571, %v2571
    %v2574 = vunpack.c.l.s4 1966171168
    %v2575 = vunpack.c.0.s8 %v2574
    %v2576 = vlaneseq
    %v2577 = vshrl.u32 %v2576, 7
    %v2578 = vsub.s32 %v2575, %v2577
    %v2579 = vrot.slane %v2572, %v2578
    %v2581 = vunpack.c.l.s4 1966171168
    %v2582 = vunpack.c.0.s8 %v2581
    %v2583 = vlaneseq
    %v2584 = vshrl.u32 %v2583, 7
    %v2585 = vsub.s32 %v2582, %v2584
    %v2586 = vrot.slane %v2579, %v2585
    %2588 = vst [vmem:[#allocation8] sm:$0x1] %v2586
    %v2589 = vrot.slane %v2567, 1
    %v2590 = vsel %vm2570, %v2568, %v2589
    %v2591 = vpack.c.b16 %v2590, %v2590
    %v2593 = vunpack.c.l.s4 1966171168
    %v2594 = vunpack.c.0.s8 %v2593
    %v2595 = vlaneseq
    %v2596 = vshrl.u32 %v2595, 7
    %v2597 = vsub.s32 %v2594, %v2596
    %v2598 = vrot.slane %v2591, %v2597
    %v2600 = vunpack.c.l.s4 1966171168
    %v2601 = vunpack.c.0.s8 %v2600
    %v2602 = vlaneseq
    %v2603 = vshrl.u32 %v2602, 7
    %v2604 = vsub.s32 %v2601, %v2603
    %v2605 = vrot.slane %v2598, %v2604
    %s2607 = scalar_lea.vmem [#allocation8], 1
    %2608 = vst [vmem:[%s2607] sm:$0x1] %v2605
    %v2609 = vcombine.high %v2517, %v2517
    %v2611 = vunpack.c.l.s4 1966171168
    %v2612 = vunpack.c.0.s8 %v2611
    %v2613 = vlaneseq
    %v2614 = vshrl.u32 %v2613, 7
    %v2615 = vsub.s32 %v2612, %v2614
    %v2616 = vrot.slane %v2609, %v2615
    %v2617 = vcombine.high %v2531, %v2531
    %v2619 = vunpack.c.l.s4 1966171168
    %v2620 = vunpack.c.0.s8 %v2619
    %v2621 = vlaneseq
    %v2622 = vshrl.u32 %v2621, 7
    %v2623 = vsub.s32 %v2620, %v2622
    %v2624 = vrot.slane %v2617, %v2623
    %v2626 = vunpack.c.l.s4 1935823168
    %v2627 = vunpack.c.0.s8 %v2626
    %v2628 = vlaneseq
    %v2629 = vshrl.u32 %v2628, 7
    %v2630 = vsub.s32 %v2627, %v2629
    %v2631 = vrot.slane %v2616, %v2630
    %v2633 = vunpack.c.l.s4 1935823168
    %v2634 = vunpack.c.0.s8 %v2633
    %v2635 = vlaneseq
    %v2636 = vshrl.u32 %v2635, 7
    %v2637 = vsub.s32 %v2634, %v2636
    %v2638 = vrot.slane %v2631, %v2637
    %v2640 = vunpack.c.l.s4 1935823168
    %v2641 = vunpack.c.0.s8 %v2640
    %v2642 = vlaneseq
    %v2643 = vshrl.u32 %v2642, 7
    %v2644 = vsub.s32 %v2641, %v2643
    %v2645 = vrot.slane %v2624, %v2644
    %v2647 = vunpack.c.l.s4 1935823168
    %v2648 = vunpack.c.0.s8 %v2647
    %v2649 = vlaneseq
    %v2650 = vshrl.u32 %v2649, 7
    %v2651 = vsub.s32 %v2648, %v2650
    %v2652 = vrot.slane %v2645, %v2651
    %v2653 = vunpack.c.l.b16 %v2638
    %v2654 = vunpack.c.l.b16 %v2652
    %v2655 = vrot.slane %v2654, 7
    %v2656 = vsel %vm2570, %v2655, %v2653
    %v2657 = vpack.c.b16 %v2656, %v2656
    %v2659 = vunpack.c.l.s4 1966171168
    %v2660 = vunpack.c.0.s8 %v2659
    %v2661 = vlaneseq
    %v2662 = vshrl.u32 %v2661, 7
    %v2663 = vsub.s32 %v2660, %v2662
    %v2664 = vrot.slane %v2657, %v2663
    %v2666 = vunpack.c.l.s4 1966171168
    %v2667 = vunpack.c.0.s8 %v2666
    %v2668 = vlaneseq
    %v2669 = vshrl.u32 %v2668, 7
    %v2670 = vsub.s32 %v2667, %v2669
    %v2671 = vrot.slane %v2664, %v2670
    %s2673 = scalar_lea.vmem [#allocation8], 2
    %2674 = vst [vmem:[%s2673] sm:$0x1] %v2671
    %v2675 = vrot.slane %v2653, 1
    %v2676 = vsel %vm2570, %v2654, %v2675
    %v2677 = vpack.c.b16 %v2676, %v2676
    %v2679 = vunpack.c.l.s4 1966171168
    %v2680 = vunpack.c.0.s8 %v2679
    %v2681 = vlaneseq
    %v2682 = vshrl.u32 %v2681, 7
    %v2683 = vsub.s32 %v2680, %v2682
    %v2684 = vrot.slane %v2677, %v2683
    %v2686 = vunpack.c.l.s4 1966171168
    %v2687 = vunpack.c.0.s8 %v2686
    %v2688 = vlaneseq
    %v2689 = vshrl.u32 %v2688, 7
    %v2690 = vsub.s32 %v2687, %v2689
    %v2691 = vrot.slane %v2684, %v2690
    %s2693 = scalar_lea.vmem [#allocation8], 3
    %2694 = vst [vmem:[%s2693] sm:$0x1] %v2691
    %v2695 = vcombine.high %v2524, %v2524
    %v2696 = vcombine.high %v2538, %v2538
    %v2698 = vunpack.c.l.s4 1935823168
    %v2699 = vunpack.c.0.s8 %v2698
    %v2700 = vlaneseq
    %v2701 = vshrl.u32 %v2700, 7
    %v2702 = vsub.s32 %v2699, %v2701
    %v2703 = vrot.slane %v2695, %v2702
    %v2705 = vunpack.c.l.s4 1935823168
    %v2706 = vunpack.c.0.s8 %v2705
    %v2707 = vlaneseq
    %v2708 = vshrl.u32 %v2707, 7
    %v2709 = vsub.s32 %v2706, %v2708
    %v2710 = vrot.slane %v2703, %v2709
    %v2712 = vunpack.c.l.s4 1935823168
    %v2713 = vunpack.c.0.s8 %v2712
    %v2714 = vlaneseq
    %v2715 = vshrl.u32 %v2714, 7
    %v2716 = vsub.s32 %v2713, %v2715
    %v2717 = vrot.slane %v2696, %v2716
    %v2719 = vunpack.c.l.s4 1935823168
    %v2720 = vunpack.c.0.s8 %v2719
    %v2721 = vlaneseq
    %v2722 = vshrl.u32 %v2721, 7
    %v2723 = vsub.s32 %v2720, %v2722
    %v2724 = vrot.slane %v2717, %v2723
    %v2725 = vunpack.c.l.b16 %v2710
    %v2726 = vunpack.c.l.b16 %v2724
    %v2727 = vrot.slane %v2726, 7
    %v2728 = vsel %vm2570, %v2727, %v2725
    %v2729 = vpack.c.b16 %v2728, %v2728
    %v2731 = vunpack.c.l.s4 1966171168
    %v2732 = vunpack.c.0.s8 %v2731
    %v2733 = vlaneseq
    %v2734 = vshrl.u32 %v2733, 7
    %v2735 = vsub.s32 %v2732, %v2734
    %v2736 = vrot.slane %v2729, %v2735
    %v2738 = vunpack.c.l.s4 1966171168
    %v2739 = vunpack.c.0.s8 %v2738
    %v2740 = vlaneseq
    %v2741 = vshrl.u32 %v2740, 7
    %v2742 = vsub.s32 %v2739, %v2741
    %v2743 = vrot.slane %v2736, %v2742
    %s2745 = scalar_lea.vmem [#allocation8], 4
    %2746 = vst [vmem:[%s2745] sm:$0x1] %v2743
    %v2747 = vrot.slane %v2725, 1
    %v2748 = vsel %vm2570, %v2726, %v2747
    %v2749 = vpack.c.b16 %v2748, %v2748
    %v2751 = vunpack.c.l.s4 1966171168
    %v2752 = vunpack.c.0.s8 %v2751
    %v2753 = vlaneseq
    %v2754 = vshrl.u32 %v2753, 7
    %v2755 = vsub.s32 %v2752, %v2754
    %v2756 = vrot.slane %v2749, %v2755
    %v2758 = vunpack.c.l.s4 1966171168
    %v2759 = vunpack.c.0.s8 %v2758
    %v2760 = vlaneseq
    %v2761 = vshrl.u32 %v2760, 7
    %v2762 = vsub.s32 %v2759, %v2761
    %v2763 = vrot.slane %v2756, %v2762
    %s2765 = scalar_lea.vmem [#allocation8], 5
    %2766 = vst [vmem:[%s2765] sm:$0x1] %v2763
    %v2767 = vcombine.high %v2616, %v2616
    %v2768 = vcombine.high %v2624, %v2624
    %v2770 = vunpack.c.l.s4 1935823168
    %v2771 = vunpack.c.0.s8 %v2770
    %v2772 = vlaneseq
    %v2773 = vshrl.u32 %v2772, 7
    %v2774 = vsub.s32 %v2771, %v2773
    %v2775 = vrot.slane %v2767, %v2774
    %v2777 = vunpack.c.l.s4 1935823168
    %v2778 = vunpack.c.0.s8 %v2777
    %v2779 = vlaneseq
    %v2780 = vshrl.u32 %v2779, 7
    %v2781 = vsub.s32 %v2778, %v2780
    %v2782 = vrot.slane %v2775, %v2781
    %v2784 = vunpack.c.l.s4 1935823168
    %v2785 = vunpack.c.0.s8 %v2784
    %v2786 = vlaneseq
    %v2787 = vshrl.u32 %v2786, 7
    %v2788 = vsub.s32 %v2785, %v2787
    %v2789 = vrot.slane %v2768, %v2788
    %v2791 = vunpack.c.l.s4 1935823168
    %v2792 = vunpack.c.0.s8 %v2791
    %v2793 = vlaneseq
    %v2794 = vshrl.u32 %v2793, 7
    %v2795 = vsub.s32 %v2792, %v2794
    %v2796 = vrot.slane %v2789, %v2795
    %v2797 = vunpack.c.l.b16 %v2782
    %v2798 = vunpack.c.l.b16 %v2796
    %v2799 = vrot.slane %v2798, 7
    %v2800 = vsel %vm2570, %v2799, %v2797
    %v2801 = vpack.c.b16 %v2800, %v2800
    %v2803 = vunpack.c.l.s4 1966171168
    %v2804 = vunpack.c.0.s8 %v2803
    %v2805 = vlaneseq
    %v2806 = vshrl.u32 %v2805, 7
    %v2807 = vsub.s32 %v2804, %v2806
    %v2808 = vrot.slane %v2801, %v2807
    %v2810 = vunpack.c.l.s4 1966171168
    %v2811 = vunpack.c.0.s8 %v2810
    %v2812 = vlaneseq
    %v2813 = vshrl.u32 %v2812, 7
    %v2814 = vsub.s32 %v2811, %v2813
    %v2815 = vrot.slane %v2808, %v2814
    %s2817 = scalar_lea.vmem [#allocation8], 6
    %2818 = vst [vmem:[%s2817] sm:$0x1] %v2815
    %v2819 = vrot.slane %v2797, 1
    %v2820 = vsel %vm2570, %v2798, %v2819
    %v2821 = vpack.c.b16 %v2820, %v2820
    %v2823 = vunpack.c.l.s4 1966171168
    %v2824 = vunpack.c.0.s8 %v2823
    %v2825 = vlaneseq
    %v2826 = vshrl.u32 %v2825, 7
    %v2827 = vsub.s32 %v2824, %v2826
    %v2828 = vrot.slane %v2821, %v2827
    %v2830 = vunpack.c.l.s4 1966171168
    %v2831 = vunpack.c.0.s8 %v2830
    %v2832 = vlaneseq
    %v2833 = vshrl.u32 %v2832, 7
    %v2834 = vsub.s32 %v2831, %v2833
    %v2835 = vrot.slane %v2828, %v2834
    %s2837 = scalar_lea.vmem [#allocation8], 7
    %2838 = vst [vmem:[%s2837] sm:$0x1] %v2835
    // Predicated region
    $region26: #{tpu_custom_call.1} parent=1 // pred_check
      _
    $region27: #{tpu_custom_call.1} parent=1 // pred_check_branch
      %2840 = sbr.rel (0) target = $region29
    $region28: #{tpu_custom_call.1} parent=1 // pred_region
      %s2842 = ssub.s32 128, 128
      %2843 = vsyncadd [#allocation5], %s2842
      %s2844 = sshll.u32 [#allocation8], 4
      %s2845 = int_to_ptr.vmem [resolvable:$true] %s2844
      %2850 = dma.vmem_to_hbm [thread:$0]  %s2845, 128, %s4, [#allocation5], 16, 16, 1
    $region29: #{tpu_custom_call.1} parent=1 // pred_fallthru
      _
    // Predicated region
    $region30: #{tpu_custom_call.1} parent=1 // pred_check
      _
    $region31: #{tpu_custom_call.1} parent=1 // pred_check_branch
      %2852 = sbr.rel (0) target = $region33
    $region32: #{tpu_custom_call.1} parent=1 // pred_region
      %2853 = dma.done [#allocation5], 128
    $region33: #{tpu_custom_call.1} parent=1 // pred_fallthru
      _
    %2854 = vsyncpa [#allocation4], 1
    %2855 = vsyncpa [#allocation7], 1
    %2856 = vsyncpa [#allocation5], 1

</llo_original>
